<compile_context>
chip_gen: v7x
topology: tpu7x:2x2x1
jax: 0.10.0
libtpu: 0.0.40
codegen_flags: <defaults>
</compile_context>

<pallas_src>
import functools

import jax
import jax.numpy as jnp
from jax.experimental import pallas as pl
from jax.experimental.pallas import tpu as pltpu


# ----------------------------------------------------------------------------
# Kernel: one (batch element, layer) grid step of the decoder stack.
# ----------------------------------------------------------------------------
def decoder_layer_kernel(x0_ref, enc_ref, tmask_ref, smask_ref,
                         wqkv_ref, bqkv_ref, wee_ref, wkv_ref, bkv_ref,
                         w1_ref, b1_ref, w2_ref, vece_ref,
                         o_ref, *, num_heads, matmul_dtype):
    f32 = jnp.float32
    l = pl.program_id(1)                       # layer index (grid axis 1)
    S, E = o_ref.shape
    S_enc = enc_ref.shape[0]
    H = num_heads
    dh = E // H
    scale = 1.0 / float(dh) ** 0.5

    # The output block (constant block index across the layer axis) is the
    # resident activation carry: seed it from the embedded input at layer 0.
    @pl.when(l == 0)
    def _():
        o_ref[...] = x0_ref[...]

    x = o_ref[...]                              # (S, E) f32
    enc = enc_ref[...]                          # (S_enc, E) f32
    tmask = tmask_ref[...]                      # (S, S) additive
    smask = smask_ref[...]                      # (S, S_enc) additive

    def mm(a, b):
        # MXU matmul: operands in matmul_dtype (bf16 on v6e/v7x), f32 accumulate.
        return jnp.dot(a.astype(matmul_dtype), b.astype(matmul_dtype),
                       preferred_element_type=f32)

    def layer_norm(y, gamma, beta):
        mu = jnp.mean(y, axis=-1, keepdims=True)
        var = jnp.mean((y - mu) ** 2, axis=-1, keepdims=True)
        return (y - mu) * jax.lax.rsqrt(var + 1e-6) * gamma + beta   # eps=1e-6

    def split_heads(t, rows):
        # (rows, H*dh) -> (H, rows, dh): single reshape + transpose.
        return jnp.transpose(t.reshape(rows, H, dh), (1, 0, 2))

    def merge_heads(t, rows):
        # (H, rows, dh) -> (rows, H*dh)
        return jnp.transpose(t, (1, 0, 2)).reshape(rows, H * dh)

    def attention(q, k, v, rows_q, rows_k, mask):
        qh = split_heads(q, rows_q)
        kh = split_heads(k, rows_k)
        vh = split_heads(v, rows_k)
        s = jnp.einsum('hqd,hkd->hqk',
                       qh.astype(matmul_dtype), kh.astype(matmul_dtype),
                       preferred_element_type=f32) * scale
        s = s + mask[None, :, :]                         # additive attn_mask
        s = s - jnp.max(s, axis=-1, keepdims=True)       # stable softmax
        p = jnp.exp(s)
        p = p * pl.reciprocal(jnp.sum(p, axis=-1, keepdims=True), approx=True)
        ctx = jnp.einsum('hqk,hkd->hqd',
                         p.astype(matmul_dtype), vh.astype(matmul_dtype),
                         preferred_element_type=f32)
        return merge_heads(ctx, rows_q)

    # --- this layer's weights (BlockSpec already selected layer l) ---
    wqkv = wqkv_ref[...]                   # (E, 3E) fused self-attn in_proj
    bqkv = bqkv_ref[...]                   # (1, 3E)
    wo_s, wq_c, wo_c = wee_ref[0], wee_ref[1], wee_ref[2]   # (E, E) each
    wkv = wkv_ref[...]                     # (E, 2E) fused cross-attn k/v proj
    bkv = bkv_ref[...]                     # (1, 2E)
    w1 = w1_ref[...]                       # (E, F)
    b1 = b1_ref[...]                       # (1, F)
    w2 = w2_ref[...]                       # (F, E)
    vecs = vece_ref[...]                   # (8, E) packed small f32 vectors
    bo_s, bq_c, bo_c, b2 = vecs[0:1], vecs[1:2], vecs[2:3], vecs[3:4]
    g1, be1, g2, be2 = vecs[4:5], vecs[5:6], vecs[6:7], vecs[7:8]

    # --- masked self-attention (q = k = v = x) ---
    qkv = mm(x, wqkv) + bqkv                               # (S, 3E)
    q, k, v = qkv[:, :E], qkv[:, E:2 * E], qkv[:, 2 * E:]
    sa = attention(q, k, v, S, S, tmask)
    sa = mm(sa, wo_s) + bo_s
    out1 = layer_norm(x + sa, g1, be1)         # dropout_1: identity (eval)

    # --- cross-attention over encoder output ---
    qc = mm(out1, wq_c) + bq_c                             # (S, E)
    kvc = mm(enc, wkv) + bkv                               # (S_enc, 2E)
    kc, vc = kvc[:, :E], kvc[:, E:]
    ca = attention(qc, kc, vc, S, S_enc, smask)
    ca = mm(ca, wo_c) + bo_c
    out2 = layer_norm(out1 + ca, g2, be2)      # dropout_2: identity (eval)

    # --- feed-forward ---
    hdn = jnp.maximum(mm(out2, w1) + b1, 0.0)
    ffn = mm(hdn, w2) + b2
    # reference quirk: layernorm_2 (not _3) reused for the third residual
    o_ref[...] = layer_norm(out2 + ffn, g2, be2)           # dropout: identity


# ----------------------------------------------------------------------------
# Wrapper: (batch, layer) grid; batch "parallel" (megacore), layer "arbitrary".
# ----------------------------------------------------------------------------
def transformer_decoder(tokens, enc_output, src_mask, tgt_mask, params, *,
                        num_heads, matmul_dtype=jnp.bfloat16):
    N, S = tokens.shape
    _, S_enc, E = enc_output.shape
    L = params["w_qkv"].shape[0]
    F = params["w_ff1"].shape[2]

    # Embedding lookup stays in XLA (tiny gather + broadcast add). An in-kernel
    # one-hot matmul / resident table does not scale to real vocab sizes.
    x0 = (params["word_emb"][tokens]
          + params["pos_emb"][:S][None, :, :]).astype(jnp.float32)    # (N, S, E)
    enc = enc_output.astype(jnp.float32)

    # Stage matmul weights in the matmul dtype (halves weight DMA when bf16).
    wdt = matmul_dtype
    w_qkv = params["w_qkv"].astype(wdt)
    w_ee = params["w_ee"].astype(wdt)
    w_kv = params["w_kv"].astype(wdt)
    w_ff1 = params["w_ff1"].astype(wdt)
    w_ff2 = params["w_ff2"].astype(wdt)

    def batch_spec(shape):   # per-batch activation block, ignores layer axis
        return pl.BlockSpec((None,) + shape, lambda n, l: (n,) + (0,) * len(shape))

    def layer_spec(shape):   # per-layer weight block, ignores batch axis
        return pl.BlockSpec((None,) + shape, lambda n, l: (l,) + (0,) * len(shape))

    def const_spec(shape):   # fetched once, constant across the grid
        return pl.BlockSpec(shape, lambda n, l: (0,) * len(shape))

    in_specs = [
        batch_spec((S, E)),                    # embedded decoder input
        batch_spec((S_enc, E)),                # encoder output
        const_spec((S, S)),                    # tgt mask (additive)
        const_spec((S, S_enc)),                # src mask (additive)
        layer_spec((E, 3 * E)),                # fused self-attn qkv weight
        layer_spec((1, 3 * E)),                # fused self-attn qkv bias
        layer_spec((3, E, E)),                 # [self out, cross q, cross out]
        layer_spec((E, 2 * E)),                # fused cross-attn kv weight
        layer_spec((1, 2 * E)),                # fused cross-attn kv bias
        layer_spec((E, F)),                    # ffn w1
        layer_spec((1, F)),                    # ffn b1
        layer_spec((F, E)),                    # ffn w2
        # TODO(synk): sweep pipeline_mode=pl.Buffered(3) on the FFN weights if
        # their DMA is still exposed at production sizes (watch v7x VMEM).
        layer_spec((8, E)),                    # packed biases + ln gamma/beta
    ]

    kernel = functools.partial(decoder_layer_kernel,
                               num_heads=num_heads, matmul_dtype=matmul_dtype)
    out = pl.pallas_call(
        kernel,
        out_shape=jax.ShapeDtypeStruct((N, S, E), jnp.float32),
        grid=(N, L),
        in_specs=in_specs,
        out_specs=batch_spec((S, E)),
        compiler_params=pltpu.CompilerParams(
            # Batch axis sharded across TensorCores (2x on v7x); layer axis is
            # the sequential carry.  Raise vmem_limit_bytes here once per-layer
            # tiles grow (v5e scoped default is only 16 MiB).
            dimension_semantics=("parallel", "arbitrary")),
    )(x0, enc, tgt_mask, src_mask,
      w_qkv, params["b_qkv"], w_ee, w_kv, params["b_kv"],
      w_ff1, params["b_ff1"], w_ff2, params["vec_e"])
    return out


# ----------------------------------------------------------------------------
# Pure-JAX reference (f32 everywhere) for a loose numerical check.
# ----------------------------------------------------------------------------
def reference_forward(tokens, enc_output, src_mask, tgt_mask, params, *, num_heads):
    N, S = tokens.shape
    _, S_enc, E = enc_output.shape
    H = num_heads
    dh = E // H
    L = params["w_qkv"].shape[0]
    x = params["word_emb"][tokens] + params["pos_emb"][:S][None]

    def ln(y, g, b):
        mu = y.mean(-1, keepdims=True)
        var = ((y - mu) ** 2).mean(-1, keepdims=True)
        return (y - mu) / jnp.sqrt(var + 1e-6) * g + b

    def attn(q, k, v, mask):
        qh = q.reshape(N, -1, H, dh).transpose(0, 2, 1, 3)
        kh = k.reshape(N, -1, H, dh).transpose(0, 2, 1, 3)
        vh = v.reshape(N, -1, H, dh).transpose(0, 2, 1, 3)
        s = jnp.einsum('nhqd,nhkd->nhqk', qh, kh) / jnp.sqrt(float(dh)) + mask
        p = jax.nn.softmax(s, axis=-1)
        c = jnp.einsum('nhqk,nhkd->nhqd', p, vh)
        return c.transpose(0, 2, 1, 3).reshape(N, -1, E)

    for l in range(L):
        wqkv, bqkv = params["w_qkv"][l], params["b_qkv"][l]
        wo_s, wq_c, wo_c = params["w_ee"][l]
        wkv, bkv = params["w_kv"][l], params["b_kv"][l]
        w1, b1, w2 = params["w_ff1"][l], params["b_ff1"][l], params["w_ff2"][l]
        vecs = params["vec_e"][l]
        bo_s, bq_c, bo_c, b2 = vecs[0], vecs[1], vecs[2], vecs[3]
        g1, be1, g2, be2 = vecs[4], vecs[5], vecs[6], vecs[7]

        qkv = x @ wqkv + bqkv
        q, k, v = qkv[..., :E], qkv[..., E:2 * E], qkv[..., 2 * E:]
        out1 = ln(x + attn(q, k, v, tgt_mask) @ wo_s + bo_s, g1, be1)
        qc = out1 @ wq_c + bq_c
        kvc = enc_output @ wkv + bkv
        kc, vc = kvc[..., :E], kvc[..., E:]
        out2 = ln(out1 + attn(qc, kc, vc, src_mask) @ wo_c + bo_c, g2, be2)
        ffn = jnp.maximum(out2 @ w1 + b1, 0.0) @ w2 + b2
        x = ln(out2 + ffn, g2, be2)      # reference quirk: layernorm_2 reused
    return x


# ----------------------------------------------------------------------------
# Deterministic synthetic parameters (pre-transposed to [in, out], per-layer
# weights stacked on a leading L axis, small (E,) vectors packed into (L,8,E)).
# ----------------------------------------------------------------------------
def init_layer(key, E, F):
    ks = jax.random.split(key, 14)
    s = 0.05
    w_qkv = jax.random.normal(ks[0], (E, 3 * E), jnp.float32) * s
    b_qkv = jax.random.normal(ks[1], (1, 3 * E), jnp.float32) * s
    wo_s = jax.random.normal(ks[2], (E, E), jnp.float32) * s
    bo_s = jax.random.normal(ks[3], (E,), jnp.float32) * s
    wq_c = jax.random.normal(ks[4], (E, E), jnp.float32) * s
    bq_c = jax.random.normal(ks[5], (E,), jnp.float32) * s
    w_kv = jax.random.normal(ks[6], (E, 2 * E), jnp.float32) * s
    b_kv = jax.random.normal(ks[7], (1, 2 * E), jnp.float32) * s
    wo_c = jax.random.normal(ks[8], (E, E), jnp.float32) * s
    bo_c = jax.random.normal(ks[9], (E,), jnp.float32) * s
    w1 = jax.random.normal(ks[10], (E, F), jnp.float32) * s
    b1 = jax.random.normal(ks[11], (1, F), jnp.float32) * s
    w2 = jax.random.normal(ks[12], (F, E), jnp.float32) * s
    b2 = jax.random.normal(ks[13], (E,), jnp.float32) * s
    g1, be1 = jnp.ones((E,)), jnp.zeros((E,))
    g2, be2 = jnp.ones((E,)), jnp.zeros((E,))
    # layernorm_3 / dropout_3 exist in the reference module but are never used
    # by its forward (it reuses layernorm_2 / dropout_2), so they are omitted.
    return dict(
        w_qkv=w_qkv, b_qkv=b_qkv,
        w_ee=jnp.stack([wo_s, wq_c, wo_c], axis=0),                    # (3, E, E)
        w_kv=w_kv, b_kv=b_kv,
        w_ff1=w1, b_ff1=b1, w_ff2=w2,
        vec_e=jnp.stack([bo_s, bq_c, bo_c, b2, g1, be1, g2, be2], 0),  # (8, E)
    )


def init_params(key, vocab, max_len, num_layers, E, F):
    keys = jax.random.split(key, 2 + num_layers)
    wemb = jax.random.normal(keys[0], (vocab, E), jnp.float32) * 0.02
    pemb = jax.random.normal(keys[1], (max_len, E), jnp.float32) * 0.02
    layers = [init_layer(keys[2 + i], E, F) for i in range(num_layers)]
    stacked = {k: jnp.stack([lp[k] for lp in layers], axis=0) for k in layers[0]}
    return dict(word_emb=wemb, pos_emb=pemb, **stacked)


if __name__ == "__main__":
    tgt_vocab_size = 100
    max_length = 8          # target sequence length == max_length
    S_enc = 8               # encoder (memory) sequence length
    num_layers = 2
    embed_dim = 32
    num_heads = 4
    ff_dim = 64
    N = 2

    key = jax.random.PRNGKey(0)
    k_tok, k_enc, k_par = jax.random.split(key, 3)
    tokens = jax.random.randint(k_tok, (N, max_length), 0, tgt_vocab_size,
                                dtype=jnp.int32)
    enc_output = jax.random.normal(k_enc, (N, S_enc, embed_dim), jnp.float32)
    # additive masks (nn.MultiheadAttention float attn_mask semantics):
    # causal target mask, no source masking.
    tgt_mask = jnp.where(
        jnp.arange(max_length)[:, None] >= jnp.arange(max_length)[None, :],
        0.0, -1e9).astype(jnp.float32)                        # (S, S)
    src_mask = jnp.zeros((max_length, S_enc), jnp.float32)    # (S, S_enc)

    params = init_params(k_par, tgt_vocab_size, max_length, num_layers,
                         embed_dim, ff_dim)

    # bf16 matmul operands (f32 accumulation) per the v6e/v7x perf feedback;
    # pass matmul_dtype=jnp.float32 for exact f32 reference numerics.
    fwd = jax.jit(functools.partial(transformer_decoder, num_heads=num_heads))
    out = fwd(tokens, enc_output, src_mask, tgt_mask, params)
    jax.block_until_ready(out)
    assert out.shape == (N, max_length, embed_dim) and out.dtype == jnp.float32

    ref = reference_forward(tokens, enc_output, src_mask, tgt_mask, params,
                            num_heads=num_heads)
    max_err = float(jnp.max(jnp.abs(out - ref)))
    assert max_err < 1e-1, f"max abs error vs f32 reference: {max_err}"
    print("KERNEL_OK")
</pallas_src>

<mosaic_0001>
module attributes {stable_mosaic.version = 11 : i64} {
  func.func @decoder_layer_kernel(%arg0: i32, %arg1: i32, %arg2: memref<1x8x32xf32, #tpu.memory_space<vmem>>, %arg3: memref<1x8x32xf32, #tpu.memory_space<vmem>>, %arg4: memref<8x8xf32, #tpu.memory_space<vmem>>, %arg5: memref<8x8xf32, #tpu.memory_space<vmem>>, %arg6: memref<1x32x96xbf16, #tpu.memory_space<vmem>>, %arg7: memref<1x1x96xf32, #tpu.memory_space<vmem>>, %arg8: memref<1x3x32x32xbf16, #tpu.memory_space<vmem>>, %arg9: memref<1x32x64xbf16, #tpu.memory_space<vmem>>, %arg10: memref<1x1x64xf32, #tpu.memory_space<vmem>>, %arg11: memref<1x32x64xbf16, #tpu.memory_space<vmem>>, %arg12: memref<1x1x64xf32, #tpu.memory_space<vmem>>, %arg13: memref<1x64x32xbf16, #tpu.memory_space<vmem>>, %arg14: memref<1x8x32xf32, #tpu.memory_space<vmem>>, %arg15: memref<1x8x32xf32, #tpu.memory_space<vmem>>) attributes {dimension_semantics = [#tpu.dimension_semantics<parallel>, #tpu.dimension_semantics<arbitrary>], iteration_bounds = array<i64: 2, 2>, scalar_prefetch = 0 : i64, scratch_operands = 0 : i64, tpu.core_type = #tpu.core_type<tc>, window_params = [{transform_indices = @transform_0, window_bounds = array<i64: 1, 8, 32>}, {transform_indices = @transform_1, window_bounds = array<i64: 1, 8, 32>}, {pipeline_mode = #tpu.pipeline_mode<synchronous>, transform_indices = @transform_2, window_bounds = array<i64: 8, 8>}, {pipeline_mode = #tpu.pipeline_mode<synchronous>, transform_indices = @transform_3, window_bounds = array<i64: 8, 8>}, {transform_indices = @transform_4, window_bounds = array<i64: 1, 32, 96>}, {transform_indices = @transform_5, window_bounds = array<i64: 1, 1, 96>}, {transform_indices = @transform_6, window_bounds = array<i64: 1, 3, 32, 32>}, {transform_indices = @transform_7, window_bounds = array<i64: 1, 32, 64>}, {transform_indices = @transform_8, window_bounds = array<i64: 1, 1, 64>}, {transform_indices = @transform_9, window_bounds = array<i64: 1, 32, 64>}, {transform_indices = @transform_10, window_bounds = array<i64: 1, 1, 64>}, {transform_indices = @transform_11, window_bounds = array<i64: 1, 64, 32>}, {transform_indices = @transform_12, window_bounds = array<i64: 1, 8, 32>}, {transform_indices = @transform_13, window_bounds = array<i64: 1, 8, 32>}]} {
    %c0_i32 = arith.constant 0 : i32
    %0 = arith.cmpi eq, %arg1, %c0_i32 : i32
    %1 = arith.extui %0 : i1 to i32
    %c0_i32_0 = arith.constant 0 : i32
    %2 = arith.cmpi ne, %1, %c0_i32_0 : i32
    scf.if %2 {
      %c0_79 = arith.constant 0 : index
      %c0_80 = arith.constant 0 : index
      %c0_81 = arith.constant 0 : index
      %204 = vector.load %arg2[%c0_79, %c0_80, %c0_81] : memref<1x8x32xf32, #tpu.memory_space<vmem>>, vector<1x8x32xf32>
      %205 = vector.shape_cast %204 : vector<1x8x32xf32> to vector<8x32xf32>
      %c0_82 = arith.constant 0 : index
      %c0_83 = arith.constant 0 : index
      %c0_84 = arith.constant 0 : index
      %206 = vector.load %arg15[%c0_82, %c0_83, %c0_84] : memref<1x8x32xf32, #tpu.memory_space<vmem>>, vector<1x8x32xf32>
      %207 = vector.shape_cast %206 : vector<1x8x32xf32> to vector<8x32xf32>
      %208 = vector.shape_cast %205 : vector<8x32xf32> to vector<1x8x32xf32>
      tpu.vector_store %arg15[%c0_82, %c0_83, %c0_84], %208 {strides = array<i32>} : memref<1x8x32xf32, #tpu.memory_space<vmem>>, vector<1x8x32xf32>,
    } else {
    }
    %c0 = arith.constant 0 : index
    %c0_1 = arith.constant 0 : index
    %c0_2 = arith.constant 0 : index
    %3 = vector.load %arg15[%c0, %c0_1, %c0_2] : memref<1x8x32xf32, #tpu.memory_space<vmem>>, vector<1x8x32xf32>
    %4 = vector.shape_cast %3 : vector<1x8x32xf32> to vector<8x32xf32>
    %c0_3 = arith.constant 0 : index
    %c0_4 = arith.constant 0 : index
    %c0_5 = arith.constant 0 : index
    %5 = vector.load %arg3[%c0_3, %c0_4, %c0_5] : memref<1x8x32xf32, #tpu.memory_space<vmem>>, vector<1x8x32xf32>
    %6 = vector.shape_cast %5 : vector<1x8x32xf32> to vector<8x32xf32>
    %c0_6 = arith.constant 0 : index
    %c0_7 = arith.constant 0 : index
    %7 = vector.load %arg4[%c0_6, %c0_7] : memref<8x8xf32, #tpu.memory_space<vmem>>, vector<8x8xf32>
    %c0_8 = arith.constant 0 : index
    %c0_9 = arith.constant 0 : index
    %8 = vector.load %arg5[%c0_8, %c0_9] : memref<8x8xf32, #tpu.memory_space<vmem>>, vector<8x8xf32>
    %c0_10 = arith.constant 0 : index
    %c0_11 = arith.constant 0 : index
    %c0_12 = arith.constant 0 : index
    %9 = vector.load %arg6[%c0_10, %c0_11, %c0_12] : memref<1x32x96xbf16, #tpu.memory_space<vmem>>, vector<1x32x96xbf16>
    %10 = vector.shape_cast %9 : vector<1x32x96xbf16> to vector<32x96xbf16>
    %c0_13 = arith.constant 0 : index
    %c0_14 = arith.constant 0 : index
    %c0_15 = arith.constant 0 : index
    %11 = vector.load %arg7[%c0_13, %c0_14, %c0_15] : memref<1x1x96xf32, #tpu.memory_space<vmem>>, vector<1x1x96xf32>
    %12 = vector.shape_cast %11 : vector<1x1x96xf32> to vector<1x96xf32>
    %c0_16 = arith.constant 0 : index
    %c0_17 = arith.constant 0 : index
    %c0_18 = arith.constant 0 : index
    %c0_19 = arith.constant 0 : index
    %13 = vector.load %arg8[%c0_16, %c0_17, %c0_18, %c0_19] : memref<1x3x32x32xbf16, #tpu.memory_space<vmem>>, vector<1x1x32x32xbf16>
    %14 = vector.shape_cast %13 : vector<1x1x32x32xbf16> to vector<32x32xbf16>
    %c0_20 = arith.constant 0 : index
    %c1 = arith.constant 1 : index
    %c0_21 = arith.constant 0 : index
    %c0_22 = arith.constant 0 : index
    %15 = vector.load %arg8[%c0_20, %c1, %c0_21, %c0_22] : memref<1x3x32x32xbf16, #tpu.memory_space<vmem>>, vector<1x1x32x32xbf16>
    %16 = vector.shape_cast %15 : vector<1x1x32x32xbf16> to vector<32x32xbf16>
    %c0_23 = arith.constant 0 : index
    %c2 = arith.constant 2 : index
    %c0_24 = arith.constant 0 : index
    %c0_25 = arith.constant 0 : index
    %17 = vector.load %arg8[%c0_23, %c2, %c0_24, %c0_25] : memref<1x3x32x32xbf16, #tpu.memory_space<vmem>>, vector<1x1x32x32xbf16>
    %18 = vector.shape_cast %17 : vector<1x1x32x32xbf16> to vector<32x32xbf16>
    %c0_26 = arith.constant 0 : index
    %c0_27 = arith.constant 0 : index
    %c0_28 = arith.constant 0 : index
    %19 = vector.load %arg9[%c0_26, %c0_27, %c0_28] : memref<1x32x64xbf16, #tpu.memory_space<vmem>>, vector<1x32x64xbf16>
    %20 = vector.shape_cast %19 : vector<1x32x64xbf16> to vector<32x64xbf16>
    %c0_29 = arith.constant 0 : index
    %c0_30 = arith.constant 0 : index
    %c0_31 = arith.constant 0 : index
    %21 = vector.load %arg10[%c0_29, %c0_30, %c0_31] : memref<1x1x64xf32, #tpu.memory_space<vmem>>, vector<1x1x64xf32>
    %22 = vector.shape_cast %21 : vector<1x1x64xf32> to vector<1x64xf32>
    %c0_32 = arith.constant 0 : index
    %c0_33 = arith.constant 0 : index
    %c0_34 = arith.constant 0 : index
    %23 = vector.load %arg11[%c0_32, %c0_33, %c0_34] : memref<1x32x64xbf16, #tpu.memory_space<vmem>>, vector<1x32x64xbf16>
    %24 = vector.shape_cast %23 : vector<1x32x64xbf16> to vector<32x64xbf16>
    %c0_35 = arith.constant 0 : index
    %c0_36 = arith.constant 0 : index
    %c0_37 = arith.constant 0 : index
    %25 = vector.load %arg12[%c0_35, %c0_36, %c0_37] : memref<1x1x64xf32, #tpu.memory_space<vmem>>, vector<1x1x64xf32>
    %26 = vector.shape_cast %25 : vector<1x1x64xf32> to vector<1x64xf32>
    %c0_38 = arith.constant 0 : index
    %c0_39 = arith.constant 0 : index
    %c0_40 = arith.constant 0 : index
    %27 = vector.load %arg13[%c0_38, %c0_39, %c0_40] : memref<1x64x32xbf16, #tpu.memory_space<vmem>>, vector<1x64x32xbf16>
    %28 = vector.shape_cast %27 : vector<1x64x32xbf16> to vector<64x32xbf16>
    %c0_41 = arith.constant 0 : index
    %c0_42 = arith.constant 0 : index
    %c0_43 = arith.constant 0 : index
    %29 = vector.load %arg14[%c0_41, %c0_42, %c0_43] : memref<1x8x32xf32, #tpu.memory_space<vmem>>, vector<1x8x32xf32>
    %30 = vector.shape_cast %29 : vector<1x8x32xf32> to vector<8x32xf32>
    %31 = vector.extract_strided_slice %30 {offsets = [0, 0], sizes = [1, 32], strides = [1, 1]} : vector<8x32xf32> to vector<1x32xf32>
    %32 = vector.extract_strided_slice %30 {offsets = [1, 0], sizes = [1, 32], strides = [1, 1]} : vector<8x32xf32> to vector<1x32xf32>
    %33 = vector.extract_strided_slice %30 {offsets = [2, 0], sizes = [1, 32], strides = [1, 1]} : vector<8x32xf32> to vector<1x32xf32>
    %34 = vector.extract_strided_slice %30 {offsets = [3, 0], sizes = [1, 32], strides = [1, 1]} : vector<8x32xf32> to vector<1x32xf32>
    %35 = vector.extract_strided_slice %30 {offsets = [4, 0], sizes = [1, 32], strides = [1, 1]} : vector<8x32xf32> to vector<1x32xf32>
    %36 = vector.extract_strided_slice %30 {offsets = [5, 0], sizes = [1, 32], strides = [1, 1]} : vector<8x32xf32> to vector<1x32xf32>
    %37 = vector.extract_strided_slice %30 {offsets = [6, 0], sizes = [1, 32], strides = [1, 1]} : vector<8x32xf32> to vector<1x32xf32>
    %38 = vector.extract_strided_slice %30 {offsets = [7, 0], sizes = [1, 32], strides = [1, 1]} : vector<8x32xf32> to vector<1x32xf32>
    %39 = arith.truncf %4 : vector<8x32xf32> to vector<8x32xbf16>
    %cst = arith.constant dense<0.000000e+00> : vector<8x96xf32>
    %40 = tpu.matmul %39, %10, %cst {dimension_numbers = #tpu.dot_dimension_numbers<[1], [0], [0], [1], [0, 0, 1, 1], [], []>} : vector<8x32xbf16>, vector<32x96xbf16>, vector<8x96xf32> -> vector<8x96xf32>
    %41 = vector.broadcast %12 : vector<1x96xf32> to vector<8x96xf32>
    %42 = arith.addf %40, %41 : vector<8x96xf32>
    %43 = vector.extract_strided_slice %42 {offsets = [0, 0], sizes = [8, 32], strides = [1, 1]} : vector<8x96xf32> to vector<8x32xf32>
    %44 = vector.extract_strided_slice %42 {offsets = [0, 32], sizes = [8, 32], strides = [1, 1]} : vector<8x96xf32> to vector<8x32xf32>
    %45 = vector.extract_strided_slice %42 {offsets = [0, 64], sizes = [8, 32], strides = [1, 1]} : vector<8x96xf32> to vector<8x32xf32>
    %46 = vector.shape_cast %43 : vector<8x32xf32> to vector<8x4x8xf32>
    %47 = tpu.transpose %46, [1, 0, 2] : vector<8x4x8xf32> -> vector<4x8x8xf32>
    %48 = vector.shape_cast %44 : vector<8x32xf32> to vector<8x4x8xf32>
    %49 = tpu.transpose %48, [1, 0, 2] : vector<8x4x8xf32> -> vector<4x8x8xf32>
    %50 = vector.shape_cast %45 : vector<8x32xf32> to vector<8x4x8xf32>
    %51 = tpu.transpose %50, [1, 0, 2] : vector<8x4x8xf32> -> vector<4x8x8xf32>
    %52 = arith.truncf %47 : vector<4x8x8xf32> to vector<4x8x8xbf16>
    %53 = arith.truncf %49 : vector<4x8x8xf32> to vector<4x8x8xbf16>
    "tpu.trace_start"() <{level = 10 : i32, message = "hqd,hkd->hqk"}> : () -> ()
    %cst_44 = arith.constant dense<0.000000e+00> : vector<4x8x8xf32>
    %54 = tpu.matmul %52, %53, %cst_44 {dimension_numbers = #tpu.dot_dimension_numbers<[2], [2], [1], [1], [0, 0, 0, 1, 1, 1], [0], [0]>} : vector<4x8x8xbf16>, vector<4x8x8xbf16>, vector<4x8x8xf32> -> vector<4x8x8xf32>
    "tpu.trace_stop"() : () -> ()
    %cst_45 = arith.constant 0.353553385 : f32
    %55 = vector.broadcast %cst_45 : f32 to vector<4x8x8xf32>
    %56 = arith.mulf %54, %55 : vector<4x8x8xf32>
    %57 = vector.shape_cast %7 : vector<8x8xf32> to vector<1x8x8xf32>
    %58 = vector.broadcast %57 : vector<1x8x8xf32> to vector<4x8x8xf32>
    %59 = arith.addf %56, %58 : vector<4x8x8xf32>
    %cst_46 = arith.constant dense<0xFF800000> : vector<4x8xf32>
    %60 = vector.multi_reduction <maximumf>, %59, %cst_46 [2] : vector<4x8x8xf32> to vector<4x8xf32>
    %61 = vector.shape_cast %60 : vector<4x8xf32> to vector<4x8x1xf32>
    %62 = vector.broadcast %61 : vector<4x8x1xf32> to vector<4x8x8xf32>
    %63 = arith.subf %59, %62 : vector<4x8x8xf32>
    %64 = math.exp %63 : vector<4x8x8xf32>
    %cst_47 = arith.constant dense<0.000000e+00> : vector<4x8xf32>
    %65 = vector.multi_reduction <add>, %64, %cst_47 [2] : vector<4x8x8xf32> to vector<4x8xf32>
    %66 = vector.shape_cast %65 : vector<4x8xf32> to vector<4x8x1xf32>
    %67 = tpu.reciprocal %66 {approx = true} : vector<4x8x1xf32> -> vector<4x8x1xf32>
    %68 = vector.broadcast %67 : vector<4x8x1xf32> to vector<4x8x8xf32>
    %69 = arith.mulf %64, %68 : vector<4x8x8xf32>
    %70 = arith.truncf %69 : vector<4x8x8xf32> to vector<4x8x8xbf16>
    %71 = arith.truncf %51 : vector<4x8x8xf32> to vector<4x8x8xbf16>
    "tpu.trace_start"() <{level = 10 : i32, message = "hqk,hkd->hqd"}> : () -> ()
    %cst_48 = arith.constant dense<0.000000e+00> : vector<4x8x8xf32>
    %72 = tpu.matmul %70, %71, %cst_48 {dimension_numbers = #tpu.dot_dimension_numbers<[2], [1], [1], [2], [0, 0, 0, 1, 1, 2], [0], [0]>} : vector<4x8x8xbf16>, vector<4x8x8xbf16>, vector<4x8x8xf32> -> vector<4x8x8xf32>
    "tpu.trace_stop"() : () -> ()
    %73 = tpu.transpose %72, [1, 0, 2] : vector<4x8x8xf32> -> vector<8x4x8xf32>
    %74 = vector.shape_cast %73 : vector<8x4x8xf32> to vector<8x32xf32>
    %75 = arith.truncf %74 : vector<8x32xf32> to vector<8x32xbf16>
    %cst_49 = arith.constant dense<0.000000e+00> : vector<8x32xf32>
    %76 = tpu.matmul %75, %14, %cst_49 {dimension_numbers = #tpu.dot_dimension_numbers<[1], [0], [0], [1], [0, 0, 1, 1], [], []>} : vector<8x32xbf16>, vector<32x32xbf16>, vector<8x32xf32> -> vector<8x32xf32>
    %77 = vector.broadcast %31 : vector<1x32xf32> to vector<8x32xf32>
    %78 = arith.addf %76, %77 : vector<8x32xf32>
    %79 = arith.addf %4, %78 : vector<8x32xf32>
    %cst_50 = arith.constant dense<0.000000e+00> : vector<8xf32>
    %80 = vector.multi_reduction <add>, %79, %cst_50 [1] : vector<8x32xf32> to vector<8xf32>
    %81 = vector.shape_cast %80 : vector<8xf32> to vector<8x1xf32>
    %cst_51 = arith.constant 3.200000e+01 : f32
    %82 = vector.broadcast %cst_51 : f32 to vector<8x1xf32>
    %83 = arith.divf %81, %82 : vector<8x1xf32>
    %84 = vector.broadcast %83 : vector<8x1xf32> to vector<8x32xf32>
    %85 = arith.subf %79, %84 : vector<8x32xf32>
    %86 = arith.mulf %85, %85 : vector<8x32xf32>
    %cst_52 = arith.constant dense<0.000000e+00> : vector<8xf32>
    %87 = vector.multi_reduction <add>, %86, %cst_52 [1] : vector<8x32xf32> to vector<8xf32>
    %88 = vector.shape_cast %87 : vector<8xf32> to vector<8x1xf32>
    %cst_53 = arith.constant 3.200000e+01 : f32
    %89 = vector.broadcast %cst_53 : f32 to vector<8x1xf32>
    %90 = arith.divf %88, %89 : vector<8x1xf32>
    %91 = vector.broadcast %83 : vector<8x1xf32> to vector<8x32xf32>
    %92 = arith.subf %79, %91 : vector<8x32xf32>
    %cst_54 = arith.constant 9.99999997E-7 : f32
    %93 = vector.broadcast %cst_54 : f32 to vector<8x1xf32>
    %94 = arith.addf %90, %93 : vector<8x1xf32>
    %95 = math.rsqrt %94 : vector<8x1xf32>
    %96 = vector.broadcast %95 : vector<8x1xf32> to vector<8x32xf32>
    %97 = arith.mulf %92, %96 : vector<8x32xf32>
    %98 = vector.broadcast %35 : vector<1x32xf32> to vector<8x32xf32>
    %99 = arith.mulf %97, %98 : vector<8x32xf32>
    %100 = vector.broadcast %36 : vector<1x32xf32> to vector<8x32xf32>
    %101 = arith.addf %99, %100 : vector<8x32xf32>
    %102 = arith.truncf %101 : vector<8x32xf32> to vector<8x32xbf16>
    %cst_55 = arith.constant dense<0.000000e+00> : vector<8x32xf32>
    %103 = tpu.matmul %102, %16, %cst_55 {dimension_numbers = #tpu.dot_dimension_numbers<[1], [0], [0], [1], [0, 0, 1, 1], [], []>} : vector<8x32xbf16>, vector<32x32xbf16>, vector<8x32xf32> -> vector<8x32xf32>
    %104 = vector.broadcast %32 : vector<1x32xf32> to vector<8x32xf32>
    %105 = arith.addf %103, %104 : vector<8x32xf32>
    %106 = arith.truncf %6 : vector<8x32xf32> to vector<8x32xbf16>
    %cst_56 = arith.constant dense<0.000000e+00> : vector<8x64xf32>
    %107 = tpu.matmul %106, %20, %cst_56 {dimension_numbers = #tpu.dot_dimension_numbers<[1], [0], [0], [1], [0, 0, 1, 1], [], []>} : vector<8x32xbf16>, vector<32x64xbf16>, vector<8x64xf32> -> vector<8x64xf32>
    %108 = vector.broadcast %22 : vector<1x64xf32> to vector<8x64xf32>
    %109 = arith.addf %107, %108 : vector<8x64xf32>
    %110 = vector.extract_strided_slice %109 {offsets = [0, 0], sizes = [8, 32], strides = [1, 1]} : vector<8x64xf32> to vector<8x32xf32>
    %111 = vector.extract_strided_slice %109 {offsets = [0, 32], sizes = [8, 32], strides = [1, 1]} : vector<8x64xf32> to vector<8x32xf32>
    %112 = vector.shape_cast %105 : vector<8x32xf32> to vector<8x4x8xf32>
    %113 = tpu.transpose %112, [1, 0, 2] : vector<8x4x8xf32> -> vector<4x8x8xf32>
    %114 = vector.shape_cast %110 : vector<8x32xf32> to vector<8x4x8xf32>
    %115 = tpu.transpose %114, [1, 0, 2] : vector<8x4x8xf32> -> vector<4x8x8xf32>
    %116 = vector.shape_cast %111 : vector<8x32xf32> to vector<8x4x8xf32>
    %117 = tpu.transpose %116, [1, 0, 2] : vector<8x4x8xf32> -> vector<4x8x8xf32>
    %118 = arith.truncf %113 : vector<4x8x8xf32> to vector<4x8x8xbf16>
    %119 = arith.truncf %115 : vector<4x8x8xf32> to vector<4x8x8xbf16>
    "tpu.trace_start"() <{level = 10 : i32, message = "hqd,hkd->hqk"}> : () -> ()
    %cst_57 = arith.constant dense<0.000000e+00> : vector<4x8x8xf32>
    %120 = tpu.matmul %118, %119, %cst_57 {dimension_numbers = #tpu.dot_dimension_numbers<[2], [2], [1], [1], [0, 0, 0, 1, 1, 1], [0], [0]>} : vector<4x8x8xbf16>, vector<4x8x8xbf16>, vector<4x8x8xf32> -> vector<4x8x8xf32>
    "tpu.trace_stop"() : () -> ()
    %cst_58 = arith.constant 0.353553385 : f32
    %121 = vector.broadcast %cst_58 : f32 to vector<4x8x8xf32>
    %122 = arith.mulf %120, %121 : vector<4x8x8xf32>
    %123 = vector.shape_cast %8 : vector<8x8xf32> to vector<1x8x8xf32>
    %124 = vector.broadcast %123 : vector<1x8x8xf32> to vector<4x8x8xf32>
    %125 = arith.addf %122, %124 : vector<4x8x8xf32>
    %cst_59 = arith.constant dense<0xFF800000> : vector<4x8xf32>
    %126 = vector.multi_reduction <maximumf>, %125, %cst_59 [2] : vector<4x8x8xf32> to vector<4x8xf32>
    %127 = vector.shape_cast %126 : vector<4x8xf32> to vector<4x8x1xf32>
    %128 = vector.broadcast %127 : vector<4x8x1xf32> to vector<4x8x8xf32>
    %129 = arith.subf %125, %128 : vector<4x8x8xf32>
    %130 = math.exp %129 : vector<4x8x8xf32>
    %cst_60 = arith.constant dense<0.000000e+00> : vector<4x8xf32>
    %131 = vector.multi_reduction <add>, %130, %cst_60 [2] : vector<4x8x8xf32> to vector<4x8xf32>
    %132 = vector.shape_cast %131 : vector<4x8xf32> to vector<4x8x1xf32>
    %133 = tpu.reciprocal %132 {approx = true} : vector<4x8x1xf32> -> vector<4x8x1xf32>
    %134 = vector.broadcast %133 : vector<4x8x1xf32> to vector<4x8x8xf32>
    %135 = arith.mulf %130, %134 : vector<4x8x8xf32>
    %136 = arith.truncf %135 : vector<4x8x8xf32> to vector<4x8x8xbf16>
    %137 = arith.truncf %117 : vector<4x8x8xf32> to vector<4x8x8xbf16>
    "tpu.trace_start"() <{level = 10 : i32, message = "hqk,hkd->hqd"}> : () -> ()
    %cst_61 = arith.constant dense<0.000000e+00> : vector<4x8x8xf32>
    %138 = tpu.matmul %136, %137, %cst_61 {dimension_numbers = #tpu.dot_dimension_numbers<[2], [1], [1], [2], [0, 0, 0, 1, 1, 2], [0], [0]>} : vector<4x8x8xbf16>, vector<4x8x8xbf16>, vector<4x8x8xf32> -> vector<4x8x8xf32>
    "tpu.trace_stop"() : () -> ()
    %139 = tpu.transpose %138, [1, 0, 2] : vector<4x8x8xf32> -> vector<8x4x8xf32>
    %140 = vector.shape_cast %139 : vector<8x4x8xf32> to vector<8x32xf32>
    %141 = arith.truncf %140 : vector<8x32xf32> to vector<8x32xbf16>
    %cst_62 = arith.constant dense<0.000000e+00> : vector<8x32xf32>
    %142 = tpu.matmul %141, %18, %cst_62 {dimension_numbers = #tpu.dot_dimension_numbers<[1], [0], [0], [1], [0, 0, 1, 1], [], []>} : vector<8x32xbf16>, vector<32x32xbf16>, vector<8x32xf32> -> vector<8x32xf32>
    %143 = vector.broadcast %33 : vector<1x32xf32> to vector<8x32xf32>
    %144 = arith.addf %142, %143 : vector<8x32xf32>
    %145 = arith.addf %101, %144 : vector<8x32xf32>
    %cst_63 = arith.constant dense<0.000000e+00> : vector<8xf32>
    %146 = vector.multi_reduction <add>, %145, %cst_63 [1] : vector<8x32xf32> to vector<8xf32>
    %147 = vector.shape_cast %146 : vector<8xf32> to vector<8x1xf32>
    %cst_64 = arith.constant 3.200000e+01 : f32
    %148 = vector.broadcast %cst_64 : f32 to vector<8x1xf32>
    %149 = arith.divf %147, %148 : vector<8x1xf32>
    %150 = vector.broadcast %149 : vector<8x1xf32> to vector<8x32xf32>
    %151 = arith.subf %145, %150 : vector<8x32xf32>
    %152 = arith.mulf %151, %151 : vector<8x32xf32>
    %cst_65 = arith.constant dense<0.000000e+00> : vector<8xf32>
    %153 = vector.multi_reduction <add>, %152, %cst_65 [1] : vector<8x32xf32> to vector<8xf32>
    %154 = vector.shape_cast %153 : vector<8xf32> to vector<8x1xf32>
    %cst_66 = arith.constant 3.200000e+01 : f32
    %155 = vector.broadcast %cst_66 : f32 to vector<8x1xf32>
    %156 = arith.divf %154, %155 : vector<8x1xf32>
    %157 = vector.broadcast %149 : vector<8x1xf32> to vector<8x32xf32>
    %158 = arith.subf %145, %157 : vector<8x32xf32>
    %cst_67 = arith.constant 9.99999997E-7 : f32
    %159 = vector.broadcast %cst_67 : f32 to vector<8x1xf32>
    %160 = arith.addf %156, %159 : vector<8x1xf32>
    %161 = math.rsqrt %160 : vector<8x1xf32>
    %162 = vector.broadcast %161 : vector<8x1xf32> to vector<8x32xf32>
    %163 = arith.mulf %158, %162 : vector<8x32xf32>
    %164 = vector.broadcast %37 : vector<1x32xf32> to vector<8x32xf32>
    %165 = arith.mulf %163, %164 : vector<8x32xf32>
    %166 = vector.broadcast %38 : vector<1x32xf32> to vector<8x32xf32>
    %167 = arith.addf %165, %166 : vector<8x32xf32>
    %168 = arith.truncf %167 : vector<8x32xf32> to vector<8x32xbf16>
    %cst_68 = arith.constant dense<0.000000e+00> : vector<8x64xf32>
    %169 = tpu.matmul %168, %24, %cst_68 {dimension_numbers = #tpu.dot_dimension_numbers<[1], [0], [0], [1], [0, 0, 1, 1], [], []>} : vector<8x32xbf16>, vector<32x64xbf16>, vector<8x64xf32> -> vector<8x64xf32>
    %170 = vector.broadcast %26 : vector<1x64xf32> to vector<8x64xf32>
    %171 = arith.addf %169, %170 : vector<8x64xf32>
    %cst_69 = arith.constant 0.000000e+00 : f32
    %172 = vector.broadcast %cst_69 : f32 to vector<8x64xf32>
    %173 = arith.maximumf %171, %172 : vector<8x64xf32>
    %174 = arith.truncf %173 : vector<8x64xf32> to vector<8x64xbf16>
    %cst_70 = arith.constant dense<0.000000e+00> : vector<8x32xf32>
    %175 = tpu.matmul %174, %28, %cst_70 {dimension_numbers = #tpu.dot_dimension_numbers<[1], [0], [0], [1], [0, 0, 1, 1], [], []>} : vector<8x64xbf16>, vector<64x32xbf16>, vector<8x32xf32> -> vector<8x32xf32>
    %176 = vector.broadcast %34 : vector<1x32xf32> to vector<8x32xf32>
    %177 = arith.addf %175, %176 : vector<8x32xf32>
    %178 = arith.addf %167, %177 : vector<8x32xf32>
    %cst_71 = arith.constant dense<0.000000e+00> : vector<8xf32>
    %179 = vector.multi_reduction <add>, %178, %cst_71 [1] : vector<8x32xf32> to vector<8xf32>
    %180 = vector.shape_cast %179 : vector<8xf32> to vector<8x1xf32>
    %cst_72 = arith.constant 3.200000e+01 : f32
    %181 = vector.broadcast %cst_72 : f32 to vector<8x1xf32>
    %182 = arith.divf %180, %181 : vector<8x1xf32>
    %183 = vector.broadcast %182 : vector<8x1xf32> to vector<8x32xf32>
    %184 = arith.subf %178, %183 : vector<8x32xf32>
    %185 = arith.mulf %184, %184 : vector<8x32xf32>
    %cst_73 = arith.constant dense<0.000000e+00> : vector<8xf32>
    %186 = vector.multi_reduction <add>, %185, %cst_73 [1] : vector<8x32xf32> to vector<8xf32>
    %187 = vector.shape_cast %186 : vector<8xf32> to vector<8x1xf32>
    %cst_74 = arith.constant 3.200000e+01 : f32
    %188 = vector.broadcast %cst_74 : f32 to vector<8x1xf32>
    %189 = arith.divf %187, %188 : vector<8x1xf32>
    %190 = vector.broadcast %182 : vector<8x1xf32> to vector<8x32xf32>
    %191 = arith.subf %178, %190 : vector<8x32xf32>
    %cst_75 = arith.constant 9.99999997E-7 : f32
    %192 = vector.broadcast %cst_75 : f32 to vector<8x1xf32>
    %193 = arith.addf %189, %192 : vector<8x1xf32>
    %194 = math.rsqrt %193 : vector<8x1xf32>
    %195 = vector.broadcast %194 : vector<8x1xf32> to vector<8x32xf32>
    %196 = arith.mulf %191, %195 : vector<8x32xf32>
    %197 = vector.broadcast %37 : vector<1x32xf32> to vector<8x32xf32>
    %198 = arith.mulf %196, %197 : vector<8x32xf32>
    %199 = vector.broadcast %38 : vector<1x32xf32> to vector<8x32xf32>
    %200 = arith.addf %198, %199 : vector<8x32xf32>
    %c0_76 = arith.constant 0 : index
    %c0_77 = arith.constant 0 : index
    %c0_78 = arith.constant 0 : index
    %201 = vector.load %arg15[%c0_76, %c0_77, %c0_78] : memref<1x8x32xf32, #tpu.memory_space<vmem>>, vector<1x8x32xf32>
    %202 = vector.shape_cast %201 : vector<1x8x32xf32> to vector<8x32xf32>
    %203 = vector.shape_cast %200 : vector<8x32xf32> to vector<1x8x32xf32>
    tpu.vector_store %arg15[%c0_76, %c0_77, %c0_78], %203 {strides = array<i32>} : memref<1x8x32xf32, #tpu.memory_space<vmem>>, vector<1x8x32xf32>,
    return
  }
  func.func @transform_0(%arg0: i32, %arg1: i32) -> (i32, i32, i32) {
    %c0_i32 = arith.constant 0 : i32
    %c0_i32_0 = arith.constant 0 : i32
    %c0_i32_1 = arith.constant 0 : i32
    return %arg0, %c0_i32, %c0_i32_0 : i32, i32, i32
  }
  func.func @transform_1(%arg0: i32, %arg1: i32) -> (i32, i32, i32) {
    %c0_i32 = arith.constant 0 : i32
    %c0_i32_0 = arith.constant 0 : i32
    %c0_i32_1 = arith.constant 0 : i32
    return %arg0, %c0_i32, %c0_i32_0 : i32, i32, i32
  }
  func.func @transform_2(%arg0: i32, %arg1: i32) -> (i32, i32) {
    %c0_i32 = arith.constant 0 : i32
    %c0_i32_0 = arith.constant 0 : i32
    %c0_i32_1 = arith.constant 0 : i32
    return %c0_i32, %c0_i32_0 : i32, i32
  }
  func.func @transform_3(%arg0: i32, %arg1: i32) -> (i32, i32) {
    %c0_i32 = arith.constant 0 : i32
    %c0_i32_0 = arith.constant 0 : i32
    %c0_i32_1 = arith.constant 0 : i32
    return %c0_i32, %c0_i32_0 : i32, i32
  }
  func.func @transform_4(%arg0: i32, %arg1: i32) -> (i32, i32, i32) {
    %c0_i32 = arith.constant 0 : i32
    %c0_i32_0 = arith.constant 0 : i32
    %c0_i32_1 = arith.constant 0 : i32
    return %arg1, %c0_i32, %c0_i32_0 : i32, i32, i32
  }
  func.func @transform_5(%arg0: i32, %arg1: i32) -> (i32, i32, i32) {
    %c0_i32 = arith.constant 0 : i32
    %c0_i32_0 = arith.constant 0 : i32
    %c0_i32_1 = arith.constant 0 : i32
    return %arg1, %c0_i32, %c0_i32_0 : i32, i32, i32
  }
  func.func @transform_6(%arg0: i32, %arg1: i32) -> (i32, i32, i32, i32) {
    %c0_i32 = arith.constant 0 : i32
    %c0_i32_0 = arith.constant 0 : i32
    %c0_i32_1 = arith.constant 0 : i32
    %c0_i32_2 = arith.constant 0 : i32
    return %arg1, %c0_i32, %c0_i32_0, %c0_i32_1 : i32, i32, i32, i32
  }
  func.func @transform_7(%arg0: i32, %arg1: i32) -> (i32, i32, i32) {
    %c0_i32 = arith.constant 0 : i32
    %c0_i32_0 = arith.constant 0 : i32
    %c0_i32_1 = arith.constant 0 : i32
    return %arg1, %c0_i32, %c0_i32_0 : i32, i32, i32
  }
  func.func @transform_8(%arg0: i32, %arg1: i32) -> (i32, i32, i32) {
    %c0_i32 = arith.constant 0 : i32
    %c0_i32_0 = arith.constant 0 : i32
    %c0_i32_1 = arith.constant 0 : i32
    return %arg1, %c0_i32, %c0_i32_0 : i32, i32, i32
  }
  func.func @transform_9(%arg0: i32, %arg1: i32) -> (i32, i32, i32) {
    %c0_i32 = arith.constant 0 : i32
    %c0_i32_0 = arith.constant 0 : i32
    %c0_i32_1 = arith.constant 0 : i32
    return %arg1, %c0_i32, %c0_i32_0 : i32, i32, i32
  }
  func.func @transform_10(%arg0: i32, %arg1: i32) -> (i32, i32, i32) {
    %c0_i32 = arith.constant 0 : i32
    %c0_i32_0 = arith.constant 0 : i32
    %c0_i32_1 = arith.constant 0 : i32
    return %arg1, %c0_i32, %c0_i32_0 : i32, i32, i32
  }
  func.func @transform_11(%arg0: i32, %arg1: i32) -> (i32, i32, i32) {
    %c0_i32 = arith.constant 0 : i32
    %c0_i32_0 = arith.constant 0 : i32
    %c0_i32_1 = arith.constant 0 : i32
    return %arg1, %c0_i32, %c0_i32_0 : i32, i32, i32
  }
  func.func @transform_12(%arg0: i32, %arg1: i32) -> (i32, i32, i32) {
    %c0_i32 = arith.constant 0 : i32
    %c0_i32_0 = arith.constant 0 : i32
    %c0_i32_1 = arith.constant 0 : i32
    return %arg1, %c0_i32, %c0_i32_0 : i32, i32, i32
  }
  func.func @transform_13(%arg0: i32, %arg1: i32) -> (i32, i32, i32) {
    %c0_i32 = arith.constant 0 : i32
    %c0_i32_0 = arith.constant 0 : i32
    %c0_i32_1 = arith.constant 0 : i32
    return %arg0, %c0_i32, %c0_i32_0 : i32, i32, i32
  }
}

</mosaic_0001>

<llo_original>
// kernel: transformer_decoder.1
$region0: #{transformer_decoder.1}
  #allocation0 [shape = 'u32[]', space=smem, size = 0x4, offset = 0x4, fixed_abs, tag = 'smem constant byte address 0x4 - core index']
  #allocation1 [shape = 'u32[144,128]{1,0:T(1,128)}', space=vmem, size = 0x12000, scoped, tag = 'internal scratch']
  %s0 = inlined_call_operand.vmem [shape: f32[2,8,32], index: 0, kind: input, shape index: {}]
  %s1 = inlined_call_operand.vmem [shape: f32[2,8,32], index: 1, kind: input, shape index: {}]
  %s2 = inlined_call_operand.vmem [shape: f32[8,8], index: 2, kind: input, shape index: {}]
  %s3 = inlined_call_operand.vmem [shape: f32[8,8], index: 3, kind: input, shape index: {}]
  %s4 = inlined_call_operand.vmem [shape: bf16[2,32,96], index: 4, kind: input, shape index: {}]
  %s5 = inlined_call_operand.vmem [shape: f32[2,1,96], index: 5, kind: input, shape index: {}]
  %s6 = inlined_call_operand.vmem [shape: bf16[2,3,32,32], index: 6, kind: input, shape index: {}]
  %s7 = inlined_call_operand.vmem [shape: bf16[2,32,64], index: 7, kind: input, shape index: {}]
  %s8 = inlined_call_operand.vmem [shape: f32[2,1,64], index: 8, kind: input, shape index: {}]
  %s9 = inlined_call_operand.vmem [shape: bf16[2,32,64], index: 9, kind: input, shape index: {}]
  %s10 = inlined_call_operand.vmem [shape: f32[2,1,64], index: 10, kind: input, shape index: {}]
  %s11 = inlined_call_operand.vmem [shape: bf16[2,64,32], index: 11, kind: input, shape index: {}]
  %s12 = inlined_call_operand.vmem [shape: f32[2,8,32], index: 12, kind: input, shape index: {}]
  %s13 = inlined_call_operand.hbm [shape: f32[2,8,32], index: 13, kind: output, shape index: {}]
  %s14 = sld [smem:[#allocation0]]
  $region89: #{transformer_decoder.1} parent=0
    _
  %s16 = ssub.s32 1, %s14
  %s17 = scalar_select 0, %s16, %s14
  $region1: #{transformer_decoder.1} parent=0
    #allocation2 [shape = 'u8[8192]{0}', space=vmem, size = 0x2000, scoped, tag = 'output window, operand 0']
    #allocation3 [shape = 's32[2]{0}', space=sflag, size = 0x8, scoped, tag = 'scoped memory for transformer_decoder.1']
    %18 = vsyncpa [#allocation3], 0
    %s19 = scalar_lea.sflag [#allocation3], 1
    %20 = vsyncpa %s19, 0
    loop: start=0, step=1, limit=6
    $region2: #{transformer_decoder.1} parent=1 // loop_pre_header
      _
    $region3: #{transformer_decoder.1} parent=1 // loop_header
      %s22 = sphi 0, %s26
      %p23 = scmp.ge.s32.totalorder %s22, 6
      %s29 = sphi 0, %s41
      %s30 = sphi 0, %s37
      %s31 = sphi 0, %s29
      %s32 = sphi 0, %s30
      %s33 = sphi 0, %s31
      %s34 = sphi 0, %s32
      %s44 = sphi 0, %s46
      %s47 = sphi 0, %s44
      %s48 = sphi 0, %s47
      %s64 = sphi 0, %s48
      %s70 = sphi 0, %s72
      %s73 = sphi 0, %s70
      %s74 = sphi 0, %s73
      %s90 = sphi 0, %s74
      %s94 = sphi 0, %s94
      %s96 = sphi 0, %s94
      %s97 = sphi 0, %s96
      %s111 = sphi 0, %s97
      %s115 = sphi 0, %s115
      %s117 = sphi 0, %s115
      %s118 = sphi 0, %s117
      %s132 = sphi 0, %s118
      %s138 = sphi 0, %s140
      %s141 = sphi 0, %s138
      %s142 = sphi 0, %s141
      %s158 = sphi 0, %s142
      %s164 = sphi 0, %s166
      %s167 = sphi 0, %s164
      %s168 = sphi 0, %s167
      %s184 = sphi 0, %s168
      %s190 = sphi 0, %s192
      %s193 = sphi 0, %s190
      %s194 = sphi 0, %s193
      %s210 = sphi 0, %s194
      %s216 = sphi 0, %s218
      %s219 = sphi 0, %s216
      %s220 = sphi 0, %s219
      %s236 = sphi 0, %s220
      %s242 = sphi 0, %s244
      %s245 = sphi 0, %s242
      %s246 = sphi 0, %s245
      %s262 = sphi 0, %s246
      %s268 = sphi 0, %s270
      %s271 = sphi 0, %s268
      %s272 = sphi 0, %s271
      %s288 = sphi 0, %s272
      %s294 = sphi 0, %s296
      %s297 = sphi 0, %s294
      %s298 = sphi 0, %s297
      %s314 = sphi 0, %s298
      %s320 = sphi 0, %s322
      %s323 = sphi 0, %s320
      %s324 = sphi 0, %s323
      %s340 = sphi 0, %s324
      %s346 = sphi 0, %s348
      %s349 = sphi 0, %s346
      %s350 = sphi 0, %s349
      %s366 = sphi 0, %s350
      %s372 = sphi 0, %s374
      %s375 = sphi 0, %s372
      %s376 = sphi 0, %s375
      %s392 = sphi 0, %s376
    $region4: #{transformer_decoder.1} parent=1 // loop_header_branch
      %25 = sbr.rel (%p23) target = $region8
    $region5: #{transformer_decoder.1} parent=1 // loop_body
      %s27 = ssub.s32 %s22, 1
      %s28 = ssub.s32 %s22, 2
      %s35 = sadd.s32 1, %s30
      %p36 = scmp.ge.s32.totalorder %s35, 2
      %s37 = scalar_select %p36, 0, %s35
      %s38 = sadd.s32 1, %s29
      %s39 = scalar_select %p36, %s38, %s29
      %p40 = scmp.ge.s32.totalorder %s39, 2
      %s41 = scalar_select %p40, 0, %s39
      %s42 = ssub.s32 %s29, %s41
      %p43 = scmp.eq.s32.totalorder %s42, 0
      %s45 = sadd.s32 %s44, 1
      %s46 = scalar_select %p43, %s44, %s45
      %p49 = pneg %p43
      %p50 = scmp.eq.s32.totalorder %s22, 3
      %p51 = por %p49, %p50
      %p52 = scmp.ne.s32.totalorder %s44, %s47
      %p53 = scmp.eq.s32.totalorder %s22, 0
      %p54 = por %p52, %p53
      %p55 = scmp.ne.s32.totalorder %s44, %s47
      %p56 = scmp.eq.s32.totalorder %s27, 3
      %p57 = por %p55, %p56
      %p58 = scmp.ne.s32.totalorder %s47, %s48
      %p59 = scmp.eq.s32.totalorder %s27, 0
      %p60 = por %p58, %p59
      %p61 = scmp.ne.s32.totalorder %s47, %s48
      %p62 = scmp.eq.s32.totalorder %s28, 3
      %p63 = por %p61, %p62
      %p65 = scmp.ne.s32.totalorder %s48, %s64
      %p66 = scmp.eq.s32.totalorder %s28, 0
      %p67 = por %p65, %p66
      %s68 = ssub.s32 %s29, %s41
      %p69 = scmp.eq.s32.totalorder %s68, 0
      %s71 = sadd.s32 %s70, 1
      %s72 = scalar_select %p69, %s70, %s71
      %p75 = pneg %p69
      %p76 = scmp.eq.s32.totalorder %s22, 3
      %p77 = por %p75, %p76
      %p78 = scmp.ne.s32.totalorder %s70, %s73
      %p79 = scmp.eq.s32.totalorder %s22, 0
      %p80 = por %p78, %p79
      %p81 = scmp.ne.s32.totalorder %s70, %s73
      %p82 = scmp.eq.s32.totalorder %s27, 3
      %p83 = por %p81, %p82
      %p84 = scmp.ne.s32.totalorder %s73, %s74
      %p85 = scmp.eq.s32.totalorder %s27, 0
      %p86 = por %p84, %p85
      %p87 = scmp.ne.s32.totalorder %s73, %s74
      %p88 = scmp.eq.s32.totalorder %s28, 3
      %p89 = por %p87, %p88
      %p91 = scmp.ne.s32.totalorder %s74, %s90
      %p92 = scmp.eq.s32.totalorder %s28, 0
      %p93 = por %p91, %p92
      %s95 = sadd.s32 %s94, 1
      %p98 = scmp.eq.s32.totalorder %s22, 3
      %p99 = scmp.ne.s32.totalorder %s94, %s96
      %p100 = scmp.eq.s32.totalorder %s22, 0
      %p101 = por %p99, %p100
      %p102 = scmp.ne.s32.totalorder %s94, %s96
      %p103 = scmp.eq.s32.totalorder %s27, 3
      %p104 = por %p102, %p103
      %p105 = scmp.ne.s32.totalorder %s96, %s97
      %p106 = scmp.eq.s32.totalorder %s27, 0
      %p107 = por %p105, %p106
      %p108 = scmp.ne.s32.totalorder %s96, %s97
      %p109 = scmp.eq.s32.totalorder %s28, 3
      %p110 = por %p108, %p109
      %p112 = scmp.ne.s32.totalorder %s97, %s111
      %p113 = scmp.eq.s32.totalorder %s28, 0
      %p114 = por %p112, %p113
      %s116 = sadd.s32 %s115, 1
      %p119 = scmp.eq.s32.totalorder %s22, 3
      %p120 = scmp.ne.s32.totalorder %s115, %s117
      %p121 = scmp.eq.s32.totalorder %s22, 0
      %p122 = por %p120, %p121
      %p123 = scmp.ne.s32.totalorder %s115, %s117
      %p124 = scmp.eq.s32.totalorder %s27, 3
      %p125 = por %p123, %p124
      %p126 = scmp.ne.s32.totalorder %s117, %s118
      %p127 = scmp.eq.s32.totalorder %s27, 0
      %p128 = por %p126, %p127
      %p129 = scmp.ne.s32.totalorder %s117, %s118
      %p130 = scmp.eq.s32.totalorder %s28, 3
      %p131 = por %p129, %p130
      %p133 = scmp.ne.s32.totalorder %s118, %s132
      %p134 = scmp.eq.s32.totalorder %s28, 0
      %p135 = por %p133, %p134
      %s136 = ssub.s32 %s30, %s37
      %p137 = scmp.eq.s32.totalorder %s136, 0
      %s139 = sadd.s32 %s138, 1
      %s140 = scalar_select %p137, %s138, %s139
      %p143 = pneg %p137
      %p144 = scmp.eq.s32.totalorder %s22, 3
      %p145 = por %p143, %p144
      %p146 = scmp.ne.s32.totalorder %s138, %s141
      %p147 = scmp.eq.s32.totalorder %s22, 0
      %p148 = por %p146, %p147
      %p149 = scmp.ne.s32.totalorder %s138, %s141
      %p150 = scmp.eq.s32.totalorder %s27, 3
      %p151 = por %p149, %p150
      %p152 = scmp.ne.s32.totalorder %s141, %s142
      %p153 = scmp.eq.s32.totalorder %s27, 0
      %p154 = por %p152, %p153
      %p155 = scmp.ne.s32.totalorder %s141, %s142
      %p156 = scmp.eq.s32.totalorder %s28, 3
      %p157 = por %p155, %p156
      %p159 = scmp.ne.s32.totalorder %s142, %s158
      %p160 = scmp.eq.s32.totalorder %s28, 0
      %p161 = por %p159, %p160
      %s162 = ssub.s32 %s30, %s37
      %p163 = scmp.eq.s32.totalorder %s162, 0
      %s165 = sadd.s32 %s164, 1
      %s166 = scalar_select %p163, %s164, %s165
      %p169 = pneg %p163
      %p170 = scmp.eq.s32.totalorder %s22, 3
      %p171 = por %p169, %p170
      %p172 = scmp.ne.s32.totalorder %s164, %s167
      %p173 = scmp.eq.s32.totalorder %s22, 0
      %p174 = por %p172, %p173
      %p175 = scmp.ne.s32.totalorder %s164, %s167
      %p176 = scmp.eq.s32.totalorder %s27, 3
      %p177 = por %p175, %p176
      %p178 = scmp.ne.s32.totalorder %s167, %s168
      %p179 = scmp.eq.s32.totalorder %s27, 0
      %p180 = por %p178, %p179
      %p181 = scmp.ne.s32.totalorder %s167, %s168
      %p182 = scmp.eq.s32.totalorder %s28, 3
      %p183 = por %p181, %p182
      %p185 = scmp.ne.s32.totalorder %s168, %s184
      %p186 = scmp.eq.s32.totalorder %s28, 0
      %p187 = por %p185, %p186
      %s188 = ssub.s32 %s30, %s37
      %p189 = scmp.eq.s32.totalorder %s188, 0
      %s191 = sadd.s32 %s190, 1
      %s192 = scalar_select %p189, %s190, %s191
      %p195 = pneg %p189
      %p196 = scmp.eq.s32.totalorder %s22, 3
      %p197 = por %p195, %p196
      %p198 = scmp.ne.s32.totalorder %s190, %s193
      %p199 = scmp.eq.s32.totalorder %s22, 0
      %p200 = por %p198, %p199
      %p201 = scmp.ne.s32.totalorder %s190, %s193
      %p202 = scmp.eq.s32.totalorder %s27, 3
      %p203 = por %p201, %p202
      %p204 = scmp.ne.s32.totalorder %s193, %s194
      %p205 = scmp.eq.s32.totalorder %s27, 0
      %p206 = por %p204, %p205
      %p207 = scmp.ne.s32.totalorder %s193, %s194
      %p208 = scmp.eq.s32.totalorder %s28, 3
      %p209 = por %p207, %p208
      %p211 = scmp.ne.s32.totalorder %s194, %s210
      %p212 = scmp.eq.s32.totalorder %s28, 0
      %p213 = por %p211, %p212
      %s214 = ssub.s32 %s30, %s37
      %p215 = scmp.eq.s32.totalorder %s214, 0
      %s217 = sadd.s32 %s216, 1
      %s218 = scalar_select %p215, %s216, %s217
      %p221 = pneg %p215
      %p222 = scmp.eq.s32.totalorder %s22, 3
      %p223 = por %p221, %p222
      %p224 = scmp.ne.s32.totalorder %s216, %s219
      %p225 = scmp.eq.s32.totalorder %s22, 0
      %p226 = por %p224, %p225
      %p227 = scmp.ne.s32.totalorder %s216, %s219
      %p228 = scmp.eq.s32.totalorder %s27, 3
      %p229 = por %p227, %p228
      %p230 = scmp.ne.s32.totalorder %s219, %s220
      %p231 = scmp.eq.s32.totalorder %s27, 0
      %p232 = por %p230, %p231
      %p233 = scmp.ne.s32.totalorder %s219, %s220
      %p234 = scmp.eq.s32.totalorder %s28, 3
      %p235 = por %p233, %p234
      %p237 = scmp.ne.s32.totalorder %s220, %s236
      %p238 = scmp.eq.s32.totalorder %s28, 0
      %p239 = por %p237, %p238
      %s240 = ssub.s32 %s30, %s37
      %p241 = scmp.eq.s32.totalorder %s240, 0
      %s243 = sadd.s32 %s242, 1
      %s244 = scalar_select %p241, %s242, %s243
      %p247 = pneg %p241
      %p248 = scmp.eq.s32.totalorder %s22, 3
      %p249 = por %p247, %p248
      %p250 = scmp.ne.s32.totalorder %s242, %s245
      %p251 = scmp.eq.s32.totalorder %s22, 0
      %p252 = por %p250, %p251
      %p253 = scmp.ne.s32.totalorder %s242, %s245
      %p254 = scmp.eq.s32.totalorder %s27, 3
      %p255 = por %p253, %p254
      %p256 = scmp.ne.s32.totalorder %s245, %s246
      %p257 = scmp.eq.s32.totalorder %s27, 0
      %p258 = por %p256, %p257
      %p259 = scmp.ne.s32.totalorder %s245, %s246
      %p260 = scmp.eq.s32.totalorder %s28, 3
      %p261 = por %p259, %p260
      %p263 = scmp.ne.s32.totalorder %s246, %s262
      %p264 = scmp.eq.s32.totalorder %s28, 0
      %p265 = por %p263, %p264
      %s266 = ssub.s32 %s30, %s37
      %p267 = scmp.eq.s32.totalorder %s266, 0
      %s269 = sadd.s32 %s268, 1
      %s270 = scalar_select %p267, %s268, %s269
      %p273 = pneg %p267
      %p274 = scmp.eq.s32.totalorder %s22, 3
      %p275 = por %p273, %p274
      %p276 = scmp.ne.s32.totalorder %s268, %s271
      %p277 = scmp.eq.s32.totalorder %s22, 0
      %p278 = por %p276, %p277
      %p279 = scmp.ne.s32.totalorder %s268, %s271
      %p280 = scmp.eq.s32.totalorder %s27, 3
      %p281 = por %p279, %p280
      %p282 = scmp.ne.s32.totalorder %s271, %s272
      %p283 = scmp.eq.s32.totalorder %s27, 0
      %p284 = por %p282, %p283
      %p285 = scmp.ne.s32.totalorder %s271, %s272
      %p286 = scmp.eq.s32.totalorder %s28, 3
      %p287 = por %p285, %p286
      %p289 = scmp.ne.s32.totalorder %s272, %s288
      %p290 = scmp.eq.s32.totalorder %s28, 0
      %p291 = por %p289, %p290
      %s292 = ssub.s32 %s30, %s37
      %p293 = scmp.eq.s32.totalorder %s292, 0
      %s295 = sadd.s32 %s294, 1
      %s296 = scalar_select %p293, %s294, %s295
      %p299 = pneg %p293
      %p300 = scmp.eq.s32.totalorder %s22, 3
      %p301 = por %p299, %p300
      %p302 = scmp.ne.s32.totalorder %s294, %s297
      %p303 = scmp.eq.s32.totalorder %s22, 0
      %p304 = por %p302, %p303
      %p305 = scmp.ne.s32.totalorder %s294, %s297
      %p306 = scmp.eq.s32.totalorder %s27, 3
      %p307 = por %p305, %p306
      %p308 = scmp.ne.s32.totalorder %s297, %s298
      %p309 = scmp.eq.s32.totalorder %s27, 0
      %p310 = por %p308, %p309
      %p311 = scmp.ne.s32.totalorder %s297, %s298
      %p312 = scmp.eq.s32.totalorder %s28, 3
      %p313 = por %p311, %p312
      %p315 = scmp.ne.s32.totalorder %s298, %s314
      %p316 = scmp.eq.s32.totalorder %s28, 0
      %p317 = por %p315, %p316
      %s318 = ssub.s32 %s30, %s37
      %p319 = scmp.eq.s32.totalorder %s318, 0
      %s321 = sadd.s32 %s320, 1
      %s322 = scalar_select %p319, %s320, %s321
      %p325 = pneg %p319
      %p326 = scmp.eq.s32.totalorder %s22, 3
      %p327 = por %p325, %p326
      %p328 = scmp.ne.s32.totalorder %s320, %s323
      %p329 = scmp.eq.s32.totalorder %s22, 0
      %p330 = por %p328, %p329
      %p331 = scmp.ne.s32.totalorder %s320, %s323
      %p332 = scmp.eq.s32.totalorder %s27, 3
      %p333 = por %p331, %p332
      %p334 = scmp.ne.s32.totalorder %s323, %s324
      %p335 = scmp.eq.s32.totalorder %s27, 0
      %p336 = por %p334, %p335
      %p337 = scmp.ne.s32.totalorder %s323, %s324
      %p338 = scmp.eq.s32.totalorder %s28, 3
      %p339 = por %p337, %p338
      %p341 = scmp.ne.s32.totalorder %s324, %s340
      %p342 = scmp.eq.s32.totalorder %s28, 0
      %p343 = por %p341, %p342
      %s344 = ssub.s32 %s30, %s37
      %p345 = scmp.eq.s32.totalorder %s344, 0
      %s347 = sadd.s32 %s346, 1
      %s348 = scalar_select %p345, %s346, %s347
      %p351 = pneg %p345
      %p352 = scmp.eq.s32.totalorder %s22, 3
      %p353 = por %p351, %p352
      %p354 = scmp.ne.s32.totalorder %s346, %s349
      %p355 = scmp.eq.s32.totalorder %s22, 0
      %p356 = por %p354, %p355
      %p357 = scmp.ne.s32.totalorder %s346, %s349
      %p358 = scmp.eq.s32.totalorder %s27, 3
      %p359 = por %p357, %p358
      %p360 = scmp.ne.s32.totalorder %s349, %s350
      %p361 = scmp.eq.s32.totalorder %s27, 0
      %p362 = por %p360, %p361
      %p363 = scmp.ne.s32.totalorder %s349, %s350
      %p364 = scmp.eq.s32.totalorder %s28, 3
      %p365 = por %p363, %p364
      %p367 = scmp.ne.s32.totalorder %s350, %s366
      %p368 = scmp.eq.s32.totalorder %s28, 0
      %p369 = por %p367, %p368
      %s370 = ssub.s32 %s29, %s41
      %p371 = scmp.eq.s32.totalorder %s370, 0
      %s373 = sadd.s32 %s372, 1
      %s374 = scalar_select %p371, %s372, %s373
      %p377 = pneg %p371
      %p378 = scmp.eq.s32.totalorder %s22, 3
      %p379 = por %p377, %p378
      %p380 = scmp.ne.s32.totalorder %s372, %s375
      %p381 = scmp.eq.s32.totalorder %s22, 0
      %p382 = por %p380, %p381
      %p383 = scmp.ne.s32.totalorder %s372, %s375
      %p384 = scmp.eq.s32.totalorder %s27, 3
      %p385 = por %p383, %p384
      %p386 = scmp.ne.s32.totalorder %s375, %s376
      %p387 = scmp.eq.s32.totalorder %s27, 0
      %p388 = por %p386, %p387
      %p389 = scmp.ne.s32.totalorder %s375, %s376
      %p390 = scmp.eq.s32.totalorder %s28, 3
      %p391 = por %p389, %p390
      %p393 = scmp.ne.s32.totalorder %s376, %s392
      %p394 = scmp.eq.s32.totalorder %s28, 0
      %p395 = por %p393, %p394
      %p396 = scmp.le.s32.totalorder 1, %s22
      %p397 = scmp.lt.s32.totalorder %s22, 5
      %p398 = pnand %p396, %p397
      %p399 = pneg %p398
      // Predicated region
      $region9: #{transformer_decoder.1} parent=5 // pred_check
        _
      $region10: #{transformer_decoder.1} parent=5 // pred_check_branch
        %401 = sbr.rel (%p398) target = $region12
      $region11: #{transformer_decoder.1} parent=5 // pred_region
        %s402 = ssub.s32 %s22, 1
        // Predicated region
        $region13: #{transformer_decoder.1} parent=11 // pred_check
          %p403 = pneg %p107
        $region14: #{transformer_decoder.1} parent=11 // pred_check_branch
          %405 = sbr.rel (%p403) target = $region16
        $region15: #{transformer_decoder.1} parent=11 // pred_region
          _
        $region16: #{transformer_decoder.1} parent=11 // pred_fallthru
          _
        // Predicated region
        $region17: #{transformer_decoder.1} parent=11 // pred_check
          %p406 = pneg %p128
        $region18: #{transformer_decoder.1} parent=11 // pred_check_branch
          %408 = sbr.rel (%p406) target = $region20
        $region19: #{transformer_decoder.1} parent=11 // pred_region
          _
        $region20: #{transformer_decoder.1} parent=11 // pred_fallthru
          _
      $region12: #{transformer_decoder.1} parent=5 // pred_fallthru
        _
      %p409 = scmp.lt.s32.totalorder %s22, 4
      // Predicated region
      $region21: #{transformer_decoder.1} parent=5 // pred_check
        %p410 = pneg %p409
      $region22: #{transformer_decoder.1} parent=5 // pred_check_branch
        %412 = sbr.rel (%p410) target = $region24
      $region23: #{transformer_decoder.1} parent=5 // pred_region
        // Predicated region
        $region25: #{transformer_decoder.1} parent=23 // pred_check
          %p413 = pneg %p54
        $region26: #{transformer_decoder.1} parent=23 // pred_check_branch
          %415 = sbr.rel (%p413) target = $region28
        $region27: #{transformer_decoder.1} parent=23 // pred_region
          %p416 = scmp.lt.s32.totalorder %s29, 1
          %s417 = scalar_select %p416, %s29, 1
          %s418 = smul.addr %s417, 8
          %s419 = scalar_lea.vmem %s0, %s418
        $region28: #{transformer_decoder.1} parent=23 // pred_fallthru
          _
        // Predicated region
        $region29: #{transformer_decoder.1} parent=23 // pred_check
          %p420 = pneg %p80
        $region30: #{transformer_decoder.1} parent=23 // pred_check_branch
          %422 = sbr.rel (%p420) target = $region32
        $region31: #{transformer_decoder.1} parent=23 // pred_region
          %p423 = scmp.lt.s32.totalorder %s29, 1
          %s424 = scalar_select %p423, %s29, 1
          %s425 = smul.addr %s424, 8
          %s426 = scalar_lea.vmem %s1, %s425
        $region32: #{transformer_decoder.1} parent=23 // pred_fallthru
          _
        // Predicated region
        $region33: #{transformer_decoder.1} parent=23 // pred_check
          %p427 = pneg %p148
        $region34: #{transformer_decoder.1} parent=23 // pred_check_branch
          %429 = sbr.rel (%p427) target = $region36
        $region35: #{transformer_decoder.1} parent=23 // pred_region
          %p430 = scmp.lt.s32.totalorder %s30, 1
          %s431 = scalar_select %p430, %s30, 1
          %s432 = smul.addr %s431, 4
          %s433 = smul.addr %s432, 4
          %s434 = scalar_lea.vmem %s4, %s433
        $region36: #{transformer_decoder.1} parent=23 // pred_fallthru
          _
        // Predicated region
        $region37: #{transformer_decoder.1} parent=23 // pred_check
          %p435 = pneg %p174
        $region38: #{transformer_decoder.1} parent=23 // pred_check_branch
          %437 = sbr.rel (%p435) target = $region40
        $region39: #{transformer_decoder.1} parent=23 // pred_region
          %p438 = scmp.lt.s32.totalorder %s30, 1
          %s439 = scalar_select %p438, %s30, 1
          %s440 = scalar_lea.vmem %s5, %s439
        $region40: #{transformer_decoder.1} parent=23 // pred_fallthru
          _
        // Predicated region
        $region41: #{transformer_decoder.1} parent=23 // pred_check
          %p441 = pneg %p200
        $region42: #{transformer_decoder.1} parent=23 // pred_check_branch
          %443 = sbr.rel (%p441) target = $region44
        $region43: #{transformer_decoder.1} parent=23 // pred_region
          %p444 = scmp.lt.s32.totalorder %s30, 1
          %s445 = scalar_select %p444, %s30, 1
          %s446 = smul.addr %s445, 12
          %s447 = smul.addr %s446, 4
          %s448 = scalar_lea.vmem %s6, %s447
        $region44: #{transformer_decoder.1} parent=23 // pred_fallthru
          _
        // Predicated region
        $region45: #{transformer_decoder.1} parent=23 // pred_check
          %p449 = pneg %p226
        $region46: #{transformer_decoder.1} parent=23 // pred_check_branch
          %451 = sbr.rel (%p449) target = $region48
        $region47: #{transformer_decoder.1} parent=23 // pred_region
          %p452 = scmp.lt.s32.totalorder %s30, 1
          %s453 = scalar_select %p452, %s30, 1
          %s454 = smul.addr %s453, 4
          %s455 = smul.addr %s454, 4
          %s456 = scalar_lea.vmem %s7, %s455
        $region48: #{transformer_decoder.1} parent=23 // pred_fallthru
          _
        // Predicated region
        $region49: #{transformer_decoder.1} parent=23 // pred_check
          %p457 = pneg %p252
        $region50: #{transformer_decoder.1} parent=23 // pred_check_branch
          %459 = sbr.rel (%p457) target = $region52
        $region51: #{transformer_decoder.1} parent=23 // pred_region
          %p460 = scmp.lt.s32.totalorder %s30, 1
          %s461 = scalar_select %p460, %s30, 1
          %s462 = scalar_lea.vmem %s8, %s461
        $region52: #{transformer_decoder.1} parent=23 // pred_fallthru
          _
        // Predicated region
        $region53: #{transformer_decoder.1} parent=23 // pred_check
          %p463 = pneg %p278
        $region54: #{transformer_decoder.1} parent=23 // pred_check_branch
          %465 = sbr.rel (%p463) target = $region56
        $region55: #{transformer_decoder.1} parent=23 // pred_region
          %p466 = scmp.lt.s32.totalorder %s30, 1
          %s467 = scalar_select %p466, %s30, 1
          %s468 = smul.addr %s467, 4
          %s469 = smul.addr %s468, 4
          %s470 = scalar_lea.vmem %s9, %s469
        $region56: #{transformer_decoder.1} parent=23 // pred_fallthru
          _
        // Predicated region
        $region57: #{transformer_decoder.1} parent=23 // pred_check
          %p471 = pneg %p304
        $region58: #{transformer_decoder.1} parent=23 // pred_check_branch
          %473 = sbr.rel (%p471) target = $region60
        $region59: #{transformer_decoder.1} parent=23 // pred_region
          %p474 = scmp.lt.s32.totalorder %s30, 1
          %s475 = scalar_select %p474, %s30, 1
          %s476 = scalar_lea.vmem %s10, %s475
        $region60: #{transformer_decoder.1} parent=23 // pred_fallthru
          _
        // Predicated region
        $region61: #{transformer_decoder.1} parent=23 // pred_check
          %p477 = pneg %p330
        $region62: #{transformer_decoder.1} parent=23 // pred_check_branch
          %479 = sbr.rel (%p477) target = $region64
        $region63: #{transformer_decoder.1} parent=23 // pred_region
          %p480 = scmp.lt.s32.totalorder %s30, 1
          %s481 = scalar_select %p480, %s30, 1
          %s482 = smul.addr %s481, 8
          %s483 = smul.addr %s482, 4
          %s484 = scalar_lea.vmem %s11, %s483
        $region64: #{transformer_decoder.1} parent=23 // pred_fallthru
          _
        // Predicated region
        $region65: #{transformer_decoder.1} parent=23 // pred_check
          %p485 = pneg %p356
        $region66: #{transformer_decoder.1} parent=23 // pred_check_branch
          %487 = sbr.rel (%p485) target = $region68
        $region67: #{transformer_decoder.1} parent=23 // pred_region
          %p488 = scmp.lt.s32.totalorder %s30, 1
          %s489 = scalar_select %p488, %s30, 1
          %s490 = smul.addr %s489, 8
          %s491 = scalar_lea.vmem %s12, %s490
        $region68: #{transformer_decoder.1} parent=23 // pred_fallthru
          _
      $region24: #{transformer_decoder.1} parent=5 // pred_fallthru
        _
      %p492 = scmp.le.s32.totalorder 1, %s22
      %p493 = scmp.lt.s32.totalorder %s22, 5
      %p494 = pnand %p492, %p493
      %p495 = pneg %p494
      // Predicated region
      $region69: #{transformer_decoder.1} parent=5 // pred_check
        _
      $region70: #{transformer_decoder.1} parent=5 // pred_check_branch
        %497 = sbr.rel (%p494) target = $region72
      $region71: #{transformer_decoder.1} parent=5 // pred_region
        %s498 = ssub.s32 %s22, 1
        %p499 = scmp.lt.s32.totalorder %s31, 1
        %s500 = scalar_select %p499, %s31, 1
        %s501 = smul.addr %s500, 8
        %s502 = scalar_lea.vmem %s0, %s501
        %p503 = pneg %p60
        %p504 = pneg %p57
        %p505 = scmp.lt.s32.totalorder %s31, 1
        %s506 = scalar_select %p505, %s31, 1
        %s507 = smul.addr %s506, 8
        %s508 = scalar_lea.vmem %s1, %s507
        %p509 = pneg %p86
        %p510 = pneg %p83
        %p511 = pneg %p107
        %p512 = pneg %p104
        %p513 = pneg %p128
        %p514 = pneg %p125
        %p515 = scmp.lt.s32.totalorder %s32, 1
        %s516 = scalar_select %p515, %s32, 1
        %s517 = smul.addr %s516, 4
        %s518 = smul.addr %s517, 4
        %s519 = scalar_lea.vmem %s4, %s518
        %p520 = pneg %p154
        %p521 = pneg %p151
        %p522 = scmp.lt.s32.totalorder %s32, 1
        %s523 = scalar_select %p522, %s32, 1
        %s524 = scalar_lea.vmem %s5, %s523
        %p525 = pneg %p180
        %p526 = pneg %p177
        %p527 = scmp.lt.s32.totalorder %s32, 1
        %s528 = scalar_select %p527, %s32, 1
        %s529 = smul.addr %s528, 12
        %s530 = smul.addr %s529, 4
        %s531 = scalar_lea.vmem %s6, %s530
        %p532 = pneg %p206
        %p533 = pneg %p203
        %p534 = scmp.lt.s32.totalorder %s32, 1
        %s535 = scalar_select %p534, %s32, 1
        %s536 = smul.addr %s535, 4
        %s537 = smul.addr %s536, 4
        %s538 = scalar_lea.vmem %s7, %s537
        %p539 = pneg %p232
        %p540 = pneg %p229
        %p541 = scmp.lt.s32.totalorder %s32, 1
        %s542 = scalar_select %p541, %s32, 1
        %s543 = scalar_lea.vmem %s8, %s542
        %p544 = pneg %p258
        %p545 = pneg %p255
        %p546 = scmp.lt.s32.totalorder %s32, 1
        %s547 = scalar_select %p546, %s32, 1
        %s548 = smul.addr %s547, 4
        %s549 = smul.addr %s548, 4
        %s550 = scalar_lea.vmem %s9, %s549
        %p551 = pneg %p284
        %p552 = pneg %p281
        %p553 = scmp.lt.s32.totalorder %s32, 1
        %s554 = scalar_select %p553, %s32, 1
        %s555 = scalar_lea.vmem %s10, %s554
        %p556 = pneg %p310
        %p557 = pneg %p307
        %p558 = scmp.lt.s32.totalorder %s32, 1
        %s559 = scalar_select %p558, %s32, 1
        %s560 = smul.addr %s559, 8
        %s561 = smul.addr %s560, 4
        %s562 = scalar_lea.vmem %s11, %s561
        %p563 = pneg %p336
        %p564 = pneg %p333
        %p565 = scmp.lt.s32.totalorder %s32, 1
        %s566 = scalar_select %p565, %s32, 1
        %s567 = smul.addr %s566, 8
        %s568 = scalar_lea.vmem %s12, %s567
        %p569 = pneg %p362
        %p570 = pneg %p359
        %p571 = pneg %p388
        %p572 = pneg %p385
        %s573 = sand.u32 %s375, 1
        %s574 = scalar_lea.sflag [#allocation3], %s573
        %s575 = sand.u32 %s375, 1
        %s576 = smul.addr %s575, 8
        %s577 = scalar_lea.vmem [#allocation2], %s576
        %p578 = scmp.lt.s32.totalorder %s31, 1
        %s579 = scalar_select %p578, %s31, 1
        %s580 = smul.addr %s579, 8
        %s581 = scalar_lea.vmem %s0, %s580
        %p582 = scmp.lt.s32.totalorder %s31, 1
        %s583 = scalar_select %p582, %s31, 1
        %s584 = smul.addr %s583, 8
        %s585 = scalar_lea.vmem %s1, %s584
        %p586 = scmp.lt.s32.totalorder %s32, 1
        %s587 = scalar_select %p586, %s32, 1
        %s588 = smul.addr %s587, 4
        %s589 = smul.addr %s588, 4
        %s590 = scalar_lea.vmem %s4, %s589
        %p591 = scmp.lt.s32.totalorder %s32, 1
        %s592 = scalar_select %p591, %s32, 1
        %s593 = scalar_lea.vmem %s5, %s592
        %p594 = scmp.lt.s32.totalorder %s32, 1
        %s595 = scalar_select %p594, %s32, 1
        %s596 = smul.addr %s595, 12
        %s597 = smul.addr %s596, 4
        %s598 = scalar_lea.vmem %s6, %s597
        %p599 = scmp.lt.s32.totalorder %s32, 1
        %s600 = scalar_select %p599, %s32, 1
        %s601 = smul.addr %s600, 4
        %s602 = smul.addr %s601, 4
        %s603 = scalar_lea.vmem %s7, %s602
        %p604 = scmp.lt.s32.totalorder %s32, 1
        %s605 = scalar_select %p604, %s32, 1
        %s606 = scalar_lea.vmem %s8, %s605
        %p607 = scmp.lt.s32.totalorder %s32, 1
        %s608 = scalar_select %p607, %s32, 1
        %s609 = smul.addr %s608, 4
        %s610 = smul.addr %s609, 4
        %s611 = scalar_lea.vmem %s9, %s610
        %p612 = scmp.lt.s32.totalorder %s32, 1
        %s613 = scalar_select %p612, %s32, 1
        %s614 = scalar_lea.vmem %s10, %s613
        %p615 = scmp.lt.s32.totalorder %s32, 1
        %s616 = scalar_select %p615, %s32, 1
        %s617 = smul.addr %s616, 8
        %s618 = smul.addr %s617, 4
        %s619 = scalar_lea.vmem %s11, %s618
        %p620 = scmp.lt.s32.totalorder %s32, 1
        %s621 = scalar_select %p620, %s32, 1
        %s622 = smul.addr %s621, 8
        %s623 = scalar_lea.vmem %s12, %s622
        %p625 = scmp.eq.s32.totalorder %s32, 0
        // Predicated region
        $region73: #{transformer_decoder.1} parent=71 // pred_check
          %p626 = pneg %p625
        $region74: #{transformer_decoder.1} parent=71 // pred_check_branch
          %628 = sbr.rel (%p626) target = $region76
        $region75: #{transformer_decoder.1} parent=71 // pred_region
          %v629 = vld [vmem:[%s581] sm:$0xff]
          %vm630 = vcmask 261120
          %631 = vst.msk [vmem:[%s577] sm:$0xff] %vm630, %v629
        $region76: #{transformer_decoder.1} parent=71 // pred_fallthru
          _
        %v632 = vld [vmem:[%s577] sm:$0xff]
        %v633 = vld [vmem:[%s585] sm:$0xff]
        %v634 = vld [vmem:[%s2] sm:$0xff]
        %v635 = vld [vmem:[%s3] sm:$0xff]
        %v636 = vld [vmem:[%s590] sm:$0xf]
        %v637 = vld [vmem:[%s590 + $0x4] sm:$0xf]
        %v638 = vld [vmem:[%s590 + $0x8] sm:$0xf]
        %v639 = vld [vmem:[%s590 + $0xc] sm:$0xf]
        %v640 = vld [vmem:[%s593] sm:$0x1]
        %v641 = vld [vmem:[%s598] sm:$0xf]
        %v642 = vld [vmem:[%s598 + $0x4] sm:$0xf]
        %v643 = vld [vmem:[%s598 + $0x8] sm:$0xf]
        %v644 = vld [vmem:[%s598 + $0xc] sm:$0xf]
        %s645 = scalar_lea.vmem %s598, 16
        %v646 = vld [vmem:[%s645] sm:$0xf]
        %v647 = vld [vmem:[%s645 + $0x4] sm:$0xf]
        %v648 = vld [vmem:[%s645 + $0x8] sm:$0xf]
        %v649 = vld [vmem:[%s645 + $0xc] sm:$0xf]
        %s650 = scalar_lea.vmem %s598, 32
        %v651 = vld [vmem:[%s650] sm:$0xf]
        %v652 = vld [vmem:[%s650 + $0x4] sm:$0xf]
        %v653 = vld [vmem:[%s650 + $0x8] sm:$0xf]
        %v654 = vld [vmem:[%s650 + $0xc] sm:$0xf]
        %v655 = vld [vmem:[%s603] sm:$0xf]
        %v656 = vld [vmem:[%s603 + $0x4] sm:$0xf]
        %v657 = vld [vmem:[%s603 + $0x8] sm:$0xf]
        %v658 = vld [vmem:[%s603 + $0xc] sm:$0xf]
        %v659 = vld [vmem:[%s606] sm:$0x1]
        %v660 = vld [vmem:[%s611] sm:$0xf]
        %v661 = vld [vmem:[%s611 + $0x4] sm:$0xf]
        %v662 = vld [vmem:[%s611 + $0x8] sm:$0xf]
        %v663 = vld [vmem:[%s611 + $0xc] sm:$0xf]
        %v664 = vld [vmem:[%s614] sm:$0x1]
        %v665 = vld [vmem:[%s619] sm:$0xf]
        %v666 = vld [vmem:[%s619 + $0x4] sm:$0xf]
        %v667 = vld [vmem:[%s619 + $0x8] sm:$0xf]
        %v668 = vld [vmem:[%s619 + $0xc] sm:$0xf]
        %v669 = vld [vmem:[%s619 + $0x10] sm:$0xf]
        %v670 = vld [vmem:[%s619 + $0x14] sm:$0xf]
        %v671 = vld [vmem:[%s619 + $0x18] sm:$0xf]
        %v672 = vld [vmem:[%s619 + $0x1c] sm:$0xf]
        %v673 = vld [vmem:[%s623] sm:$0xff]
        %v674 = vpack.c.bf16 %v632, %v632
        %v676 = vlaneseq
        %v677 = vshrl.u32 %v676, 7
        %v678 = vsub.s32 0, %v677
        %v679 = vrot.slane %v640, %v678
        %v685 = vunpack.c.l.b16 %v636
        %v686 = vunpack.c.l.b16 %v637
        %v687 = vunpack.c.l.b16 %v638
        %v688 = vunpack.c.l.b16 %v639
        %v689 = vpack.c.b16 %v686, %v685
        %v690 = vpack.c.b16 %v688, %v687
        %vm693 = vcmask 261120
        %v695 = vsel %vm693, %v674, 0
        %697 = vmatprep.subr.bf16.mxu0 0
        %698 = vmatpush1.bf16.msra.mxu0 %v689
        %699 = vmatprep.subr.bf16.mxu0 0
        %700 = vmatpush1.bf16.msra.mxu0 %v690
        %701 = vmatprep.subr.bf16.mxu0 0
        %702 = vmatpush1.bf16.msra.mxu0 0
        %703 = vmatprep.subr.bf16.mxu0 0
        %704 = vmatpush1.bf16.msra.mxu0 0
        %705 = vmatprep.subr.bf16.mxu0 0
        %706 = vmatpush1.bf16.msra.mxu0 0
        %707 = vmatprep.subr.bf16.mxu0 0
        %708 = vmatpush1.bf16.msra.mxu0 0
        %709 = vmatprep.subr.bf16.mxu0 0
        %710 = vmatpush1.bf16.msra.mxu0 0
        %711 = vmatprep.subr.bf16.mxu0 0
        %712 = vmatpush1.bf16.msra.mxu0 0
        %713 = vmatprep.subr.bf16.mxu0 0
        %714 = vmatpush1.bf16.msra.mxu0 0
        %715 = vmatprep.subr.bf16.mxu0 0
        %716 = vmatpush1.bf16.msra.mxu0 0
        %717 = vmatprep.subr.bf16.mxu0 0
        %718 = vmatpush1.bf16.msra.mxu0 0
        %719 = vmatprep.subr.bf16.mxu0 0
        %720 = vmatpush1.bf16.msra.mxu0 0
        %721 = vmatprep.subr.bf16.mxu0 0
        %722 = vmatpush1.bf16.msra.mxu0 0
        %723 = vmatprep.subr.bf16.mxu0 0
        %724 = vmatpush1.bf16.msra.mxu0 0
        %725 = vmatprep.subr.bf16.mxu0 0
        %726 = vmatpush1.bf16.msra.mxu0 0
        %727 = vmatprep.subr.bf16.mxu0 0
        %728 = vmatpush1.bf16.msra.mxu0 0
        %729 = vmatprep.mubr.bf16.mxu0 0
        %730 = vmatmul.mubr.bf16.gmra.mrb[0].mxu0 %v695
        %v731 = vpop.f32.mrb[0].mxu0
        %v732 = vadd.f32 %v679, %v731
        %v733 = vpop.f32.mrb[0].mxu0
        %v734 = vpop.f32.mrb[0].mxu0
        %v735 = vpop.f32.mrb[0].mxu0
        %736 = vdwg.mxu0
        %738 = vrot.lane.b32.xlu0 %v732, 120
        %v739 = vpop.permute.xlu0 %738
        %741 = vrot.lane.b32.xlu0 %v732, 112
        %v742 = vpop.permute.xlu0 %741
        %744 = vrot.lane.b32.xlu0 %v732, 104
        %v745 = vpop.permute.xlu0 %744
        %v747 = vcombine.low %v732, %v742
        %v748 = vcombine.high %v732, %v742
        %v750 = vunpack.c.l.s4 1983009808
        %v751 = vunpack.c.0.s8 %v750
        %v752 = vlaneseq
        %v753 = vshrl.u32 %v752, 7
        %v754 = vsub.s32 %v751, %v753
        %v755 = vrot.slane %v747, %v754
        %v757 = vunpack.c.l.s4 1983009808
        %v758 = vunpack.c.0.s8 %v757
        %v759 = vlaneseq
        %v760 = vshrl.u32 %v759, 7
        %v761 = vsub.s32 %v758, %v760
        %v762 = vrot.slane %v748, %v761
        %v763 = vcombine.low %v739, %v745
        %v764 = vcombine.high %v739, %v745
        %v766 = vunpack.c.l.s4 1983009808
        %v767 = vunpack.c.0.s8 %v766
        %v768 = vlaneseq
        %v769 = vshrl.u32 %v768, 7
        %v770 = vsub.s32 %v767, %v769
        %v771 = vrot.slane %v763, %v770
        %v773 = vunpack.c.l.s4 1983009808
        %v774 = vunpack.c.0.s8 %v773
        %v775 = vlaneseq
        %v776 = vshrl.u32 %v775, 7
        %v777 = vsub.s32 %v774, %v776
        %v778 = vrot.slane %v764, %v777
        %v779 = vcombine.low %v755, %v771
        %v780 = vcombine.high %v755, %v771
        %v782 = vunpack.c.l.s4 1934713408
        %v783 = vunpack.c.0.s8 %v782
        %v784 = vlaneseq
        %v785 = vshrl.u32 %v784, 7
        %v786 = vsub.s32 %v783, %v785
        %v787 = vrot.slane %v779, %v786
        %v789 = vunpack.c.l.s4 1934713408
        %v790 = vunpack.c.0.s8 %v789
        %v791 = vlaneseq
        %v792 = vshrl.u32 %v791, 7
        %v793 = vsub.s32 %v790, %v792
        %v794 = vrot.slane %v780, %v793
        %v795 = vcombine.low %v762, %v778
        %v796 = vcombine.high %v762, %v778
        %v798 = vunpack.c.l.s4 1934713408
        %v799 = vunpack.c.0.s8 %v798
        %v800 = vlaneseq
        %v801 = vshrl.u32 %v800, 7
        %v802 = vsub.s32 %v799, %v801
        %v803 = vrot.slane %v795, %v802
        %v805 = vunpack.c.l.s4 1934713408
        %v806 = vunpack.c.0.s8 %v805
        %v807 = vlaneseq
        %v808 = vshrl.u32 %v807, 7
        %v809 = vsub.s32 %v806, %v808
        %v810 = vrot.slane %v796, %v809
        %v811 = vcombine.high %v787, 0.0
        %v812 = vcombine.high %v794, 0.0
        %v813 = vcombine.high %v803, 0.0
        %v814 = vcombine.high %v810, 0.0
        %v815 = vcombine.low %v787, %v794
        %v817 = vunpack.c.l.s4 1983009808
        %v818 = vunpack.c.0.s8 %v817
        %v819 = vlaneseq
        %v820 = vshrl.u32 %v819, 7
        %v821 = vsub.s32 %v818, %v820
        %v822 = vrot.slane %v815, %v821
        %v823 = vcombine.low %v811, %v812
        %v825 = vunpack.c.l.s4 1983009808
        %v826 = vunpack.c.0.s8 %v825
        %v827 = vlaneseq
        %v828 = vshrl.u32 %v827, 7
        %v829 = vsub.s32 %v826, %v828
        %v830 = vrot.slane %v823, %v829
        %v831 = vcombine.low %v803, %v810
        %v833 = vunpack.c.l.s4 1983009808
        %v834 = vunpack.c.0.s8 %v833
        %v835 = vlaneseq
        %v836 = vshrl.u32 %v835, 7
        %v837 = vsub.s32 %v834, %v836
        %v838 = vrot.slane %v831, %v837
        %v839 = vcombine.low %v813, %v814
        %v841 = vunpack.c.l.s4 1983009808
        %v842 = vunpack.c.0.s8 %v841
        %v843 = vlaneseq
        %v844 = vshrl.u32 %v843, 7
        %v845 = vsub.s32 %v842, %v844
        %v846 = vrot.slane %v839, %v845
        %v847 = vcombine.low %v822, %v830
        %v848 = vcombine.high %v822, %v830
        %v850 = vunpack.c.l.s4 1934713408
        %v851 = vunpack.c.0.s8 %v850
        %v852 = vlaneseq
        %v853 = vshrl.u32 %v852, 7
        %v854 = vsub.s32 %v851, %v853
        %v855 = vrot.slane %v847, %v854
        %v857 = vunpack.c.l.s4 1934713408
        %v858 = vunpack.c.0.s8 %v857
        %v859 = vlaneseq
        %v860 = vshrl.u32 %v859, 7
        %v861 = vsub.s32 %v858, %v860
        %v862 = vrot.slane %v848, %v861
        %v863 = vcombine.low %v838, %v846
        %v864 = vcombine.high %v838, %v846
        %v866 = vunpack.c.l.s4 1934713408
        %v867 = vunpack.c.0.s8 %v866
        %v868 = vlaneseq
        %v869 = vshrl.u32 %v868, 7
        %v870 = vsub.s32 %v867, %v869
        %v871 = vrot.slane %v863, %v870
        %v873 = vunpack.c.l.s4 1934713408
        %v874 = vunpack.c.0.s8 %v873
        %v875 = vlaneseq
        %v876 = vshrl.u32 %v875, 7
        %v877 = vsub.s32 %v874, %v876
        %v878 = vrot.slane %v864, %v877
        %v879 = vcombine.low %v855, %v871
        %v880 = vcombine.high %v855, %v871
        %v881 = vcombine.low %v862, %v878
        %v882 = vcombine.high %v862, %v878
        %883 = vrot.lane.b32.xlu0 %v732, 96
        %v884 = vpop.permute.xlu0 %883
        %885 = vrot.lane.b32.xlu0 %v739, 96
        %v886 = vpop.permute.xlu0 %885
        %887 = vrot.lane.b32.xlu0 %v742, 96
        %v888 = vpop.permute.xlu0 %887
        %889 = vrot.lane.b32.xlu0 %v745, 96
        %v890 = vpop.permute.xlu0 %889
        %v895 = vcombine.low %v884, %v888
        %v896 = vcombine.high %v884, %v888
        %v898 = vunpack.c.l.s4 1983009808
        %v899 = vunpack.c.0.s8 %v898
        %v900 = vlaneseq
        %v901 = vshrl.u32 %v900, 7
        %v902 = vsub.s32 %v899, %v901
        %v903 = vrot.slane %v895, %v902
        %v905 = vunpack.c.l.s4 1983009808
        %v906 = vunpack.c.0.s8 %v905
        %v907 = vlaneseq
        %v908 = vshrl.u32 %v907, 7
        %v909 = vsub.s32 %v906, %v908
        %v910 = vrot.slane %v896, %v909
        %v911 = vcombine.low %v886, %v890
        %v912 = vcombine.high %v886, %v890
        %v914 = vunpack.c.l.s4 1983009808
        %v915 = vunpack.c.0.s8 %v914
        %v916 = vlaneseq
        %v917 = vshrl.u32 %v916, 7
        %v918 = vsub.s32 %v915, %v917
        %v919 = vrot.slane %v911, %v918
        %v921 = vunpack.c.l.s4 1983009808
        %v922 = vunpack.c.0.s8 %v921
        %v923 = vlaneseq
        %v924 = vshrl.u32 %v923, 7
        %v925 = vsub.s32 %v922, %v924
        %v926 = vrot.slane %v912, %v925
        %v927 = vcombine.low %v903, %v919
        %v928 = vcombine.high %v903, %v919
        %v930 = vunpack.c.l.s4 1934713408
        %v931 = vunpack.c.0.s8 %v930
        %v932 = vlaneseq
        %v933 = vshrl.u32 %v932, 7
        %v934 = vsub.s32 %v931, %v933
        %v935 = vrot.slane %v927, %v934
        %v937 = vunpack.c.l.s4 1934713408
        %v938 = vunpack.c.0.s8 %v937
        %v939 = vlaneseq
        %v940 = vshrl.u32 %v939, 7
        %v941 = vsub.s32 %v938, %v940
        %v942 = vrot.slane %v928, %v941
        %v943 = vcombine.low %v910, %v926
        %v944 = vcombine.high %v910, %v926
        %v946 = vunpack.c.l.s4 1934713408
        %v947 = vunpack.c.0.s8 %v946
        %v948 = vlaneseq
        %v949 = vshrl.u32 %v948, 7
        %v950 = vsub.s32 %v947, %v949
        %v951 = vrot.slane %v943, %v950
        %v953 = vunpack.c.l.s4 1934713408
        %v954 = vunpack.c.0.s8 %v953
        %v955 = vlaneseq
        %v956 = vshrl.u32 %v955, 7
        %v957 = vsub.s32 %v954, %v956
        %v958 = vrot.slane %v944, %v957
        %v959 = vcombine.high %v935, 0.0
        %v960 = vcombine.high %v942, 0.0
        %v961 = vcombine.high %v951, 0.0
        %v962 = vcombine.high %v958, 0.0
        %v963 = vcombine.low %v935, %v942
        %v965 = vunpack.c.l.s4 1983009808
        %v966 = vunpack.c.0.s8 %v965
        %v967 = vlaneseq
        %v968 = vshrl.u32 %v967, 7
        %v969 = vsub.s32 %v966, %v968
        %v970 = vrot.slane %v963, %v969
        %v971 = vcombine.low %v959, %v960
        %v973 = vunpack.c.l.s4 1983009808
        %v974 = vunpack.c.0.s8 %v973
        %v975 = vlaneseq
        %v976 = vshrl.u32 %v975, 7
        %v977 = vsub.s32 %v974, %v976
        %v978 = vrot.slane %v971, %v977
        %v979 = vcombine.low %v951, %v958
        %v981 = vunpack.c.l.s4 1983009808
        %v982 = vunpack.c.0.s8 %v981
        %v983 = vlaneseq
        %v984 = vshrl.u32 %v983, 7
        %v985 = vsub.s32 %v982, %v984
        %v986 = vrot.slane %v979, %v985
        %v987 = vcombine.low %v961, %v962
        %v989 = vunpack.c.l.s4 1983009808
        %v990 = vunpack.c.0.s8 %v989
        %v991 = vlaneseq
        %v992 = vshrl.u32 %v991, 7
        %v993 = vsub.s32 %v990, %v992
        %v994 = vrot.slane %v987, %v993
        %v995 = vcombine.low %v970, %v978
        %v996 = vcombine.high %v970, %v978
        %v998 = vunpack.c.l.s4 1934713408
        %v999 = vunpack.c.0.s8 %v998
        %v1000 = vlaneseq
        %v1001 = vshrl.u32 %v1000, 7
        %v1002 = vsub.s32 %v999, %v1001
        %v1003 = vrot.slane %v995, %v1002
        %v1005 = vunpack.c.l.s4 1934713408
        %v1006 = vunpack.c.0.s8 %v1005
        %v1007 = vlaneseq
        %v1008 = vshrl.u32 %v1007, 7
        %v1009 = vsub.s32 %v1006, %v1008
        %v1010 = vrot.slane %v996, %v1009
        %v1011 = vcombine.low %v986, %v994
        %v1012 = vcombine.high %v986, %v994
        %v1014 = vunpack.c.l.s4 1934713408
        %v1015 = vunpack.c.0.s8 %v1014
        %v1016 = vlaneseq
        %v1017 = vshrl.u32 %v1016, 7
        %v1018 = vsub.s32 %v1015, %v1017
        %v1019 = vrot.slane %v1011, %v1018
        %v1021 = vunpack.c.l.s4 1934713408
        %v1022 = vunpack.c.0.s8 %v1021
        %v1023 = vlaneseq
        %v1024 = vshrl.u32 %v1023, 7
        %v1025 = vsub.s32 %v1022, %v1024
        %v1026 = vrot.slane %v1012, %v1025
        %v1027 = vcombine.low %v1003, %v1019
        %v1028 = vcombine.high %v1003, %v1019
        %v1029 = vcombine.low %v1010, %v1026
        %v1030 = vcombine.high %v1010, %v1026
        %1031 = vrot.lane.b32.xlu0 %v732, 64
        %v1032 = vpop.permute.xlu0 %1031
        %1033 = vrot.lane.b32.xlu0 %v739, 64
        %v1034 = vpop.permute.xlu0 %1033
        %1035 = vrot.lane.b32.xlu0 %v742, 64
        %v1036 = vpop.permute.xlu0 %1035
        %1037 = vrot.lane.b32.xlu0 %v745, 64
        %v1038 = vpop.permute.xlu0 %1037
        %v1043 = vcombine.low %v1032, %v1036
        %v1044 = vcombine.high %v1032, %v1036
        %v1046 = vunpack.c.l.s4 1983009808
        %v1047 = vunpack.c.0.s8 %v1046
        %v1048 = vlaneseq
        %v1049 = vshrl.u32 %v1048, 7
        %v1050 = vsub.s32 %v1047, %v1049
        %v1051 = vrot.slane %v1043, %v1050
        %v1053 = vunpack.c.l.s4 1983009808
        %v1054 = vunpack.c.0.s8 %v1053
        %v1055 = vlaneseq
        %v1056 = vshrl.u32 %v1055, 7
        %v1057 = vsub.s32 %v1054, %v1056
        %v1058 = vrot.slane %v1044, %v1057
        %v1059 = vcombine.low %v1034, %v1038
        %v1060 = vcombine.high %v1034, %v1038
        %v1062 = vunpack.c.l.s4 1983009808
        %v1063 = vunpack.c.0.s8 %v1062
        %v1064 = vlaneseq
        %v1065 = vshrl.u32 %v1064, 7
        %v1066 = vsub.s32 %v1063, %v1065
        %v1067 = vrot.slane %v1059, %v1066
        %v1069 = vunpack.c.l.s4 1983009808
        %v1070 = vunpack.c.0.s8 %v1069
        %v1071 = vlaneseq
        %v1072 = vshrl.u32 %v1071, 7
        %v1073 = vsub.s32 %v1070, %v1072
        %v1074 = vrot.slane %v1060, %v1073
        %v1075 = vcombine.low %v1051, %v1067
        %v1076 = vcombine.high %v1051, %v1067
        %v1078 = vunpack.c.l.s4 1934713408
        %v1079 = vunpack.c.0.s8 %v1078
        %v1080 = vlaneseq
        %v1081 = vshrl.u32 %v1080, 7
        %v1082 = vsub.s32 %v1079, %v1081
        %v1083 = vrot.slane %v1075, %v1082
        %v1085 = vunpack.c.l.s4 1934713408
        %v1086 = vunpack.c.0.s8 %v1085
        %v1087 = vlaneseq
        %v1088 = vshrl.u32 %v1087, 7
        %v1089 = vsub.s32 %v1086, %v1088
        %v1090 = vrot.slane %v1076, %v1089
        %v1091 = vcombine.low %v1058, %v1074
        %v1092 = vcombine.high %v1058, %v1074
        %v1094 = vunpack.c.l.s4 1934713408
        %v1095 = vunpack.c.0.s8 %v1094
        %v1096 = vlaneseq
        %v1097 = vshrl.u32 %v1096, 7
        %v1098 = vsub.s32 %v1095, %v1097
        %v1099 = vrot.slane %v1091, %v1098
        %v1101 = vunpack.c.l.s4 1934713408
        %v1102 = vunpack.c.0.s8 %v1101
        %v1103 = vlaneseq
        %v1104 = vshrl.u32 %v1103, 7
        %v1105 = vsub.s32 %v1102, %v1104
        %v1106 = vrot.slane %v1092, %v1105
        %v1107 = vcombine.high %v1083, 0.0
        %v1108 = vcombine.high %v1090, 0.0
        %v1109 = vcombine.high %v1099, 0.0
        %v1110 = vcombine.high %v1106, 0.0
        %v1111 = vcombine.low %v1083, %v1090
        %v1113 = vunpack.c.l.s4 1983009808
        %v1114 = vunpack.c.0.s8 %v1113
        %v1115 = vlaneseq
        %v1116 = vshrl.u32 %v1115, 7
        %v1117 = vsub.s32 %v1114, %v1116
        %v1118 = vrot.slane %v1111, %v1117
        %v1119 = vcombine.low %v1107, %v1108
        %v1121 = vunpack.c.l.s4 1983009808
        %v1122 = vunpack.c.0.s8 %v1121
        %v1123 = vlaneseq
        %v1124 = vshrl.u32 %v1123, 7
        %v1125 = vsub.s32 %v1122, %v1124
        %v1126 = vrot.slane %v1119, %v1125
        %v1127 = vcombine.low %v1099, %v1106
        %v1129 = vunpack.c.l.s4 1983009808
        %v1130 = vunpack.c.0.s8 %v1129
        %v1131 = vlaneseq
        %v1132 = vshrl.u32 %v1131, 7
        %v1133 = vsub.s32 %v1130, %v1132
        %v1134 = vrot.slane %v1127, %v1133
        %v1135 = vcombine.low %v1109, %v1110
        %v1137 = vunpack.c.l.s4 1983009808
        %v1138 = vunpack.c.0.s8 %v1137
        %v1139 = vlaneseq
        %v1140 = vshrl.u32 %v1139, 7
        %v1141 = vsub.s32 %v1138, %v1140
        %v1142 = vrot.slane %v1135, %v1141
        %v1143 = vcombine.low %v1118, %v1126
        %v1144 = vcombine.high %v1118, %v1126
        %v1146 = vunpack.c.l.s4 1934713408
        %v1147 = vunpack.c.0.s8 %v1146
        %v1148 = vlaneseq
        %v1149 = vshrl.u32 %v1148, 7
        %v1150 = vsub.s32 %v1147, %v1149
        %v1151 = vrot.slane %v1143, %v1150
        %v1153 = vunpack.c.l.s4 1934713408
        %v1154 = vunpack.c.0.s8 %v1153
        %v1155 = vlaneseq
        %v1156 = vshrl.u32 %v1155, 7
        %v1157 = vsub.s32 %v1154, %v1156
        %v1158 = vrot.slane %v1144, %v1157
        %v1159 = vcombine.low %v1134, %v1142
        %v1160 = vcombine.high %v1134, %v1142
        %v1162 = vunpack.c.l.s4 1934713408
        %v1163 = vunpack.c.0.s8 %v1162
        %v1164 = vlaneseq
        %v1165 = vshrl.u32 %v1164, 7
        %v1166 = vsub.s32 %v1163, %v1165
        %v1167 = vrot.slane %v1159, %v1166
        %v1169 = vunpack.c.l.s4 1934713408
        %v1170 = vunpack.c.0.s8 %v1169
        %v1171 = vlaneseq
        %v1172 = vshrl.u32 %v1171, 7
        %v1173 = vsub.s32 %v1170, %v1172
        %v1174 = vrot.slane %v1160, %v1173
        %v1175 = vcombine.low %v1151, %v1167
        %v1176 = vcombine.high %v1151, %v1167
        %v1177 = vcombine.low %v1158, %v1174
        %v1178 = vcombine.high %v1158, %v1174
        %v1179 = vpack.c.bf16 %v879, %v879
        %v1180 = vpack.c.bf16 %v880, %v880
        %v1181 = vpack.c.bf16 %v881, %v881
        %v1182 = vpack.c.bf16 %v882, %v882
        %v1183 = vpack.c.bf16 %v1027, %v1027
        %v1184 = vpack.c.bf16 %v1028, %v1028
        %v1185 = vpack.c.bf16 %v1029, %v1029
        %v1186 = vpack.c.bf16 %v1030, %v1030
        %vm1187 = vcmask 64512
        %v1189 = vsel %vm1187, %v1179, 0
        %v1192 = vsel %vm1187, %v1183, 0
        %1194 = vmatprep.subr.bf16.mxu0 0
        %1195 = vmatpush1.bf16.xpose.msra.mxu0 %v1192
        %1196 = vmatprep.subr.bf16.mxu0 0
        %1197 = vmatpush1.bf16.xpose.msra.mxu0 0
        %1198 = vmatprep.subr.bf16.mxu0 0
        %1199 = vmatpush1.bf16.xpose.msra.mxu0 0
        %1200 = vmatprep.subr.bf16.mxu0 0
        %1201 = vmatpush1.bf16.xpose.msra.mxu0 0
        %1202 = vmatprep.subr.bf16.mxu0 0
        %1203 = vmatpush1.bf16.xpose.msra.mxu0 0
        %1204 = vmatprep.subr.bf16.mxu0 0
        %1205 = vmatpush1.bf16.xpose.msra.mxu0 0
        %1206 = vmatprep.subr.bf16.mxu0 0
        %1207 = vmatpush1.bf16.xpose.msra.mxu0 0
        %1208 = vmatprep.subr.bf16.mxu0 0
        %1209 = vmatpush1.bf16.xpose.msra.mxu0 0
        %1210 = vmatprep.subr.bf16.mxu0 0
        %1211 = vmatpush1.bf16.xpose.msra.mxu0 0
        %1212 = vmatprep.subr.bf16.mxu0 0
        %1213 = vmatpush1.bf16.xpose.msra.mxu0 0
        %1214 = vmatprep.subr.bf16.mxu0 0
        %1215 = vmatpush1.bf16.xpose.msra.mxu0 0
        %1216 = vmatprep.subr.bf16.mxu0 0
        %1217 = vmatpush1.bf16.xpose.msra.mxu0 0
        %1218 = vmatprep.subr.bf16.mxu0 0
        %1219 = vmatpush1.bf16.xpose.msra.mxu0 0
        %1220 = vmatprep.subr.bf16.mxu0 0
        %1221 = vmatpush1.bf16.xpose.msra.mxu0 0
        %1222 = vmatprep.subr.bf16.mxu0 0
        %1223 = vmatpush1.bf16.xpose.msra.mxu0 0
        %1224 = vmatprep.subr.bf16.mxu0 0
        %1225 = vmatpush1.bf16.xpose.msra.mxu0 0
        %1226 = vmatprep.mubr.bf16.mxu0 0
        %1227 = vmatmul.mubr.bf16.gmra.mrb[0].mxu0 %v1189
        %v1228 = vpop.f32.mrb[0].mxu0
        %v1229 = vadd.f32 0.0, %v1228
        %v1230 = vpop.f32.mrb[0].mxu0
        %v1231 = vpop.f32.mrb[0].mxu0
        %v1232 = vpop.f32.mrb[0].mxu0
        %1233 = vdwg.mxu0
        %v1235 = vsel %vm1187, %v1180, 0
        %v1238 = vsel %vm1187, %v1184, 0
        %1240 = vmatprep.subr.bf16.mxu0 0
        %1241 = vmatpush1.bf16.xpose.msra.mxu0 %v1238
        %1242 = vmatprep.subr.bf16.mxu0 0
        %1243 = vmatpush1.bf16.xpose.msra.mxu0 0
        %1244 = vmatprep.subr.bf16.mxu0 0
        %1245 = vmatpush1.bf16.xpose.msra.mxu0 0
        %1246 = vmatprep.subr.bf16.mxu0 0
        %1247 = vmatpush1.bf16.xpose.msra.mxu0 0
        %1248 = vmatprep.subr.bf16.mxu0 0
        %1249 = vmatpush1.bf16.xpose.msra.mxu0 0
        %1250 = vmatprep.subr.bf16.mxu0 0
        %1251 = vmatpush1.bf16.xpose.msra.mxu0 0
        %1252 = vmatprep.subr.bf16.mxu0 0
        %1253 = vmatpush1.bf16.xpose.msra.mxu0 0
        %1254 = vmatprep.subr.bf16.mxu0 0
        %1255 = vmatpush1.bf16.xpose.msra.mxu0 0
        %1256 = vmatprep.subr.bf16.mxu0 0
        %1257 = vmatpush1.bf16.xpose.msra.mxu0 0
        %1258 = vmatprep.subr.bf16.mxu0 0
        %1259 = vmatpush1.bf16.xpose.msra.mxu0 0
        %1260 = vmatprep.subr.bf16.mxu0 0
        %1261 = vmatpush1.bf16.xpose.msra.mxu0 0
        %1262 = vmatprep.subr.bf16.mxu0 0
        %1263 = vmatpush1.bf16.xpose.msra.mxu0 0
        %1264 = vmatprep.subr.bf16.mxu0 0
        %1265 = vmatpush1.bf16.xpose.msra.mxu0 0
        %1266 = vmatprep.subr.bf16.mxu0 0
        %1267 = vmatpush1.bf16.xpose.msra.mxu0 0
        %1268 = vmatprep.subr.bf16.mxu0 0
        %1269 = vmatpush1.bf16.xpose.msra.mxu0 0
        %1270 = vmatprep.subr.bf16.mxu0 0
        %1271 = vmatpush1.bf16.xpose.msra.mxu0 0
        %1272 = vmatprep.mubr.bf16.mxu0 0
        %1273 = vmatmul.mubr.bf16.gmra.mrb[0].mxu0 %v1235
        %v1274 = vpop.f32.mrb[0].mxu0
        %v1275 = vadd.f32 0.0, %v1274
        %v1276 = vpop.f32.mrb[0].mxu0
        %v1277 = vpop.f32.mrb[0].mxu0
        %v1278 = vpop.f32.mrb[0].mxu0
        %1279 = vdwg.mxu0
        %v1281 = vsel %vm1187, %v1181, 0
        %v1284 = vsel %vm1187, %v1185, 0
        %1286 = vmatprep.subr.bf16.mxu0 0
        %1287 = vmatpush1.bf16.xpose.msra.mxu0 %v1284
        %1288 = vmatprep.subr.bf16.mxu0 0
        %1289 = vmatpush1.bf16.xpose.msra.mxu0 0
        %1290 = vmatprep.subr.bf16.mxu0 0
        %1291 = vmatpush1.bf16.xpose.msra.mxu0 0
        %1292 = vmatprep.subr.bf16.mxu0 0
        %1293 = vmatpush1.bf16.xpose.msra.mxu0 0
        %1294 = vmatprep.subr.bf16.mxu0 0
        %1295 = vmatpush1.bf16.xpose.msra.mxu0 0
        %1296 = vmatprep.subr.bf16.mxu0 0
        %1297 = vmatpush1.bf16.xpose.msra.mxu0 0
        %1298 = vmatprep.subr.bf16.mxu0 0
        %1299 = vmatpush1.bf16.xpose.msra.mxu0 0
        %1300 = vmatprep.subr.bf16.mxu0 0
        %1301 = vmatpush1.bf16.xpose.msra.mxu0 0
        %1302 = vmatprep.subr.bf16.mxu0 0
        %1303 = vmatpush1.bf16.xpose.msra.mxu0 0
        %1304 = vmatprep.subr.bf16.mxu0 0
        %1305 = vmatpush1.bf16.xpose.msra.mxu0 0
        %1306 = vmatprep.subr.bf16.mxu0 0
        %1307 = vmatpush1.bf16.xpose.msra.mxu0 0
        %1308 = vmatprep.subr.bf16.mxu0 0
        %1309 = vmatpush1.bf16.xpose.msra.mxu0 0
        %1310 = vmatprep.subr.bf16.mxu0 0
        %1311 = vmatpush1.bf16.xpose.msra.mxu0 0
        %1312 = vmatprep.subr.bf16.mxu0 0
        %1313 = vmatpush1.bf16.xpose.msra.mxu0 0
        %1314 = vmatprep.subr.bf16.mxu0 0
        %1315 = vmatpush1.bf16.xpose.msra.mxu0 0
        %1316 = vmatprep.subr.bf16.mxu0 0
        %1317 = vmatpush1.bf16.xpose.msra.mxu0 0
        %1318 = vmatprep.mubr.bf16.mxu0 0
        %1319 = vmatmul.mubr.bf16.gmra.mrb[0].mxu0 %v1281
        %v1320 = vpop.f32.mrb[0].mxu0
        %v1321 = vadd.f32 0.0, %v1320
        %v1322 = vpop.f32.mrb[0].mxu0
        %v1323 = vpop.f32.mrb[0].mxu0
        %v1324 = vpop.f32.mrb[0].mxu0
        %1325 = vdwg.mxu0
        %v1327 = vsel %vm1187, %v1182, 0
        %v1330 = vsel %vm1187, %v1186, 0
        %1332 = vmatprep.subr.bf16.mxu0 0
        %1333 = vmatpush1.bf16.xpose.msra.mxu0 %v1330
        %1334 = vmatprep.subr.bf16.mxu0 0
        %1335 = vmatpush1.bf16.xpose.msra.mxu0 0
        %1336 = vmatprep.subr.bf16.mxu0 0
        %1337 = vmatpush1.bf16.xpose.msra.mxu0 0
        %1338 = vmatprep.subr.bf16.mxu0 0
        %1339 = vmatpush1.bf16.xpose.msra.mxu0 0
        %1340 = vmatprep.subr.bf16.mxu0 0
        %1341 = vmatpush1.bf16.xpose.msra.mxu0 0
        %1342 = vmatprep.subr.bf16.mxu0 0
        %1343 = vmatpush1.bf16.xpose.msra.mxu0 0
        %1344 = vmatprep.subr.bf16.mxu0 0
        %1345 = vmatpush1.bf16.xpose.msra.mxu0 0
        %1346 = vmatprep.subr.bf16.mxu0 0
        %1347 = vmatpush1.bf16.xpose.msra.mxu0 0
        %1348 = vmatprep.subr.bf16.mxu0 0
        %1349 = vmatpush1.bf16.xpose.msra.mxu0 0
        %1350 = vmatprep.subr.bf16.mxu0 0
        %1351 = vmatpush1.bf16.xpose.msra.mxu0 0
        %1352 = vmatprep.subr.bf16.mxu0 0
        %1353 = vmatpush1.bf16.xpose.msra.mxu0 0
        %1354 = vmatprep.subr.bf16.mxu0 0
        %1355 = vmatpush1.bf16.xpose.msra.mxu0 0
        %1356 = vmatprep.subr.bf16.mxu0 0
        %1357 = vmatpush1.bf16.xpose.msra.mxu0 0
        %1358 = vmatprep.subr.bf16.mxu0 0
        %1359 = vmatpush1.bf16.xpose.msra.mxu0 0
        %1360 = vmatprep.subr.bf16.mxu0 0
        %1361 = vmatpush1.bf16.xpose.msra.mxu0 0
        %1362 = vmatprep.subr.bf16.mxu0 0
        %1363 = vmatpush1.bf16.xpose.msra.mxu0 0
        %1364 = vmatprep.mubr.bf16.mxu0 0
        %1365 = vmatmul.mubr.bf16.gmra.mrb[0].mxu0 %v1327
        %v1366 = vpop.f32.mrb[0].mxu0
        %v1367 = vadd.f32 0.0, %v1366
        %v1368 = vpop.f32.mrb[0].mxu0
        %v1369 = vpop.f32.mrb[0].mxu0
        %v1370 = vpop.f32.mrb[0].mxu0
        %1371 = vdwg.mxu0
        %v1372 = vmul.f32 %v1229, 0.35355338
        %v1373 = vmul.f32 %v1275, 0.35355338
        %v1374 = vmul.f32 %v1321, 0.35355338
        %v1375 = vmul.f32 %v1367, 0.35355338
        %v1376 = vadd.f32 %v1372, %v634
        %v1377 = vadd.f32 %v1373, %v634
        %v1378 = vadd.f32 %v1374, %v634
        %v1379 = vadd.f32 %v1375, %v634
        %v1380 = vsel %vm1187, %v1376, -inf
        %1381 = vmax.xlane.f32.xlu0 %v1380
        %v1382 = vpop.xlane.xlu0 %1381
        %v1383 = vsel %vm1187, %v1377, -inf
        %1384 = vmax.xlane.f32.xlu0 %v1383
        %v1385 = vpop.xlane.xlu0 %1384
        %v1386 = vsel %vm1187, %v1378, -inf
        %1387 = vmax.xlane.f32.xlu0 %v1386
        %v1388 = vpop.xlane.xlu0 %1387
        %v1389 = vsel %vm1187, %v1379, -inf
        %1390 = vmax.xlane.f32.xlu0 %v1389
        %v1391 = vpop.xlane.xlu0 %1390
        %v1392 = vsub.f32 %v1376, %v1382
        %v1393 = vsub.f32 %v1377, %v1385
        %v1394 = vsub.f32 %v1378, %v1388
        %v1395 = vsub.f32 %v1379, %v1391
        %v1396 = vmul.f32 %v1392, 1.442695
        %v1397 = vpow.pop %v1396
        %v1398 = vmul.f32 %v1393, 1.442695
        %v1399 = vpow.pop %v1398
        %v1400 = vmul.f32 %v1394, 1.442695
        %v1401 = vpow.pop %v1400
        %v1402 = vmul.f32 %v1395, 1.442695
        %v1403 = vpow.pop %v1402
        %v1404 = vsel %vm1187, %v1397, 0.0
        %1405 = vadd.xlane.f32.xlu0 %v1404
        %v1406 = vpop.xlane.xlu0 %1405
        %v1407 = vsel %vm1187, %v1399, 0.0
        %1408 = vadd.xlane.f32.xlu0 %v1407
        %v1409 = vpop.xlane.xlu0 %1408
        %v1410 = vsel %vm1187, %v1401, 0.0
        %1411 = vadd.xlane.f32.xlu0 %v1410
        %v1412 = vpop.xlane.xlu0 %1411
        %v1413 = vsel %vm1187, %v1403, 0.0
        %1414 = vadd.xlane.f32.xlu0 %v1413
        %v1415 = vpop.xlane.xlu0 %1414
        %v1416 = vrcp.pop %v1406
        %v1417 = vrcp.pop %v1409
        %v1418 = vrcp.pop %v1412
        %v1419 = vrcp.pop %v1415
        %v1420 = vmul.f32 %v1397, %v1416
        %v1421 = vmul.f32 %v1399, %v1417
        %v1422 = vmul.f32 %v1401, %v1418
        %v1423 = vmul.f32 %v1403, %v1419
        %v1424 = vpack.c.bf16 %v1420, %v1420
        %v1425 = vpack.c.bf16 %v1421, %v1421
        %v1426 = vpack.c.bf16 %v1422, %v1422
        %v1427 = vpack.c.bf16 %v1423, %v1423
        %v1428 = vpack.c.bf16 %v1175, %v1175
        %v1429 = vpack.c.bf16 %v1176, %v1176
        %v1430 = vpack.c.bf16 %v1177, %v1177
        %v1431 = vpack.c.bf16 %v1178, %v1178
        %v1433 = vsel %vm1187, %v1424, 0
        %vm1435 = vcmask 1043456
        %v1437 = vsel %vm1435, %v1428, 0
        %1439 = vmatprep.subr.bf16.mxu0 0
        %1440 = vmatpush1.bf16.msra.mxu0 %v1437
        %1441 = vmatprep.subr.bf16.mxu0 0
        %1442 = vmatpush1.bf16.msra.mxu0 0
        %1443 = vmatprep.subr.bf16.mxu0 0
        %1444 = vmatpush1.bf16.msra.mxu0 0
        %1445 = vmatprep.subr.bf16.mxu0 0
        %1446 = vmatpush1.bf16.msra.mxu0 0
        %1447 = vmatprep.subr.bf16.mxu0 0
        %1448 = vmatpush1.bf16.msra.mxu0 0
        %1449 = vmatprep.subr.bf16.mxu0 0
        %1450 = vmatpush1.bf16.msra.mxu0 0
        %1451 = vmatprep.subr.bf16.mxu0 0
        %1452 = vmatpush1.bf16.msra.mxu0 0
        %1453 = vmatprep.subr.bf16.mxu0 0
        %1454 = vmatpush1.bf16.msra.mxu0 0
        %1455 = vmatprep.subr.bf16.mxu0 0
        %1456 = vmatpush1.bf16.msra.mxu0 0
        %1457 = vmatprep.subr.bf16.mxu0 0
        %1458 = vmatpush1.bf16.msra.mxu0 0
        %1459 = vmatprep.subr.bf16.mxu0 0
        %1460 = vmatpush1.bf16.msra.mxu0 0
        %1461 = vmatprep.subr.bf16.mxu0 0
        %1462 = vmatpush1.bf16.msra.mxu0 0
        %1463 = vmatprep.subr.bf16.mxu0 0
        %1464 = vmatpush1.bf16.msra.mxu0 0
        %1465 = vmatprep.subr.bf16.mxu0 0
        %1466 = vmatpush1.bf16.msra.mxu0 0
        %1467 = vmatprep.subr.bf16.mxu0 0
        %1468 = vmatpush1.bf16.msra.mxu0 0
        %1469 = vmatprep.subr.bf16.mxu0 0
        %1470 = vmatpush1.bf16.msra.mxu0 0
        %1471 = vmatprep.mubr.bf16.mxu0 0
        %1472 = vmatmul.mubr.bf16.gmra.mrb[0].mxu0 %v1433
        %v1473 = vpop.f32.mrb[0].mxu0
        %v1474 = vadd.f32 0.0, %v1473
        %v1475 = vpop.f32.mrb[0].mxu0
        %v1476 = vpop.f32.mrb[0].mxu0
        %v1477 = vpop.f32.mrb[0].mxu0
        %1478 = vdwg.mxu0
        %v1480 = vsel %vm1187, %v1425, 0
        %v1483 = vsel %vm1435, %v1429, 0
        %1485 = vmatprep.subr.bf16.mxu0 0
        %1486 = vmatpush1.bf16.msra.mxu0 %v1483
        %1487 = vmatprep.subr.bf16.mxu0 0
        %1488 = vmatpush1.bf16.msra.mxu0 0
        %1489 = vmatprep.subr.bf16.mxu0 0
        %1490 = vmatpush1.bf16.msra.mxu0 0
        %1491 = vmatprep.subr.bf16.mxu0 0
        %1492 = vmatpush1.bf16.msra.mxu0 0
        %1493 = vmatprep.subr.bf16.mxu0 0
        %1494 = vmatpush1.bf16.msra.mxu0 0
        %1495 = vmatprep.subr.bf16.mxu0 0
        %1496 = vmatpush1.bf16.msra.mxu0 0
        %1497 = vmatprep.subr.bf16.mxu0 0
        %1498 = vmatpush1.bf16.msra.mxu0 0
        %1499 = vmatprep.subr.bf16.mxu0 0
        %1500 = vmatpush1.bf16.msra.mxu0 0
        %1501 = vmatprep.subr.bf16.mxu0 0
        %1502 = vmatpush1.bf16.msra.mxu0 0
        %1503 = vmatprep.subr.bf16.mxu0 0
        %1504 = vmatpush1.bf16.msra.mxu0 0
        %1505 = vmatprep.subr.bf16.mxu0 0
        %1506 = vmatpush1.bf16.msra.mxu0 0
        %1507 = vmatprep.subr.bf16.mxu0 0
        %1508 = vmatpush1.bf16.msra.mxu0 0
        %1509 = vmatprep.subr.bf16.mxu0 0
        %1510 = vmatpush1.bf16.msra.mxu0 0
        %1511 = vmatprep.subr.bf16.mxu0 0
        %1512 = vmatpush1.bf16.msra.mxu0 0
        %1513 = vmatprep.subr.bf16.mxu0 0
        %1514 = vmatpush1.bf16.msra.mxu0 0
        %1515 = vmatprep.subr.bf16.mxu0 0
        %1516 = vmatpush1.bf16.msra.mxu0 0
        %1517 = vmatprep.mubr.bf16.mxu0 0
        %1518 = vmatmul.mubr.bf16.gmra.mrb[0].mxu0 %v1480
        %v1519 = vpop.f32.mrb[0].mxu0
        %v1520 = vadd.f32 0.0, %v1519
        %v1521 = vpop.f32.mrb[0].mxu0
        %v1522 = vpop.f32.mrb[0].mxu0
        %v1523 = vpop.f32.mrb[0].mxu0
        %1524 = vdwg.mxu0
        %v1526 = vsel %vm1187, %v1426, 0
        %v1529 = vsel %vm1435, %v1430, 0
        %1531 = vmatprep.subr.bf16.mxu0 0
        %1532 = vmatpush1.bf16.msra.mxu0 %v1529
        %1533 = vmatprep.subr.bf16.mxu0 0
        %1534 = vmatpush1.bf16.msra.mxu0 0
        %1535 = vmatprep.subr.bf16.mxu0 0
        %1536 = vmatpush1.bf16.msra.mxu0 0
        %1537 = vmatprep.subr.bf16.mxu0 0
        %1538 = vmatpush1.bf16.msra.mxu0 0
        %1539 = vmatprep.subr.bf16.mxu0 0
        %1540 = vmatpush1.bf16.msra.mxu0 0
        %1541 = vmatprep.subr.bf16.mxu0 0
        %1542 = vmatpush1.bf16.msra.mxu0 0
        %1543 = vmatprep.subr.bf16.mxu0 0
        %1544 = vmatpush1.bf16.msra.mxu0 0
        %1545 = vmatprep.subr.bf16.mxu0 0
        %1546 = vmatpush1.bf16.msra.mxu0 0
        %1547 = vmatprep.subr.bf16.mxu0 0
        %1548 = vmatpush1.bf16.msra.mxu0 0
        %1549 = vmatprep.subr.bf16.mxu0 0
        %1550 = vmatpush1.bf16.msra.mxu0 0
        %1551 = vmatprep.subr.bf16.mxu0 0
        %1552 = vmatpush1.bf16.msra.mxu0 0
        %1553 = vmatprep.subr.bf16.mxu0 0
        %1554 = vmatpush1.bf16.msra.mxu0 0
        %1555 = vmatprep.subr.bf16.mxu0 0
        %1556 = vmatpush1.bf16.msra.mxu0 0
        %1557 = vmatprep.subr.bf16.mxu0 0
        %1558 = vmatpush1.bf16.msra.mxu0 0
        %1559 = vmatprep.subr.bf16.mxu0 0
        %1560 = vmatpush1.bf16.msra.mxu0 0
        %1561 = vmatprep.subr.bf16.mxu0 0
        %1562 = vmatpush1.bf16.msra.mxu0 0
        %1563 = vmatprep.mubr.bf16.mxu0 0
        %1564 = vmatmul.mubr.bf16.gmra.mrb[0].mxu0 %v1526
        %v1565 = vpop.f32.mrb[0].mxu0
        %v1566 = vadd.f32 0.0, %v1565
        %v1567 = vpop.f32.mrb[0].mxu0
        %v1568 = vpop.f32.mrb[0].mxu0
        %v1569 = vpop.f32.mrb[0].mxu0
        %1570 = vdwg.mxu0
        %v1572 = vsel %vm1187, %v1427, 0
        %v1575 = vsel %vm1435, %v1431, 0
        %1577 = vmatprep.subr.bf16.mxu0 0
        %1578 = vmatpush1.bf16.msra.mxu0 %v1575
        %1579 = vmatprep.subr.bf16.mxu0 0
        %1580 = vmatpush1.bf16.msra.mxu0 0
        %1581 = vmatprep.subr.bf16.mxu0 0
        %1582 = vmatpush1.bf16.msra.mxu0 0
        %1583 = vmatprep.subr.bf16.mxu0 0
        %1584 = vmatpush1.bf16.msra.mxu0 0
        %1585 = vmatprep.subr.bf16.mxu0 0
        %1586 = vmatpush1.bf16.msra.mxu0 0
        %1587 = vmatprep.subr.bf16.mxu0 0
        %1588 = vmatpush1.bf16.msra.mxu0 0
        %1589 = vmatprep.subr.bf16.mxu0 0
        %1590 = vmatpush1.bf16.msra.mxu0 0
        %1591 = vmatprep.subr.bf16.mxu0 0
        %1592 = vmatpush1.bf16.msra.mxu0 0
        %1593 = vmatprep.subr.bf16.mxu0 0
        %1594 = vmatpush1.bf16.msra.mxu0 0
        %1595 = vmatprep.subr.bf16.mxu0 0
        %1596 = vmatpush1.bf16.msra.mxu0 0
        %1597 = vmatprep.subr.bf16.mxu0 0
        %1598 = vmatpush1.bf16.msra.mxu0 0
        %1599 = vmatprep.subr.bf16.mxu0 0
        %1600 = vmatpush1.bf16.msra.mxu0 0
        %1601 = vmatprep.subr.bf16.mxu0 0
        %1602 = vmatpush1.bf16.msra.mxu0 0
        %1603 = vmatprep.subr.bf16.mxu0 0
        %1604 = vmatpush1.bf16.msra.mxu0 0
        %1605 = vmatprep.subr.bf16.mxu0 0
        %1606 = vmatpush1.bf16.msra.mxu0 0
        %1607 = vmatprep.subr.bf16.mxu0 0
        %1608 = vmatpush1.bf16.msra.mxu0 0
        %1609 = vmatprep.mubr.bf16.mxu0 0
        %1610 = vmatmul.mubr.bf16.gmra.mrb[0].mxu0 %v1572
        %v1611 = vpop.f32.mrb[0].mxu0
        %v1612 = vadd.f32 0.0, %v1611
        %v1613 = vpop.f32.mrb[0].mxu0
        %v1614 = vpop.f32.mrb[0].mxu0
        %v1615 = vpop.f32.mrb[0].mxu0
        %1616 = vdwg.mxu0
        %v1617 = vcombine.low %v1474, %v1566
        %v1618 = vcombine.high %v1474, %v1566
        %v1620 = vunpack.c.l.s4 1983009808
        %v1621 = vunpack.c.0.s8 %v1620
        %v1622 = vlaneseq
        %v1623 = vshrl.u32 %v1622, 7
        %v1624 = vsub.s32 %v1621, %v1623
        %v1625 = vrot.slane %v1617, %v1624
        %v1627 = vunpack.c.l.s4 1983009808
        %v1628 = vunpack.c.0.s8 %v1627
        %v1629 = vlaneseq
        %v1630 = vshrl.u32 %v1629, 7
        %v1631 = vsub.s32 %v1628, %v1630
        %v1632 = vrot.slane %v1618, %v1631
        %v1633 = vcombine.low %v1520, %v1612
        %v1634 = vcombine.high %v1520, %v1612
        %v1636 = vunpack.c.l.s4 1983009808
        %v1637 = vunpack.c.0.s8 %v1636
        %v1638 = vlaneseq
        %v1639 = vshrl.u32 %v1638, 7
        %v1640 = vsub.s32 %v1637, %v1639
        %v1641 = vrot.slane %v1633, %v1640
        %v1643 = vunpack.c.l.s4 1983009808
        %v1644 = vunpack.c.0.s8 %v1643
        %v1645 = vlaneseq
        %v1646 = vshrl.u32 %v1645, 7
        %v1647 = vsub.s32 %v1644, %v1646
        %v1648 = vrot.slane %v1634, %v1647
        %v1649 = vcombine.low %v1625, %v1641
        %v1650 = vcombine.high %v1625, %v1641
        %v1652 = vunpack.c.l.s4 1934713408
        %v1653 = vunpack.c.0.s8 %v1652
        %v1654 = vlaneseq
        %v1655 = vshrl.u32 %v1654, 7
        %v1656 = vsub.s32 %v1653, %v1655
        %v1657 = vrot.slane %v1649, %v1656
        %v1659 = vunpack.c.l.s4 1934713408
        %v1660 = vunpack.c.0.s8 %v1659
        %v1661 = vlaneseq
        %v1662 = vshrl.u32 %v1661, 7
        %v1663 = vsub.s32 %v1660, %v1662
        %v1664 = vrot.slane %v1650, %v1663
        %v1665 = vcombine.low %v1632, %v1648
        %v1666 = vcombine.high %v1632, %v1648
        %v1668 = vunpack.c.l.s4 1934713408
        %v1669 = vunpack.c.0.s8 %v1668
        %v1670 = vlaneseq
        %v1671 = vshrl.u32 %v1670, 7
        %v1672 = vsub.s32 %v1669, %v1671
        %v1673 = vrot.slane %v1665, %v1672
        %v1675 = vunpack.c.l.s4 1934713408
        %v1676 = vunpack.c.0.s8 %v1675
        %v1677 = vlaneseq
        %v1678 = vshrl.u32 %v1677, 7
        %v1679 = vsub.s32 %v1676, %v1678
        %v1680 = vrot.slane %v1666, %v1679
        %v1681 = vcombine.high %v1657, 0.0
        %v1682 = vcombine.high %v1664, 0.0
        %v1683 = vcombine.high %v1673, 0.0
        %v1684 = vcombine.high %v1680, 0.0
        %v1685 = vcombine.low %v1657, %v1664
        %v1687 = vunpack.c.l.s4 1983009808
        %v1688 = vunpack.c.0.s8 %v1687
        %v1689 = vlaneseq
        %v1690 = vshrl.u32 %v1689, 7
        %v1691 = vsub.s32 %v1688, %v1690
        %v1692 = vrot.slane %v1685, %v1691
        %v1693 = vcombine.low %v1681, %v1682
        %v1695 = vunpack.c.l.s4 1983009808
        %v1696 = vunpack.c.0.s8 %v1695
        %v1697 = vlaneseq
        %v1698 = vshrl.u32 %v1697, 7
        %v1699 = vsub.s32 %v1696, %v1698
        %v1700 = vrot.slane %v1693, %v1699
        %v1701 = vcombine.low %v1673, %v1680
        %v1703 = vunpack.c.l.s4 1983009808
        %v1704 = vunpack.c.0.s8 %v1703
        %v1705 = vlaneseq
        %v1706 = vshrl.u32 %v1705, 7
        %v1707 = vsub.s32 %v1704, %v1706
        %v1708 = vrot.slane %v1701, %v1707
        %v1709 = vcombine.low %v1683, %v1684
        %v1711 = vunpack.c.l.s4 1983009808
        %v1712 = vunpack.c.0.s8 %v1711
        %v1713 = vlaneseq
        %v1714 = vshrl.u32 %v1713, 7
        %v1715 = vsub.s32 %v1712, %v1714
        %v1716 = vrot.slane %v1709, %v1715
        %v1717 = vcombine.low %v1692, %v1700
        %v1718 = vcombine.high %v1692, %v1700
        %v1720 = vunpack.c.l.s4 1934713408
        %v1721 = vunpack.c.0.s8 %v1720
        %v1722 = vlaneseq
        %v1723 = vshrl.u32 %v1722, 7
        %v1724 = vsub.s32 %v1721, %v1723
        %v1725 = vrot.slane %v1717, %v1724
        %v1727 = vunpack.c.l.s4 1934713408
        %v1728 = vunpack.c.0.s8 %v1727
        %v1729 = vlaneseq
        %v1730 = vshrl.u32 %v1729, 7
        %v1731 = vsub.s32 %v1728, %v1730
        %v1732 = vrot.slane %v1718, %v1731
        %v1733 = vcombine.low %v1708, %v1716
        %v1734 = vcombine.high %v1708, %v1716
        %v1736 = vunpack.c.l.s4 1934713408
        %v1737 = vunpack.c.0.s8 %v1736
        %v1738 = vlaneseq
        %v1739 = vshrl.u32 %v1738, 7
        %v1740 = vsub.s32 %v1737, %v1739
        %v1741 = vrot.slane %v1733, %v1740
        %v1743 = vunpack.c.l.s4 1934713408
        %v1744 = vunpack.c.0.s8 %v1743
        %v1745 = vlaneseq
        %v1746 = vshrl.u32 %v1745, 7
        %v1747 = vsub.s32 %v1744, %v1746
        %v1748 = vrot.slane %v1734, %v1747
        %v1749 = vcombine.low %v1725, %v1741
        %v1750 = vcombine.high %v1725, %v1741
        %v1751 = vcombine.low %v1732, %v1748
        %v1752 = vcombine.high %v1732, %v1748
        %1754 = vrot.lane.b32.xlu0 %v1750, 8
        %v1755 = vpop.permute.xlu0 %1754
        %1758 = vrot.lane.b32.xlu0 %v1751, 16
        %v1759 = vpop.permute.xlu0 %1758
        %1762 = vrot.lane.b32.xlu0 %v1752, 24
        %v1763 = vpop.permute.xlu0 %1762
        %v1765 = vsel %vm1187, %v1749, %v1755
        %vm1766 = vcmask 130048
        %v1767 = vsel %vm1766, %v1765, %v1759
        %vm1768 = vcmask 195584
        %v1769 = vsel %vm1768, %v1767, %v1763
        %v1770 = vpack.c.bf16 %v1769, %v1769
        %v1771 = vlaneseq
        %v1772 = vshrl.u32 %v1771, 7
        %v1773 = vsub.s32 0, %v1772
        %v1774 = vrot.slane %v673, %v1773
        %v1779 = vunpack.c.l.b16 %v641
        %v1780 = vunpack.c.l.b16 %v642
        %v1781 = vunpack.c.l.b16 %v643
        %v1782 = vunpack.c.l.b16 %v644
        %v1783 = vpack.c.b16 %v1780, %v1779
        %v1784 = vpack.c.b16 %v1782, %v1781
        %v1788 = vsel %vm693, %v1770, 0
        %1790 = vmatprep.subr.bf16.mxu0 0
        %1791 = vmatpush1.bf16.msra.mxu0 %v1783
        %1792 = vmatprep.subr.bf16.mxu0 0
        %1793 = vmatpush1.bf16.msra.mxu0 %v1784
        %1794 = vmatprep.subr.bf16.mxu0 0
        %1795 = vmatpush1.bf16.msra.mxu0 0
        %1796 = vmatprep.subr.bf16.mxu0 0
        %1797 = vmatpush1.bf16.msra.mxu0 0
        %1798 = vmatprep.subr.bf16.mxu0 0
        %1799 = vmatpush1.bf16.msra.mxu0 0
        %1800 = vmatprep.subr.bf16.mxu0 0
        %1801 = vmatpush1.bf16.msra.mxu0 0
        %1802 = vmatprep.subr.bf16.mxu0 0
        %1803 = vmatpush1.bf16.msra.mxu0 0
        %1804 = vmatprep.subr.bf16.mxu0 0
        %1805 = vmatpush1.bf16.msra.mxu0 0
        %1806 = vmatprep.subr.bf16.mxu0 0
        %1807 = vmatpush1.bf16.msra.mxu0 0
        %1808 = vmatprep.subr.bf16.mxu0 0
        %1809 = vmatpush1.bf16.msra.mxu0 0
        %1810 = vmatprep.subr.bf16.mxu0 0
        %1811 = vmatpush1.bf16.msra.mxu0 0
        %1812 = vmatprep.subr.bf16.mxu0 0
        %1813 = vmatpush1.bf16.msra.mxu0 0
        %1814 = vmatprep.subr.bf16.mxu0 0
        %1815 = vmatpush1.bf16.msra.mxu0 0
        %1816 = vmatprep.subr.bf16.mxu0 0
        %1817 = vmatpush1.bf16.msra.mxu0 0
        %1818 = vmatprep.subr.bf16.mxu0 0
        %1819 = vmatpush1.bf16.msra.mxu0 0
        %1820 = vmatprep.subr.bf16.mxu0 0
        %1821 = vmatpush1.bf16.msra.mxu0 0
        %1822 = vmatprep.mubr.bf16.mxu0 0
        %1823 = vmatmul.mubr.bf16.gmra.mrb[0].mxu0 %v1788
        %v1824 = vpop.f32.mrb[0].mxu0
        %v1825 = vadd.f32 %v1774, %v1824
        %v1826 = vpop.f32.mrb[0].mxu0
        %v1827 = vpop.f32.mrb[0].mxu0
        %v1828 = vpop.f32.mrb[0].mxu0
        %1829 = vdwg.mxu0
        %v1830 = vadd.f32 %v632, %v1825
        %v1831 = vsel %vm693, %v1830, 0.0
        %1832 = vadd.xlane.f32.xlu0 %v1831
        %v1833 = vpop.xlane.xlu0 %1832
        %v1834 = vrcp.pop 32.0
        %v1835 = vmul.f32 %v1833, %v1834
        %v1836 = vsub.f32 %v1830, %v1835
        %v1837 = vmul.f32 %v1836, %v1836
        %v1838 = vsel %vm693, %v1837, 0.0
        %1839 = vadd.xlane.f32.xlu0 %v1838
        %v1840 = vpop.xlane.xlu0 %1839
        %v1841 = vmul.f32 %v1840, %v1834
        %v1842 = vadd.f32 %v1841, 1e-06
        %v1843 = vrsqrt.pop %v1842
        %v1844 = vmul.f32 %v1836, %v1843
        %v1845 = vlaneseq
        %v1846 = vshrl.u32 %v1845, 7
        %v1847 = vsub.s32 4, %v1846
        %v1848 = vrot.slane %v673, %v1847
        %v1849 = vmul.f32 %v1844, %v1848
        %v1850 = vlaneseq
        %v1851 = vshrl.u32 %v1850, 7
        %v1852 = vsub.s32 5, %v1851
        %v1853 = vrot.slane %v673, %v1852
        %v1854 = vadd.f32 %v1849, %v1853
        %v1855 = vpack.c.bf16 %v1854, %v1854
        %v1856 = vlaneseq
        %v1857 = vshrl.u32 %v1856, 7
        %v1858 = vsub.s32 1, %v1857
        %v1859 = vrot.slane %v673, %v1858
        %v1864 = vunpack.c.l.b16 %v646
        %v1865 = vunpack.c.l.b16 %v647
        %v1866 = vunpack.c.l.b16 %v648
        %v1867 = vunpack.c.l.b16 %v649
        %v1868 = vpack.c.b16 %v1865, %v1864
        %v1869 = vpack.c.b16 %v1867, %v1866
        %v1873 = vsel %vm693, %v1855, 0
        %1875 = vmatprep.subr.bf16.mxu0 0
        %1876 = vmatpush1.bf16.msra.mxu0 %v1868
        %1877 = vmatprep.subr.bf16.mxu0 0
        %1878 = vmatpush1.bf16.msra.mxu0 %v1869
        %1879 = vmatprep.subr.bf16.mxu0 0
        %1880 = vmatpush1.bf16.msra.mxu0 0
        %1881 = vmatprep.subr.bf16.mxu0 0
        %1882 = vmatpush1.bf16.msra.mxu0 0
        %1883 = vmatprep.subr.bf16.mxu0 0
        %1884 = vmatpush1.bf16.msra.mxu0 0
        %1885 = vmatprep.subr.bf16.mxu0 0
        %1886 = vmatpush1.bf16.msra.mxu0 0
        %1887 = vmatprep.subr.bf16.mxu0 0
        %1888 = vmatpush1.bf16.msra.mxu0 0
        %1889 = vmatprep.subr.bf16.mxu0 0
        %1890 = vmatpush1.bf16.msra.mxu0 0
        %1891 = vmatprep.subr.bf16.mxu0 0
        %1892 = vmatpush1.bf16.msra.mxu0 0
        %1893 = vmatprep.subr.bf16.mxu0 0
        %1894 = vmatpush1.bf16.msra.mxu0 0
        %1895 = vmatprep.subr.bf16.mxu0 0
        %1896 = vmatpush1.bf16.msra.mxu0 0
        %1897 = vmatprep.subr.bf16.mxu0 0
        %1898 = vmatpush1.bf16.msra.mxu0 0
        %1899 = vmatprep.subr.bf16.mxu0 0
        %1900 = vmatpush1.bf16.msra.mxu0 0
        %1901 = vmatprep.subr.bf16.mxu0 0
        %1902 = vmatpush1.bf16.msra.mxu0 0
        %1903 = vmatprep.subr.bf16.mxu0 0
        %1904 = vmatpush1.bf16.msra.mxu0 0
        %1905 = vmatprep.subr.bf16.mxu0 0
        %1906 = vmatpush1.bf16.msra.mxu0 0
        %1907 = vmatprep.mubr.bf16.mxu0 0
        %1908 = vmatmul.mubr.bf16.gmra.mrb[0].mxu0 %v1873
        %v1909 = vpop.f32.mrb[0].mxu0
        %v1910 = vadd.f32 %v1859, %v1909
        %v1911 = vpop.f32.mrb[0].mxu0
        %v1912 = vpop.f32.mrb[0].mxu0
        %v1913 = vpop.f32.mrb[0].mxu0
        %1914 = vdwg.mxu0
        %v1915 = vpack.c.bf16 %v633, %v633
        %v1917 = vlaneseq
        %v1918 = vshrl.u32 %v1917, 7
        %v1919 = vsub.s32 0, %v1918
        %v1920 = vrot.slane %v659, %v1919
        %v1926 = vunpack.c.l.b16 %v655
        %v1927 = vunpack.c.l.b16 %v656
        %v1928 = vunpack.c.l.b16 %v657
        %v1929 = vunpack.c.l.b16 %v658
        %v1930 = vpack.c.b16 %v1927, %v1926
        %v1931 = vpack.c.b16 %v1929, %v1928
        %v1935 = vsel %vm693, %v1915, 0
        %1937 = vmatprep.subr.bf16.mxu0 0
        %1938 = vmatpush1.bf16.msra.mxu0 %v1930
        %1939 = vmatprep.subr.bf16.mxu0 0
        %1940 = vmatpush1.bf16.msra.mxu0 %v1931
        %1941 = vmatprep.subr.bf16.mxu0 0
        %1942 = vmatpush1.bf16.msra.mxu0 0
        %1943 = vmatprep.subr.bf16.mxu0 0
        %1944 = vmatpush1.bf16.msra.mxu0 0
        %1945 = vmatprep.subr.bf16.mxu0 0
        %1946 = vmatpush1.bf16.msra.mxu0 0
        %1947 = vmatprep.subr.bf16.mxu0 0
        %1948 = vmatpush1.bf16.msra.mxu0 0
        %1949 = vmatprep.subr.bf16.mxu0 0
        %1950 = vmatpush1.bf16.msra.mxu0 0
        %1951 = vmatprep.subr.bf16.mxu0 0
        %1952 = vmatpush1.bf16.msra.mxu0 0
        %1953 = vmatprep.subr.bf16.mxu0 0
        %1954 = vmatpush1.bf16.msra.mxu0 0
        %1955 = vmatprep.subr.bf16.mxu0 0
        %1956 = vmatpush1.bf16.msra.mxu0 0
        %1957 = vmatprep.subr.bf16.mxu0 0
        %1958 = vmatpush1.bf16.msra.mxu0 0
        %1959 = vmatprep.subr.bf16.mxu0 0
        %1960 = vmatpush1.bf16.msra.mxu0 0
        %1961 = vmatprep.subr.bf16.mxu0 0
        %1962 = vmatpush1.bf16.msra.mxu0 0
        %1963 = vmatprep.subr.bf16.mxu0 0
        %1964 = vmatpush1.bf16.msra.mxu0 0
        %1965 = vmatprep.subr.bf16.mxu0 0
        %1966 = vmatpush1.bf16.msra.mxu0 0
        %1967 = vmatprep.subr.bf16.mxu0 0
        %1968 = vmatpush1.bf16.msra.mxu0 0
        %1969 = vmatprep.mubr.bf16.mxu0 0
        %1970 = vmatmul.mubr.bf16.gmra.mrb[0].mxu0 %v1935
        %v1971 = vpop.f32.mrb[0].mxu0
        %v1972 = vadd.f32 %v1920, %v1971
        %v1973 = vpop.f32.mrb[0].mxu0
        %v1974 = vpop.f32.mrb[0].mxu0
        %v1975 = vpop.f32.mrb[0].mxu0
        %1976 = vdwg.mxu0
        %1978 = vrot.lane.b32.xlu0 %v1910, 120
        %v1979 = vpop.permute.xlu0 %1978
        %1981 = vrot.lane.b32.xlu0 %v1910, 112
        %v1982 = vpop.permute.xlu0 %1981
        %1984 = vrot.lane.b32.xlu0 %v1910, 104
        %v1985 = vpop.permute.xlu0 %1984
        %v1987 = vcombine.low %v1910, %v1982
        %v1988 = vcombine.high %v1910, %v1982
        %v1990 = vunpack.c.l.s4 1983009808
        %v1991 = vunpack.c.0.s8 %v1990
        %v1992 = vlaneseq
        %v1993 = vshrl.u32 %v1992, 7
        %v1994 = vsub.s32 %v1991, %v1993
        %v1995 = vrot.slane %v1987, %v1994
        %v1997 = vunpack.c.l.s4 1983009808
        %v1998 = vunpack.c.0.s8 %v1997
        %v1999 = vlaneseq
        %v2000 = vshrl.u32 %v1999, 7
        %v2001 = vsub.s32 %v1998, %v2000
        %v2002 = vrot.slane %v1988, %v2001
        %v2003 = vcombine.low %v1979, %v1985
        %v2004 = vcombine.high %v1979, %v1985
        %v2006 = vunpack.c.l.s4 1983009808
        %v2007 = vunpack.c.0.s8 %v2006
        %v2008 = vlaneseq
        %v2009 = vshrl.u32 %v2008, 7
        %v2010 = vsub.s32 %v2007, %v2009
        %v2011 = vrot.slane %v2003, %v2010
        %v2013 = vunpack.c.l.s4 1983009808
        %v2014 = vunpack.c.0.s8 %v2013
        %v2015 = vlaneseq
        %v2016 = vshrl.u32 %v2015, 7
        %v2017 = vsub.s32 %v2014, %v2016
        %v2018 = vrot.slane %v2004, %v2017
        %v2019 = vcombine.low %v1995, %v2011
        %v2020 = vcombine.high %v1995, %v2011
        %v2022 = vunpack.c.l.s4 1934713408
        %v2023 = vunpack.c.0.s8 %v2022
        %v2024 = vlaneseq
        %v2025 = vshrl.u32 %v2024, 7
        %v2026 = vsub.s32 %v2023, %v2025
        %v2027 = vrot.slane %v2019, %v2026
        %v2029 = vunpack.c.l.s4 1934713408
        %v2030 = vunpack.c.0.s8 %v2029
        %v2031 = vlaneseq
        %v2032 = vshrl.u32 %v2031, 7
        %v2033 = vsub.s32 %v2030, %v2032
        %v2034 = vrot.slane %v2020, %v2033
        %v2035 = vcombine.low %v2002, %v2018
        %v2036 = vcombine.high %v2002, %v2018
        %v2038 = vunpack.c.l.s4 1934713408
        %v2039 = vunpack.c.0.s8 %v2038
        %v2040 = vlaneseq
        %v2041 = vshrl.u32 %v2040, 7
        %v2042 = vsub.s32 %v2039, %v2041
        %v2043 = vrot.slane %v2035, %v2042
        %v2045 = vunpack.c.l.s4 1934713408
        %v2046 = vunpack.c.0.s8 %v2045
        %v2047 = vlaneseq
        %v2048 = vshrl.u32 %v2047, 7
        %v2049 = vsub.s32 %v2046, %v2048
        %v2050 = vrot.slane %v2036, %v2049
        %v2051 = vcombine.high %v2027, 0.0
        %v2052 = vcombine.high %v2034, 0.0
        %v2053 = vcombine.high %v2043, 0.0
        %v2054 = vcombine.high %v2050, 0.0
        %v2055 = vcombine.low %v2027, %v2034
        %v2057 = vunpack.c.l.s4 1983009808
        %v2058 = vunpack.c.0.s8 %v2057
        %v2059 = vlaneseq
        %v2060 = vshrl.u32 %v2059, 7
        %v2061 = vsub.s32 %v2058, %v2060
        %v2062 = vrot.slane %v2055, %v2061
        %v2063 = vcombine.low %v2051, %v2052
        %v2065 = vunpack.c.l.s4 1983009808
        %v2066 = vunpack.c.0.s8 %v2065
        %v2067 = vlaneseq
        %v2068 = vshrl.u32 %v2067, 7
        %v2069 = vsub.s32 %v2066, %v2068
        %v2070 = vrot.slane %v2063, %v2069
        %v2071 = vcombine.low %v2043, %v2050
        %v2073 = vunpack.c.l.s4 1983009808
        %v2074 = vunpack.c.0.s8 %v2073
        %v2075 = vlaneseq
        %v2076 = vshrl.u32 %v2075, 7
        %v2077 = vsub.s32 %v2074, %v2076
        %v2078 = vrot.slane %v2071, %v2077
        %v2079 = vcombine.low %v2053, %v2054
        %v2081 = vunpack.c.l.s4 1983009808
        %v2082 = vunpack.c.0.s8 %v2081
        %v2083 = vlaneseq
        %v2084 = vshrl.u32 %v2083, 7
        %v2085 = vsub.s32 %v2082, %v2084
        %v2086 = vrot.slane %v2079, %v2085
        %v2087 = vcombine.low %v2062, %v2070
        %v2088 = vcombine.high %v2062, %v2070
        %v2090 = vunpack.c.l.s4 1934713408
        %v2091 = vunpack.c.0.s8 %v2090
        %v2092 = vlaneseq
        %v2093 = vshrl.u32 %v2092, 7
        %v2094 = vsub.s32 %v2091, %v2093
        %v2095 = vrot.slane %v2087, %v2094
        %v2097 = vunpack.c.l.s4 1934713408
        %v2098 = vunpack.c.0.s8 %v2097
        %v2099 = vlaneseq
        %v2100 = vshrl.u32 %v2099, 7
        %v2101 = vsub.s32 %v2098, %v2100
        %v2102 = vrot.slane %v2088, %v2101
        %v2103 = vcombine.low %v2078, %v2086
        %v2104 = vcombine.high %v2078, %v2086
        %v2106 = vunpack.c.l.s4 1934713408
        %v2107 = vunpack.c.0.s8 %v2106
        %v2108 = vlaneseq
        %v2109 = vshrl.u32 %v2108, 7
        %v2110 = vsub.s32 %v2107, %v2109
        %v2111 = vrot.slane %v2103, %v2110
        %v2113 = vunpack.c.l.s4 1934713408
        %v2114 = vunpack.c.0.s8 %v2113
        %v2115 = vlaneseq
        %v2116 = vshrl.u32 %v2115, 7
        %v2117 = vsub.s32 %v2114, %v2116
        %v2118 = vrot.slane %v2104, %v2117
        %v2119 = vcombine.low %v2095, %v2111
        %v2120 = vcombine.high %v2095, %v2111
        %v2121 = vcombine.low %v2102, %v2118
        %v2122 = vcombine.high %v2102, %v2118
        %2124 = vrot.lane.b32.xlu0 %v1972, 120
        %v2125 = vpop.permute.xlu0 %2124
        %2127 = vrot.lane.b32.xlu0 %v1972, 112
        %v2128 = vpop.permute.xlu0 %2127
        %2130 = vrot.lane.b32.xlu0 %v1972, 104
        %v2131 = vpop.permute.xlu0 %2130
        %v2133 = vcombine.low %v1972, %v2128
        %v2134 = vcombine.high %v1972, %v2128
        %v2136 = vunpack.c.l.s4 1983009808
        %v2137 = vunpack.c.0.s8 %v2136
        %v2138 = vlaneseq
        %v2139 = vshrl.u32 %v2138, 7
        %v2140 = vsub.s32 %v2137, %v2139
        %v2141 = vrot.slane %v2133, %v2140
        %v2143 = vunpack.c.l.s4 1983009808
        %v2144 = vunpack.c.0.s8 %v2143
        %v2145 = vlaneseq
        %v2146 = vshrl.u32 %v2145, 7
        %v2147 = vsub.s32 %v2144, %v2146
        %v2148 = vrot.slane %v2134, %v2147
        %v2149 = vcombine.low %v2125, %v2131
        %v2150 = vcombine.high %v2125, %v2131
        %v2152 = vunpack.c.l.s4 1983009808
        %v2153 = vunpack.c.0.s8 %v2152
        %v2154 = vlaneseq
        %v2155 = vshrl.u32 %v2154, 7
        %v2156 = vsub.s32 %v2153, %v2155
        %v2157 = vrot.slane %v2149, %v2156
        %v2159 = vunpack.c.l.s4 1983009808
        %v2160 = vunpack.c.0.s8 %v2159
        %v2161 = vlaneseq
        %v2162 = vshrl.u32 %v2161, 7
        %v2163 = vsub.s32 %v2160, %v2162
        %v2164 = vrot.slane %v2150, %v2163
        %v2165 = vcombine.low %v2141, %v2157
        %v2166 = vcombine.high %v2141, %v2157
        %v2168 = vunpack.c.l.s4 1934713408
        %v2169 = vunpack.c.0.s8 %v2168
        %v2170 = vlaneseq
        %v2171 = vshrl.u32 %v2170, 7
        %v2172 = vsub.s32 %v2169, %v2171
        %v2173 = vrot.slane %v2165, %v2172
        %v2175 = vunpack.c.l.s4 1934713408
        %v2176 = vunpack.c.0.s8 %v2175
        %v2177 = vlaneseq
        %v2178 = vshrl.u32 %v2177, 7
        %v2179 = vsub.s32 %v2176, %v2178
        %v2180 = vrot.slane %v2166, %v2179
        %v2181 = vcombine.low %v2148, %v2164
        %v2182 = vcombine.high %v2148, %v2164
        %v2184 = vunpack.c.l.s4 1934713408
        %v2185 = vunpack.c.0.s8 %v2184
        %v2186 = vlaneseq
        %v2187 = vshrl.u32 %v2186, 7
        %v2188 = vsub.s32 %v2185, %v2187
        %v2189 = vrot.slane %v2181, %v2188
        %v2191 = vunpack.c.l.s4 1934713408
        %v2192 = vunpack.c.0.s8 %v2191
        %v2193 = vlaneseq
        %v2194 = vshrl.u32 %v2193, 7
        %v2195 = vsub.s32 %v2192, %v2194
        %v2196 = vrot.slane %v2182, %v2195
        %v2197 = vcombine.high %v2173, 0.0
        %v2198 = vcombine.high %v2180, 0.0
        %v2199 = vcombine.high %v2189, 0.0
        %v2200 = vcombine.high %v2196, 0.0
        %v2201 = vcombine.low %v2173, %v2180
        %v2203 = vunpack.c.l.s4 1983009808
        %v2204 = vunpack.c.0.s8 %v2203
        %v2205 = vlaneseq
        %v2206 = vshrl.u32 %v2205, 7
        %v2207 = vsub.s32 %v2204, %v2206
        %v2208 = vrot.slane %v2201, %v2207
        %v2209 = vcombine.low %v2197, %v2198
        %v2211 = vunpack.c.l.s4 1983009808
        %v2212 = vunpack.c.0.s8 %v2211
        %v2213 = vlaneseq
        %v2214 = vshrl.u32 %v2213, 7
        %v2215 = vsub.s32 %v2212, %v2214
        %v2216 = vrot.slane %v2209, %v2215
        %v2217 = vcombine.low %v2189, %v2196
        %v2219 = vunpack.c.l.s4 1983009808
        %v2220 = vunpack.c.0.s8 %v2219
        %v2221 = vlaneseq
        %v2222 = vshrl.u32 %v2221, 7
        %v2223 = vsub.s32 %v2220, %v2222
        %v2224 = vrot.slane %v2217, %v2223
        %v2225 = vcombine.low %v2199, %v2200
        %v2227 = vunpack.c.l.s4 1983009808
        %v2228 = vunpack.c.0.s8 %v2227
        %v2229 = vlaneseq
        %v2230 = vshrl.u32 %v2229, 7
        %v2231 = vsub.s32 %v2228, %v2230
        %v2232 = vrot.slane %v2225, %v2231
        %v2233 = vcombine.low %v2208, %v2216
        %v2234 = vcombine.high %v2208, %v2216
        %v2236 = vunpack.c.l.s4 1934713408
        %v2237 = vunpack.c.0.s8 %v2236
        %v2238 = vlaneseq
        %v2239 = vshrl.u32 %v2238, 7
        %v2240 = vsub.s32 %v2237, %v2239
        %v2241 = vrot.slane %v2233, %v2240
        %v2243 = vunpack.c.l.s4 1934713408
        %v2244 = vunpack.c.0.s8 %v2243
        %v2245 = vlaneseq
        %v2246 = vshrl.u32 %v2245, 7
        %v2247 = vsub.s32 %v2244, %v2246
        %v2248 = vrot.slane %v2234, %v2247
        %v2249 = vcombine.low %v2224, %v2232
        %v2250 = vcombine.high %v2224, %v2232
        %v2252 = vunpack.c.l.s4 1934713408
        %v2253 = vunpack.c.0.s8 %v2252
        %v2254 = vlaneseq
        %v2255 = vshrl.u32 %v2254, 7
        %v2256 = vsub.s32 %v2253, %v2255
        %v2257 = vrot.slane %v2249, %v2256
        %v2259 = vunpack.c.l.s4 1934713408
        %v2260 = vunpack.c.0.s8 %v2259
        %v2261 = vlaneseq
        %v2262 = vshrl.u32 %v2261, 7
        %v2263 = vsub.s32 %v2260, %v2262
        %v2264 = vrot.slane %v2250, %v2263
        %v2265 = vcombine.low %v2241, %v2257
        %v2266 = vcombine.high %v2241, %v2257
        %v2267 = vcombine.low %v2248, %v2264
        %v2268 = vcombine.high %v2248, %v2264
        %2269 = vrot.lane.b32.xlu0 %v1972, 96
        %v2270 = vpop.permute.xlu0 %2269
        %2271 = vrot.lane.b32.xlu0 %v2125, 96
        %v2272 = vpop.permute.xlu0 %2271
        %2273 = vrot.lane.b32.xlu0 %v2128, 96
        %v2274 = vpop.permute.xlu0 %2273
        %2275 = vrot.lane.b32.xlu0 %v2131, 96
        %v2276 = vpop.permute.xlu0 %2275
        %v2281 = vcombine.low %v2270, %v2274
        %v2282 = vcombine.high %v2270, %v2274
        %v2284 = vunpack.c.l.s4 1983009808
        %v2285 = vunpack.c.0.s8 %v2284
        %v2286 = vlaneseq
        %v2287 = vshrl.u32 %v2286, 7
        %v2288 = vsub.s32 %v2285, %v2287
        %v2289 = vrot.slane %v2281, %v2288
        %v2291 = vunpack.c.l.s4 1983009808
        %v2292 = vunpack.c.0.s8 %v2291
        %v2293 = vlaneseq
        %v2294 = vshrl.u32 %v2293, 7
        %v2295 = vsub.s32 %v2292, %v2294
        %v2296 = vrot.slane %v2282, %v2295
        %v2297 = vcombine.low %v2272, %v2276
        %v2298 = vcombine.high %v2272, %v2276
        %v2300 = vunpack.c.l.s4 1983009808
        %v2301 = vunpack.c.0.s8 %v2300
        %v2302 = vlaneseq
        %v2303 = vshrl.u32 %v2302, 7
        %v2304 = vsub.s32 %v2301, %v2303
        %v2305 = vrot.slane %v2297, %v2304
        %v2307 = vunpack.c.l.s4 1983009808
        %v2308 = vunpack.c.0.s8 %v2307
        %v2309 = vlaneseq
        %v2310 = vshrl.u32 %v2309, 7
        %v2311 = vsub.s32 %v2308, %v2310
        %v2312 = vrot.slane %v2298, %v2311
        %v2313 = vcombine.low %v2289, %v2305
        %v2314 = vcombine.high %v2289, %v2305
        %v2316 = vunpack.c.l.s4 1934713408
        %v2317 = vunpack.c.0.s8 %v2316
        %v2318 = vlaneseq
        %v2319 = vshrl.u32 %v2318, 7
        %v2320 = vsub.s32 %v2317, %v2319
        %v2321 = vrot.slane %v2313, %v2320
        %v2323 = vunpack.c.l.s4 1934713408
        %v2324 = vunpack.c.0.s8 %v2323
        %v2325 = vlaneseq
        %v2326 = vshrl.u32 %v2325, 7
        %v2327 = vsub.s32 %v2324, %v2326
        %v2328 = vrot.slane %v2314, %v2327
        %v2329 = vcombine.low %v2296, %v2312
        %v2330 = vcombine.high %v2296, %v2312
        %v2332 = vunpack.c.l.s4 1934713408
        %v2333 = vunpack.c.0.s8 %v2332
        %v2334 = vlaneseq
        %v2335 = vshrl.u32 %v2334, 7
        %v2336 = vsub.s32 %v2333, %v2335
        %v2337 = vrot.slane %v2329, %v2336
        %v2339 = vunpack.c.l.s4 1934713408
        %v2340 = vunpack.c.0.s8 %v2339
        %v2341 = vlaneseq
        %v2342 = vshrl.u32 %v2341, 7
        %v2343 = vsub.s32 %v2340, %v2342
        %v2344 = vrot.slane %v2330, %v2343
        %v2345 = vcombine.high %v2321, 0.0
        %v2346 = vcombine.high %v2328, 0.0
        %v2347 = vcombine.high %v2337, 0.0
        %v2348 = vcombine.high %v2344, 0.0
        %v2349 = vcombine.low %v2321, %v2328
        %v2351 = vunpack.c.l.s4 1983009808
        %v2352 = vunpack.c.0.s8 %v2351
        %v2353 = vlaneseq
        %v2354 = vshrl.u32 %v2353, 7
        %v2355 = vsub.s32 %v2352, %v2354
        %v2356 = vrot.slane %v2349, %v2355
        %v2357 = vcombine.low %v2345, %v2346
        %v2359 = vunpack.c.l.s4 1983009808
        %v2360 = vunpack.c.0.s8 %v2359
        %v2361 = vlaneseq
        %v2362 = vshrl.u32 %v2361, 7
        %v2363 = vsub.s32 %v2360, %v2362
        %v2364 = vrot.slane %v2357, %v2363
        %v2365 = vcombine.low %v2337, %v2344
        %v2367 = vunpack.c.l.s4 1983009808
        %v2368 = vunpack.c.0.s8 %v2367
        %v2369 = vlaneseq
        %v2370 = vshrl.u32 %v2369, 7
        %v2371 = vsub.s32 %v2368, %v2370
        %v2372 = vrot.slane %v2365, %v2371
        %v2373 = vcombine.low %v2347, %v2348
        %v2375 = vunpack.c.l.s4 1983009808
        %v2376 = vunpack.c.0.s8 %v2375
        %v2377 = vlaneseq
        %v2378 = vshrl.u32 %v2377, 7
        %v2379 = vsub.s32 %v2376, %v2378
        %v2380 = vrot.slane %v2373, %v2379
        %v2381 = vcombine.low %v2356, %v2364
        %v2382 = vcombine.high %v2356, %v2364
        %v2384 = vunpack.c.l.s4 1934713408
        %v2385 = vunpack.c.0.s8 %v2384
        %v2386 = vlaneseq
        %v2387 = vshrl.u32 %v2386, 7
        %v2388 = vsub.s32 %v2385, %v2387
        %v2389 = vrot.slane %v2381, %v2388
        %v2391 = vunpack.c.l.s4 1934713408
        %v2392 = vunpack.c.0.s8 %v2391
        %v2393 = vlaneseq
        %v2394 = vshrl.u32 %v2393, 7
        %v2395 = vsub.s32 %v2392, %v2394
        %v2396 = vrot.slane %v2382, %v2395
        %v2397 = vcombine.low %v2372, %v2380
        %v2398 = vcombine.high %v2372, %v2380
        %v2400 = vunpack.c.l.s4 1934713408
        %v2401 = vunpack.c.0.s8 %v2400
        %v2402 = vlaneseq
        %v2403 = vshrl.u32 %v2402, 7
        %v2404 = vsub.s32 %v2401, %v2403
        %v2405 = vrot.slane %v2397, %v2404
        %v2407 = vunpack.c.l.s4 1934713408
        %v2408 = vunpack.c.0.s8 %v2407
        %v2409 = vlaneseq
        %v2410 = vshrl.u32 %v2409, 7
        %v2411 = vsub.s32 %v2408, %v2410
        %v2412 = vrot.slane %v2398, %v2411
        %v2413 = vcombine.low %v2389, %v2405
        %v2414 = vcombine.high %v2389, %v2405
        %v2415 = vcombine.low %v2396, %v2412
        %v2416 = vcombine.high %v2396, %v2412
        %v2417 = vpack.c.bf16 %v2119, %v2119
        %v2418 = vpack.c.bf16 %v2120, %v2120
        %v2419 = vpack.c.bf16 %v2121, %v2121
        %v2420 = vpack.c.bf16 %v2122, %v2122
        %v2421 = vpack.c.bf16 %v2265, %v2265
        %v2422 = vpack.c.bf16 %v2266, %v2266
        %v2423 = vpack.c.bf16 %v2267, %v2267
        %v2424 = vpack.c.bf16 %v2268, %v2268
        %v2426 = vsel %vm1187, %v2417, 0
        %v2429 = vsel %vm1187, %v2421, 0
        %2431 = vmatprep.subr.bf16.mxu0 0
        %2432 = vmatpush1.bf16.xpose.msra.mxu0 %v2429
        %2433 = vmatprep.subr.bf16.mxu0 0
        %2434 = vmatpush1.bf16.xpose.msra.mxu0 0
        %2435 = vmatprep.subr.bf16.mxu0 0
        %2436 = vmatpush1.bf16.xpose.msra.mxu0 0
        %2437 = vmatprep.subr.bf16.mxu0 0
        %2438 = vmatpush1.bf16.xpose.msra.mxu0 0
        %2439 = vmatprep.subr.bf16.mxu0 0
        %2440 = vmatpush1.bf16.xpose.msra.mxu0 0
        %2441 = vmatprep.subr.bf16.mxu0 0
        %2442 = vmatpush1.bf16.xpose.msra.mxu0 0
        %2443 = vmatprep.subr.bf16.mxu0 0
        %2444 = vmatpush1.bf16.xpose.msra.mxu0 0
        %2445 = vmatprep.subr.bf16.mxu0 0
        %2446 = vmatpush1.bf16.xpose.msra.mxu0 0
        %2447 = vmatprep.subr.bf16.mxu0 0
        %2448 = vmatpush1.bf16.xpose.msra.mxu0 0
        %2449 = vmatprep.subr.bf16.mxu0 0
        %2450 = vmatpush1.bf16.xpose.msra.mxu0 0
        %2451 = vmatprep.subr.bf16.mxu0 0
        %2452 = vmatpush1.bf16.xpose.msra.mxu0 0
        %2453 = vmatprep.subr.bf16.mxu0 0
        %2454 = vmatpush1.bf16.xpose.msra.mxu0 0
        %2455 = vmatprep.subr.bf16.mxu0 0
        %2456 = vmatpush1.bf16.xpose.msra.mxu0 0
        %2457 = vmatprep.subr.bf16.mxu0 0
        %2458 = vmatpush1.bf16.xpose.msra.mxu0 0
        %2459 = vmatprep.subr.bf16.mxu0 0
        %2460 = vmatpush1.bf16.xpose.msra.mxu0 0
        %2461 = vmatprep.subr.bf16.mxu0 0
        %2462 = vmatpush1.bf16.xpose.msra.mxu0 0
        %2463 = vmatprep.mubr.bf16.mxu0 0
        %2464 = vmatmul.mubr.bf16.gmra.mrb[0].mxu0 %v2426
        %v2465 = vpop.f32.mrb[0].mxu0
        %v2466 = vadd.f32 0.0, %v2465
        %v2467 = vpop.f32.mrb[0].mxu0
        %v2468 = vpop.f32.mrb[0].mxu0
        %v2469 = vpop.f32.mrb[0].mxu0
        %2470 = vdwg.mxu0
        %v2472 = vsel %vm1187, %v2418, 0
        %v2475 = vsel %vm1187, %v2422, 0
        %2477 = vmatprep.subr.bf16.mxu0 0
        %2478 = vmatpush1.bf16.xpose.msra.mxu0 %v2475
        %2479 = vmatprep.subr.bf16.mxu0 0
        %2480 = vmatpush1.bf16.xpose.msra.mxu0 0
        %2481 = vmatprep.subr.bf16.mxu0 0
        %2482 = vmatpush1.bf16.xpose.msra.mxu0 0
        %2483 = vmatprep.subr.bf16.mxu0 0
        %2484 = vmatpush1.bf16.xpose.msra.mxu0 0
        %2485 = vmatprep.subr.bf16.mxu0 0
        %2486 = vmatpush1.bf16.xpose.msra.mxu0 0
        %2487 = vmatprep.subr.bf16.mxu0 0
        %2488 = vmatpush1.bf16.xpose.msra.mxu0 0
        %2489 = vmatprep.subr.bf16.mxu0 0
        %2490 = vmatpush1.bf16.xpose.msra.mxu0 0
        %2491 = vmatprep.subr.bf16.mxu0 0
        %2492 = vmatpush1.bf16.xpose.msra.mxu0 0
        %2493 = vmatprep.subr.bf16.mxu0 0
        %2494 = vmatpush1.bf16.xpose.msra.mxu0 0
        %2495 = vmatprep.subr.bf16.mxu0 0
        %2496 = vmatpush1.bf16.xpose.msra.mxu0 0
        %2497 = vmatprep.subr.bf16.mxu0 0
        %2498 = vmatpush1.bf16.xpose.msra.mxu0 0
        %2499 = vmatprep.subr.bf16.mxu0 0
        %2500 = vmatpush1.bf16.xpose.msra.mxu0 0
        %2501 = vmatprep.subr.bf16.mxu0 0
        %2502 = vmatpush1.bf16.xpose.msra.mxu0 0
        %2503 = vmatprep.subr.bf16.mxu0 0
        %2504 = vmatpush1.bf16.xpose.msra.mxu0 0
        %2505 = vmatprep.subr.bf16.mxu0 0
        %2506 = vmatpush1.bf16.xpose.msra.mxu0 0
        %2507 = vmatprep.subr.bf16.mxu0 0
        %2508 = vmatpush1.bf16.xpose.msra.mxu0 0
        %2509 = vmatprep.mubr.bf16.mxu0 0
        %2510 = vmatmul.mubr.bf16.gmra.mrb[0].mxu0 %v2472
        %v2511 = vpop.f32.mrb[0].mxu0
        %v2512 = vadd.f32 0.0, %v2511
        %v2513 = vpop.f32.mrb[0].mxu0
        %v2514 = vpop.f32.mrb[0].mxu0
        %v2515 = vpop.f32.mrb[0].mxu0
        %2516 = vdwg.mxu0
        %v2518 = vsel %vm1187, %v2419, 0
        %v2521 = vsel %vm1187, %v2423, 0
        %2523 = vmatprep.subr.bf16.mxu0 0
        %2524 = vmatpush1.bf16.xpose.msra.mxu0 %v2521
        %2525 = vmatprep.subr.bf16.mxu0 0
        %2526 = vmatpush1.bf16.xpose.msra.mxu0 0
        %2527 = vmatprep.subr.bf16.mxu0 0
        %2528 = vmatpush1.bf16.xpose.msra.mxu0 0
        %2529 = vmatprep.subr.bf16.mxu0 0
        %2530 = vmatpush1.bf16.xpose.msra.mxu0 0
        %2531 = vmatprep.subr.bf16.mxu0 0
        %2532 = vmatpush1.bf16.xpose.msra.mxu0 0
        %2533 = vmatprep.subr.bf16.mxu0 0
        %2534 = vmatpush1.bf16.xpose.msra.mxu0 0
        %2535 = vmatprep.subr.bf16.mxu0 0
        %2536 = vmatpush1.bf16.xpose.msra.mxu0 0
        %2537 = vmatprep.subr.bf16.mxu0 0
        %2538 = vmatpush1.bf16.xpose.msra.mxu0 0
        %2539 = vmatprep.subr.bf16.mxu0 0
        %2540 = vmatpush1.bf16.xpose.msra.mxu0 0
        %2541 = vmatprep.subr.bf16.mxu0 0
        %2542 = vmatpush1.bf16.xpose.msra.mxu0 0
        %2543 = vmatprep.subr.bf16.mxu0 0
        %2544 = vmatpush1.bf16.xpose.msra.mxu0 0
        %2545 = vmatprep.subr.bf16.mxu0 0
        %2546 = vmatpush1.bf16.xpose.msra.mxu0 0
        %2547 = vmatprep.subr.bf16.mxu0 0
        %2548 = vmatpush1.bf16.xpose.msra.mxu0 0
        %2549 = vmatprep.subr.bf16.mxu0 0
        %2550 = vmatpush1.bf16.xpose.msra.mxu0 0
        %2551 = vmatprep.subr.bf16.mxu0 0
        %2552 = vmatpush1.bf16.xpose.msra.mxu0 0
        %2553 = vmatprep.subr.bf16.mxu0 0
        %2554 = vmatpush1.bf16.xpose.msra.mxu0 0
        %2555 = vmatprep.mubr.bf16.mxu0 0
        %2556 = vmatmul.mubr.bf16.gmra.mrb[0].mxu0 %v2518
        %v2557 = vpop.f32.mrb[0].mxu0
        %v2558 = vadd.f32 0.0, %v2557
        %v2559 = vpop.f32.mrb[0].mxu0
        %v2560 = vpop.f32.mrb[0].mxu0
        %v2561 = vpop.f32.mrb[0].mxu0
        %2562 = vdwg.mxu0
        %v2564 = vsel %vm1187, %v2420, 0
        %v2567 = vsel %vm1187, %v2424, 0
        %2569 = vmatprep.subr.bf16.mxu0 0
        %2570 = vmatpush1.bf16.xpose.msra.mxu0 %v2567
        %2571 = vmatprep.subr.bf16.mxu0 0
        %2572 = vmatpush1.bf16.xpose.msra.mxu0 0
        %2573 = vmatprep.subr.bf16.mxu0 0
        %2574 = vmatpush1.bf16.xpose.msra.mxu0 0
        %2575 = vmatprep.subr.bf16.mxu0 0
        %2576 = vmatpush1.bf16.xpose.msra.mxu0 0
        %2577 = vmatprep.subr.bf16.mxu0 0
        %2578 = vmatpush1.bf16.xpose.msra.mxu0 0
        %2579 = vmatprep.subr.bf16.mxu0 0
        %2580 = vmatpush1.bf16.xpose.msra.mxu0 0
        %2581 = vmatprep.subr.bf16.mxu0 0
        %2582 = vmatpush1.bf16.xpose.msra.mxu0 0
        %2583 = vmatprep.subr.bf16.mxu0 0
        %2584 = vmatpush1.bf16.xpose.msra.mxu0 0
        %2585 = vmatprep.subr.bf16.mxu0 0
        %2586 = vmatpush1.bf16.xpose.msra.mxu0 0
        %2587 = vmatprep.subr.bf16.mxu0 0
        %2588 = vmatpush1.bf16.xpose.msra.mxu0 0
        %2589 = vmatprep.subr.bf16.mxu0 0
        %2590 = vmatpush1.bf16.xpose.msra.mxu0 0
        %2591 = vmatprep.subr.bf16.mxu0 0
        %2592 = vmatpush1.bf16.xpose.msra.mxu0 0
        %2593 = vmatprep.subr.bf16.mxu0 0
        %2594 = vmatpush1.bf16.xpose.msra.mxu0 0
        %2595 = vmatprep.subr.bf16.mxu0 0
        %2596 = vmatpush1.bf16.xpose.msra.mxu0 0
        %2597 = vmatprep.subr.bf16.mxu0 0
        %2598 = vmatpush1.bf16.xpose.msra.mxu0 0
        %2599 = vmatprep.subr.bf16.mxu0 0
        %2600 = vmatpush1.bf16.xpose.msra.mxu0 0
        %2601 = vmatprep.mubr.bf16.mxu0 0
        %2602 = vmatmul.mubr.bf16.gmra.mrb[0].mxu0 %v2564
        %v2603 = vpop.f32.mrb[0].mxu0
        %v2604 = vadd.f32 0.0, %v2603
        %v2605 = vpop.f32.mrb[0].mxu0
        %v2606 = vpop.f32.mrb[0].mxu0
        %v2607 = vpop.f32.mrb[0].mxu0
        %2608 = vdwg.mxu0
        %v2609 = vmul.f32 %v2466, 0.35355338
        %v2610 = vmul.f32 %v2512, 0.35355338
        %v2611 = vmul.f32 %v2558, 0.35355338
        %v2612 = vmul.f32 %v2604, 0.35355338
        %v2613 = vadd.f32 %v2609, %v635
        %v2614 = vadd.f32 %v2610, %v635
        %v2615 = vadd.f32 %v2611, %v635
        %v2616 = vadd.f32 %v2612, %v635
        %v2617 = vsel %vm1187, %v2613, -inf
        %2618 = vmax.xlane.f32.xlu0 %v2617
        %v2619 = vpop.xlane.xlu0 %2618
        %v2620 = vsel %vm1187, %v2614, -inf
        %2621 = vmax.xlane.f32.xlu0 %v2620
        %v2622 = vpop.xlane.xlu0 %2621
        %v2623 = vsel %vm1187, %v2615, -inf
        %2624 = vmax.xlane.f32.xlu0 %v2623
        %v2625 = vpop.xlane.xlu0 %2624
        %v2626 = vsel %vm1187, %v2616, -inf
        %2627 = vmax.xlane.f32.xlu0 %v2626
        %v2628 = vpop.xlane.xlu0 %2627
        %v2629 = vsub.f32 %v2613, %v2619
        %v2630 = vsub.f32 %v2614, %v2622
        %v2631 = vsub.f32 %v2615, %v2625
        %v2632 = vsub.f32 %v2616, %v2628
        %v2633 = vmul.f32 %v2629, 1.442695
        %v2634 = vpow.pop %v2633
        %v2635 = vmul.f32 %v2630, 1.442695
        %v2636 = vpow.pop %v2635
        %v2637 = vmul.f32 %v2631, 1.442695
        %v2638 = vpow.pop %v2637
        %v2639 = vmul.f32 %v2632, 1.442695
        %v2640 = vpow.pop %v2639
        %v2641 = vsel %vm1187, %v2634, 0.0
        %2642 = vadd.xlane.f32.xlu0 %v2641
        %v2643 = vpop.xlane.xlu0 %2642
        %v2644 = vsel %vm1187, %v2636, 0.0
        %2645 = vadd.xlane.f32.xlu0 %v2644
        %v2646 = vpop.xlane.xlu0 %2645
        %v2647 = vsel %vm1187, %v2638, 0.0
        %2648 = vadd.xlane.f32.xlu0 %v2647
        %v2649 = vpop.xlane.xlu0 %2648
        %v2650 = vsel %vm1187, %v2640, 0.0
        %2651 = vadd.xlane.f32.xlu0 %v2650
        %v2652 = vpop.xlane.xlu0 %2651
        %v2653 = vrcp.pop %v2643
        %v2654 = vrcp.pop %v2646
        %v2655 = vrcp.pop %v2649
        %v2656 = vrcp.pop %v2652
        %v2657 = vmul.f32 %v2634, %v2653
        %v2658 = vmul.f32 %v2636, %v2654
        %v2659 = vmul.f32 %v2638, %v2655
        %v2660 = vmul.f32 %v2640, %v2656
        %v2661 = vpack.c.bf16 %v2657, %v2657
        %v2662 = vpack.c.bf16 %v2658, %v2658
        %v2663 = vpack.c.bf16 %v2659, %v2659
        %v2664 = vpack.c.bf16 %v2660, %v2660
        %v2665 = vpack.c.bf16 %v2413, %v2413
        %v2666 = vpack.c.bf16 %v2414, %v2414
        %v2667 = vpack.c.bf16 %v2415, %v2415
        %v2668 = vpack.c.bf16 %v2416, %v2416
        %v2670 = vsel %vm1187, %v2661, 0
        %v2673 = vsel %vm1435, %v2665, 0
        %2675 = vmatprep.subr.bf16.mxu0 0
        %2676 = vmatpush1.bf16.msra.mxu0 %v2673
        %2677 = vmatprep.subr.bf16.mxu0 0
        %2678 = vmatpush1.bf16.msra.mxu0 0
        %2679 = vmatprep.subr.bf16.mxu0 0
        %2680 = vmatpush1.bf16.msra.mxu0 0
        %2681 = vmatprep.subr.bf16.mxu0 0
        %2682 = vmatpush1.bf16.msra.mxu0 0
        %2683 = vmatprep.subr.bf16.mxu0 0
        %2684 = vmatpush1.bf16.msra.mxu0 0
        %2685 = vmatprep.subr.bf16.mxu0 0
        %2686 = vmatpush1.bf16.msra.mxu0 0
        %2687 = vmatprep.subr.bf16.mxu0 0
        %2688 = vmatpush1.bf16.msra.mxu0 0
        %2689 = vmatprep.subr.bf16.mxu0 0
        %2690 = vmatpush1.bf16.msra.mxu0 0
        %2691 = vmatprep.subr.bf16.mxu0 0
        %2692 = vmatpush1.bf16.msra.mxu0 0
        %2693 = vmatprep.subr.bf16.mxu0 0
        %2694 = vmatpush1.bf16.msra.mxu0 0
        %2695 = vmatprep.subr.bf16.mxu0 0
        %2696 = vmatpush1.bf16.msra.mxu0 0
        %2697 = vmatprep.subr.bf16.mxu0 0
        %2698 = vmatpush1.bf16.msra.mxu0 0
        %2699 = vmatprep.subr.bf16.mxu0 0
        %2700 = vmatpush1.bf16.msra.mxu0 0
        %2701 = vmatprep.subr.bf16.mxu0 0
        %2702 = vmatpush1.bf16.msra.mxu0 0
        %2703 = vmatprep.subr.bf16.mxu0 0
        %2704 = vmatpush1.bf16.msra.mxu0 0
        %2705 = vmatprep.subr.bf16.mxu0 0
        %2706 = vmatpush1.bf16.msra.mxu0 0
        %2707 = vmatprep.mubr.bf16.mxu0 0
        %2708 = vmatmul.mubr.bf16.gmra.mrb[0].mxu0 %v2670
        %v2709 = vpop.f32.mrb[0].mxu0
        %v2710 = vadd.f32 0.0, %v2709
        %v2711 = vpop.f32.mrb[0].mxu0
        %v2712 = vpop.f32.mrb[0].mxu0
        %v2713 = vpop.f32.mrb[0].mxu0
        %2714 = vdwg.mxu0
        %v2716 = vsel %vm1187, %v2662, 0
        %v2719 = vsel %vm1435, %v2666, 0
        %2721 = vmatprep.subr.bf16.mxu0 0
        %2722 = vmatpush1.bf16.msra.mxu0 %v2719
        %2723 = vmatprep.subr.bf16.mxu0 0
        %2724 = vmatpush1.bf16.msra.mxu0 0
        %2725 = vmatprep.subr.bf16.mxu0 0
        %2726 = vmatpush1.bf16.msra.mxu0 0
        %2727 = vmatprep.subr.bf16.mxu0 0
        %2728 = vmatpush1.bf16.msra.mxu0 0
        %2729 = vmatprep.subr.bf16.mxu0 0
        %2730 = vmatpush1.bf16.msra.mxu0 0
        %2731 = vmatprep.subr.bf16.mxu0 0
        %2732 = vmatpush1.bf16.msra.mxu0 0
        %2733 = vmatprep.subr.bf16.mxu0 0
        %2734 = vmatpush1.bf16.msra.mxu0 0
        %2735 = vmatprep.subr.bf16.mxu0 0
        %2736 = vmatpush1.bf16.msra.mxu0 0
        %2737 = vmatprep.subr.bf16.mxu0 0
        %2738 = vmatpush1.bf16.msra.mxu0 0
        %2739 = vmatprep.subr.bf16.mxu0 0
        %2740 = vmatpush1.bf16.msra.mxu0 0
        %2741 = vmatprep.subr.bf16.mxu0 0
        %2742 = vmatpush1.bf16.msra.mxu0 0
        %2743 = vmatprep.subr.bf16.mxu0 0
        %2744 = vmatpush1.bf16.msra.mxu0 0
        %2745 = vmatprep.subr.bf16.mxu0 0
        %2746 = vmatpush1.bf16.msra.mxu0 0
        %2747 = vmatprep.subr.bf16.mxu0 0
        %2748 = vmatpush1.bf16.msra.mxu0 0
        %2749 = vmatprep.subr.bf16.mxu0 0
        %2750 = vmatpush1.bf16.msra.mxu0 0
        %2751 = vmatprep.subr.bf16.mxu0 0
        %2752 = vmatpush1.bf16.msra.mxu0 0
        %2753 = vmatprep.mubr.bf16.mxu0 0
        %2754 = vmatmul.mubr.bf16.gmra.mrb[0].mxu0 %v2716
        %v2755 = vpop.f32.mrb[0].mxu0
        %v2756 = vadd.f32 0.0, %v2755
        %v2757 = vpop.f32.mrb[0].mxu0
        %v2758 = vpop.f32.mrb[0].mxu0
        %v2759 = vpop.f32.mrb[0].mxu0
        %2760 = vdwg.mxu0
        %v2762 = vsel %vm1187, %v2663, 0
        %v2765 = vsel %vm1435, %v2667, 0
        %2767 = vmatprep.subr.bf16.mxu0 0
        %2768 = vmatpush1.bf16.msra.mxu0 %v2765
        %2769 = vmatprep.subr.bf16.mxu0 0
        %2770 = vmatpush1.bf16.msra.mxu0 0
        %2771 = vmatprep.subr.bf16.mxu0 0
        %2772 = vmatpush1.bf16.msra.mxu0 0
        %2773 = vmatprep.subr.bf16.mxu0 0
        %2774 = vmatpush1.bf16.msra.mxu0 0
        %2775 = vmatprep.subr.bf16.mxu0 0
        %2776 = vmatpush1.bf16.msra.mxu0 0
        %2777 = vmatprep.subr.bf16.mxu0 0
        %2778 = vmatpush1.bf16.msra.mxu0 0
        %2779 = vmatprep.subr.bf16.mxu0 0
        %2780 = vmatpush1.bf16.msra.mxu0 0
        %2781 = vmatprep.subr.bf16.mxu0 0
        %2782 = vmatpush1.bf16.msra.mxu0 0
        %2783 = vmatprep.subr.bf16.mxu0 0
        %2784 = vmatpush1.bf16.msra.mxu0 0
        %2785 = vmatprep.subr.bf16.mxu0 0
        %2786 = vmatpush1.bf16.msra.mxu0 0
        %2787 = vmatprep.subr.bf16.mxu0 0
        %2788 = vmatpush1.bf16.msra.mxu0 0
        %2789 = vmatprep.subr.bf16.mxu0 0
        %2790 = vmatpush1.bf16.msra.mxu0 0
        %2791 = vmatprep.subr.bf16.mxu0 0
        %2792 = vmatpush1.bf16.msra.mxu0 0
        %2793 = vmatprep.subr.bf16.mxu0 0
        %2794 = vmatpush1.bf16.msra.mxu0 0
        %2795 = vmatprep.subr.bf16.mxu0 0
        %2796 = vmatpush1.bf16.msra.mxu0 0
        %2797 = vmatprep.subr.bf16.mxu0 0
        %2798 = vmatpush1.bf16.msra.mxu0 0
        %2799 = vmatprep.mubr.bf16.mxu0 0
        %2800 = vmatmul.mubr.bf16.gmra.mrb[0].mxu0 %v2762
        %v2801 = vpop.f32.mrb[0].mxu0
        %v2802 = vadd.f32 0.0, %v2801
        %v2803 = vpop.f32.mrb[0].mxu0
        %v2804 = vpop.f32.mrb[0].mxu0
        %v2805 = vpop.f32.mrb[0].mxu0
        %2806 = vdwg.mxu0
        %v2808 = vsel %vm1187, %v2664, 0
        %v2811 = vsel %vm1435, %v2668, 0
        %2813 = vmatprep.subr.bf16.mxu0 0
        %2814 = vmatpush1.bf16.msra.mxu0 %v2811
        %2815 = vmatprep.subr.bf16.mxu0 0
        %2816 = vmatpush1.bf16.msra.mxu0 0
        %2817 = vmatprep.subr.bf16.mxu0 0
        %2818 = vmatpush1.bf16.msra.mxu0 0
        %2819 = vmatprep.subr.bf16.mxu0 0
        %2820 = vmatpush1.bf16.msra.mxu0 0
        %2821 = vmatprep.subr.bf16.mxu0 0
        %2822 = vmatpush1.bf16.msra.mxu0 0
        %2823 = vmatprep.subr.bf16.mxu0 0
        %2824 = vmatpush1.bf16.msra.mxu0 0
        %2825 = vmatprep.subr.bf16.mxu0 0
        %2826 = vmatpush1.bf16.msra.mxu0 0
        %2827 = vmatprep.subr.bf16.mxu0 0
        %2828 = vmatpush1.bf16.msra.mxu0 0
        %2829 = vmatprep.subr.bf16.mxu0 0
        %2830 = vmatpush1.bf16.msra.mxu0 0
        %2831 = vmatprep.subr.bf16.mxu0 0
        %2832 = vmatpush1.bf16.msra.mxu0 0
        %2833 = vmatprep.subr.bf16.mxu0 0
        %2834 = vmatpush1.bf16.msra.mxu0 0
        %2835 = vmatprep.subr.bf16.mxu0 0
        %2836 = vmatpush1.bf16.msra.mxu0 0
        %2837 = vmatprep.subr.bf16.mxu0 0
        %2838 = vmatpush1.bf16.msra.mxu0 0
        %2839 = vmatprep.subr.bf16.mxu0 0
        %2840 = vmatpush1.bf16.msra.mxu0 0
        %2841 = vmatprep.subr.bf16.mxu0 0
        %2842 = vmatpush1.bf16.msra.mxu0 0
        %2843 = vmatprep.subr.bf16.mxu0 0
        %2844 = vmatpush1.bf16.msra.mxu0 0
        %2845 = vmatprep.mubr.bf16.mxu0 0
        %2846 = vmatmul.mubr.bf16.gmra.mrb[0].mxu0 %v2808
        %v2847 = vpop.f32.mrb[0].mxu0
        %v2848 = vadd.f32 0.0, %v2847
        %v2849 = vpop.f32.mrb[0].mxu0
        %v2850 = vpop.f32.mrb[0].mxu0
        %v2851 = vpop.f32.mrb[0].mxu0
        %2852 = vdwg.mxu0
        %v2853 = vcombine.low %v2710, %v2802
        %v2854 = vcombine.high %v2710, %v2802
        %v2856 = vunpack.c.l.s4 1983009808
        %v2857 = vunpack.c.0.s8 %v2856
        %v2858 = vlaneseq
        %v2859 = vshrl.u32 %v2858, 7
        %v2860 = vsub.s32 %v2857, %v2859
        %v2861 = vrot.slane %v2853, %v2860
        %v2863 = vunpack.c.l.s4 1983009808
        %v2864 = vunpack.c.0.s8 %v2863
        %v2865 = vlaneseq
        %v2866 = vshrl.u32 %v2865, 7
        %v2867 = vsub.s32 %v2864, %v2866
        %v2868 = vrot.slane %v2854, %v2867
        %v2869 = vcombine.low %v2756, %v2848
        %v2870 = vcombine.high %v2756, %v2848
        %v2872 = vunpack.c.l.s4 1983009808
        %v2873 = vunpack.c.0.s8 %v2872
        %v2874 = vlaneseq
        %v2875 = vshrl.u32 %v2874, 7
        %v2876 = vsub.s32 %v2873, %v2875
        %v2877 = vrot.slane %v2869, %v2876
        %v2879 = vunpack.c.l.s4 1983009808
        %v2880 = vunpack.c.0.s8 %v2879
        %v2881 = vlaneseq
        %v2882 = vshrl.u32 %v2881, 7
        %v2883 = vsub.s32 %v2880, %v2882
        %v2884 = vrot.slane %v2870, %v2883
        %v2885 = vcombine.low %v2861, %v2877
        %v2886 = vcombine.high %v2861, %v2877
        %v2888 = vunpack.c.l.s4 1934713408
        %v2889 = vunpack.c.0.s8 %v2888
        %v2890 = vlaneseq
        %v2891 = vshrl.u32 %v2890, 7
        %v2892 = vsub.s32 %v2889, %v2891
        %v2893 = vrot.slane %v2885, %v2892
        %v2895 = vunpack.c.l.s4 1934713408
        %v2896 = vunpack.c.0.s8 %v2895
        %v2897 = vlaneseq
        %v2898 = vshrl.u32 %v2897, 7
        %v2899 = vsub.s32 %v2896, %v2898
        %v2900 = vrot.slane %v2886, %v2899
        %v2901 = vcombine.low %v2868, %v2884
        %v2902 = vcombine.high %v2868, %v2884
        %v2904 = vunpack.c.l.s4 1934713408
        %v2905 = vunpack.c.0.s8 %v2904
        %v2906 = vlaneseq
        %v2907 = vshrl.u32 %v2906, 7
        %v2908 = vsub.s32 %v2905, %v2907
        %v2909 = vrot.slane %v2901, %v2908
        %v2911 = vunpack.c.l.s4 1934713408
        %v2912 = vunpack.c.0.s8 %v2911
        %v2913 = vlaneseq
        %v2914 = vshrl.u32 %v2913, 7
        %v2915 = vsub.s32 %v2912, %v2914
        %v2916 = vrot.slane %v2902, %v2915
        %v2917 = vcombine.high %v2893, 0.0
        %v2918 = vcombine.high %v2900, 0.0
        %v2919 = vcombine.high %v2909, 0.0
        %v2920 = vcombine.high %v2916, 0.0
        %v2921 = vcombine.low %v2893, %v2900
        %v2923 = vunpack.c.l.s4 1983009808
        %v2924 = vunpack.c.0.s8 %v2923
        %v2925 = vlaneseq
        %v2926 = vshrl.u32 %v2925, 7
        %v2927 = vsub.s32 %v2924, %v2926
        %v2928 = vrot.slane %v2921, %v2927
        %v2929 = vcombine.low %v2917, %v2918
        %v2931 = vunpack.c.l.s4 1983009808
        %v2932 = vunpack.c.0.s8 %v2931
        %v2933 = vlaneseq
        %v2934 = vshrl.u32 %v2933, 7
        %v2935 = vsub.s32 %v2932, %v2934
        %v2936 = vrot.slane %v2929, %v2935
        %v2937 = vcombine.low %v2909, %v2916
        %v2939 = vunpack.c.l.s4 1983009808
        %v2940 = vunpack.c.0.s8 %v2939
        %v2941 = vlaneseq
        %v2942 = vshrl.u32 %v2941, 7
        %v2943 = vsub.s32 %v2940, %v2942
        %v2944 = vrot.slane %v2937, %v2943
        %v2945 = vcombine.low %v2919, %v2920
        %v2947 = vunpack.c.l.s4 1983009808
        %v2948 = vunpack.c.0.s8 %v2947
        %v2949 = vlaneseq
        %v2950 = vshrl.u32 %v2949, 7
        %v2951 = vsub.s32 %v2948, %v2950
        %v2952 = vrot.slane %v2945, %v2951
        %v2953 = vcombine.low %v2928, %v2936
        %v2954 = vcombine.high %v2928, %v2936
        %v2956 = vunpack.c.l.s4 1934713408
        %v2957 = vunpack.c.0.s8 %v2956
        %v2958 = vlaneseq
        %v2959 = vshrl.u32 %v2958, 7
        %v2960 = vsub.s32 %v2957, %v2959
        %v2961 = vrot.slane %v2953, %v2960
        %v2963 = vunpack.c.l.s4 1934713408
        %v2964 = vunpack.c.0.s8 %v2963
        %v2965 = vlaneseq
        %v2966 = vshrl.u32 %v2965, 7
        %v2967 = vsub.s32 %v2964, %v2966
        %v2968 = vrot.slane %v2954, %v2967
        %v2969 = vcombine.low %v2944, %v2952
        %v2970 = vcombine.high %v2944, %v2952
        %v2972 = vunpack.c.l.s4 1934713408
        %v2973 = vunpack.c.0.s8 %v2972
        %v2974 = vlaneseq
        %v2975 = vshrl.u32 %v2974, 7
        %v2976 = vsub.s32 %v2973, %v2975
        %v2977 = vrot.slane %v2969, %v2976
        %v2979 = vunpack.c.l.s4 1934713408
        %v2980 = vunpack.c.0.s8 %v2979
        %v2981 = vlaneseq
        %v2982 = vshrl.u32 %v2981, 7
        %v2983 = vsub.s32 %v2980, %v2982
        %v2984 = vrot.slane %v2970, %v2983
        %v2985 = vcombine.low %v2961, %v2977
        %v2986 = vcombine.high %v2961, %v2977
        %v2987 = vcombine.low %v2968, %v2984
        %v2988 = vcombine.high %v2968, %v2984
        %2990 = vrot.lane.b32.xlu0 %v2986, 8
        %v2991 = vpop.permute.xlu0 %2990
        %2994 = vrot.lane.b32.xlu0 %v2987, 16
        %v2995 = vpop.permute.xlu0 %2994
        %2998 = vrot.lane.b32.xlu0 %v2988, 24
        %v2999 = vpop.permute.xlu0 %2998
        %v3001 = vsel %vm1187, %v2985, %v2991
        %v3002 = vsel %vm1766, %v3001, %v2995
        %v3003 = vsel %vm1768, %v3002, %v2999
        %v3004 = vpack.c.bf16 %v3003, %v3003
        %v3005 = vlaneseq
        %v3006 = vshrl.u32 %v3005, 7
        %v3007 = vsub.s32 2, %v3006
        %v3008 = vrot.slane %v673, %v3007
        %v3013 = vunpack.c.l.b16 %v651
        %v3014 = vunpack.c.l.b16 %v652
        %v3015 = vunpack.c.l.b16 %v653
        %v3016 = vunpack.c.l.b16 %v654
        %v3017 = vpack.c.b16 %v3014, %v3013
        %v3018 = vpack.c.b16 %v3016, %v3015
        %v3022 = vsel %vm693, %v3004, 0
        %3024 = vmatprep.subr.bf16.mxu0 0
        %3025 = vmatpush1.bf16.msra.mxu0 %v3017
        %3026 = vmatprep.subr.bf16.mxu0 0
        %3027 = vmatpush1.bf16.msra.mxu0 %v3018
        %3028 = vmatprep.subr.bf16.mxu0 0
        %3029 = vmatpush1.bf16.msra.mxu0 0
        %3030 = vmatprep.subr.bf16.mxu0 0
        %3031 = vmatpush1.bf16.msra.mxu0 0
        %3032 = vmatprep.subr.bf16.mxu0 0
        %3033 = vmatpush1.bf16.msra.mxu0 0
        %3034 = vmatprep.subr.bf16.mxu0 0
        %3035 = vmatpush1.bf16.msra.mxu0 0
        %3036 = vmatprep.subr.bf16.mxu0 0
        %3037 = vmatpush1.bf16.msra.mxu0 0
        %3038 = vmatprep.subr.bf16.mxu0 0
        %3039 = vmatpush1.bf16.msra.mxu0 0
        %3040 = vmatprep.subr.bf16.mxu0 0
        %3041 = vmatpush1.bf16.msra.mxu0 0
        %3042 = vmatprep.subr.bf16.mxu0 0
        %3043 = vmatpush1.bf16.msra.mxu0 0
        %3044 = vmatprep.subr.bf16.mxu0 0
        %3045 = vmatpush1.bf16.msra.mxu0 0
        %3046 = vmatprep.subr.bf16.mxu0 0
        %3047 = vmatpush1.bf16.msra.mxu0 0
        %3048 = vmatprep.subr.bf16.mxu0 0
        %3049 = vmatpush1.bf16.msra.mxu0 0
        %3050 = vmatprep.subr.bf16.mxu0 0
        %3051 = vmatpush1.bf16.msra.mxu0 0
        %3052 = vmatprep.subr.bf16.mxu0 0
        %3053 = vmatpush1.bf16.msra.mxu0 0
        %3054 = vmatprep.subr.bf16.mxu0 0
        %3055 = vmatpush1.bf16.msra.mxu0 0
        %3056 = vmatprep.mubr.bf16.mxu0 0
        %3057 = vmatmul.mubr.bf16.gmra.mrb[0].mxu0 %v3022
        %v3058 = vpop.f32.mrb[0].mxu0
        %v3059 = vadd.f32 %v3008, %v3058
        %v3060 = vpop.f32.mrb[0].mxu0
        %v3061 = vpop.f32.mrb[0].mxu0
        %v3062 = vpop.f32.mrb[0].mxu0
        %3063 = vdwg.mxu0
        %v3064 = vadd.f32 %v1854, %v3059
        %v3065 = vsel %vm693, %v3064, 0.0
        %3066 = vadd.xlane.f32.xlu0 %v3065
        %v3067 = vpop.xlane.xlu0 %3066
        %v3068 = vmul.f32 %v3067, %v1834
        %v3069 = vsub.f32 %v3064, %v3068
        %v3070 = vmul.f32 %v3069, %v3069
        %v3071 = vsel %vm693, %v3070, 0.0
        %3072 = vadd.xlane.f32.xlu0 %v3071
        %v3073 = vpop.xlane.xlu0 %3072
        %v3074 = vmul.f32 %v3073, %v1834
        %v3075 = vadd.f32 %v3074, 1e-06
        %v3076 = vrsqrt.pop %v3075
        %v3077 = vmul.f32 %v3069, %v3076
        %v3078 = vlaneseq
        %v3079 = vshrl.u32 %v3078, 7
        %v3080 = vsub.s32 6, %v3079
        %v3081 = vrot.slane %v673, %v3080
        %v3082 = vmul.f32 %v3077, %v3081
        %v3083 = vlaneseq
        %v3084 = vshrl.u32 %v3083, 7
        %v3085 = vsub.s32 7, %v3084
        %v3086 = vrot.slane %v673, %v3085
        %v3087 = vadd.f32 %v3082, %v3086
        %v3088 = vpack.c.bf16 %v3087, %v3087
        %v3090 = vlaneseq
        %v3091 = vshrl.u32 %v3090, 7
        %v3092 = vsub.s32 0, %v3091
        %v3093 = vrot.slane %v664, %v3092
        %v3099 = vunpack.c.l.b16 %v660
        %v3100 = vunpack.c.l.b16 %v661
        %v3101 = vunpack.c.l.b16 %v662
        %v3102 = vunpack.c.l.b16 %v663
        %v3103 = vpack.c.b16 %v3100, %v3099
        %v3104 = vpack.c.b16 %v3102, %v3101
        %v3108 = vsel %vm693, %v3088, 0
        %3110 = vmatprep.subr.bf16.mxu0 0
        %3111 = vmatpush1.bf16.msra.mxu0 %v3103
        %3112 = vmatprep.subr.bf16.mxu0 0
        %3113 = vmatpush1.bf16.msra.mxu0 %v3104
        %3114 = vmatprep.subr.bf16.mxu0 0
        %3115 = vmatpush1.bf16.msra.mxu0 0
        %3116 = vmatprep.subr.bf16.mxu0 0
        %3117 = vmatpush1.bf16.msra.mxu0 0
        %3118 = vmatprep.subr.bf16.mxu0 0
        %3119 = vmatpush1.bf16.msra.mxu0 0
        %3120 = vmatprep.subr.bf16.mxu0 0
        %3121 = vmatpush1.bf16.msra.mxu0 0
        %3122 = vmatprep.subr.bf16.mxu0 0
        %3123 = vmatpush1.bf16.msra.mxu0 0
        %3124 = vmatprep.subr.bf16.mxu0 0
        %3125 = vmatpush1.bf16.msra.mxu0 0
        %3126 = vmatprep.subr.bf16.mxu0 0
        %3127 = vmatpush1.bf16.msra.mxu0 0
        %3128 = vmatprep.subr.bf16.mxu0 0
        %3129 = vmatpush1.bf16.msra.mxu0 0
        %3130 = vmatprep.subr.bf16.mxu0 0
        %3131 = vmatpush1.bf16.msra.mxu0 0
        %3132 = vmatprep.subr.bf16.mxu0 0
        %3133 = vmatpush1.bf16.msra.mxu0 0
        %3134 = vmatprep.subr.bf16.mxu0 0
        %3135 = vmatpush1.bf16.msra.mxu0 0
        %3136 = vmatprep.subr.bf16.mxu0 0
        %3137 = vmatpush1.bf16.msra.mxu0 0
        %3138 = vmatprep.subr.bf16.mxu0 0
        %3139 = vmatpush1.bf16.msra.mxu0 0
        %3140 = vmatprep.subr.bf16.mxu0 0
        %3141 = vmatpush1.bf16.msra.mxu0 0
        %3142 = vmatprep.mubr.bf16.mxu0 0
        %3143 = vmatmul.mubr.bf16.gmra.mrb[0].mxu0 %v3108
        %v3144 = vpop.f32.mrb[0].mxu0
        %v3145 = vadd.f32 %v3093, %v3144
        %v3146 = vpop.f32.mrb[0].mxu0
        %v3147 = vpop.f32.mrb[0].mxu0
        %v3148 = vpop.f32.mrb[0].mxu0
        %3149 = vdwg.mxu0
        %v3150 = vmax.f32 %v3145, 0.0
        %v3151 = vpack.c.bf16 %v3150, %v3150
        %v3152 = vlaneseq
        %v3153 = vshrl.u32 %v3152, 7
        %v3154 = vsub.s32 3, %v3153
        %v3155 = vrot.slane %v673, %v3154
        %v3164 = vunpack.c.l.b16 %v665
        %v3165 = vunpack.c.l.b16 %v666
        %v3166 = vunpack.c.l.b16 %v667
        %v3167 = vunpack.c.l.b16 %v668
        %v3168 = vunpack.c.l.b16 %v669
        %v3169 = vunpack.c.l.b16 %v670
        %v3170 = vunpack.c.l.b16 %v671
        %v3171 = vunpack.c.l.b16 %v672
        %v3172 = vpack.c.b16 %v3165, %v3164
        %v3173 = vpack.c.b16 %v3167, %v3166
        %v3174 = vpack.c.b16 %v3169, %v3168
        %v3175 = vpack.c.b16 %v3171, %v3170
        %vm3180 = vcmask 523264
        %v3182 = vsel %vm3180, %v3151, 0
        %3184 = vmatprep.subr.bf16.mxu0 0
        %3185 = vmatpush1.bf16.msra.mxu0 %v3172
        %3186 = vmatprep.subr.bf16.mxu0 0
        %3187 = vmatpush1.bf16.msra.mxu0 %v3173
        %3188 = vmatprep.subr.bf16.mxu0 0
        %3189 = vmatpush1.bf16.msra.mxu0 %v3174
        %3190 = vmatprep.subr.bf16.mxu0 0
        %3191 = vmatpush1.bf16.msra.mxu0 %v3175
        %3192 = vmatprep.subr.bf16.mxu0 0
        %3193 = vmatpush1.bf16.msra.mxu0 0
        %3194 = vmatprep.subr.bf16.mxu0 0
        %3195 = vmatpush1.bf16.msra.mxu0 0
        %3196 = vmatprep.subr.bf16.mxu0 0
        %3197 = vmatpush1.bf16.msra.mxu0 0
        %3198 = vmatprep.subr.bf16.mxu0 0
        %3199 = vmatpush1.bf16.msra.mxu0 0
        %3200 = vmatprep.subr.bf16.mxu0 0
        %3201 = vmatpush1.bf16.msra.mxu0 0
        %3202 = vmatprep.subr.bf16.mxu0 0
        %3203 = vmatpush1.bf16.msra.mxu0 0
        %3204 = vmatprep.subr.bf16.mxu0 0
        %3205 = vmatpush1.bf16.msra.mxu0 0
        %3206 = vmatprep.subr.bf16.mxu0 0
        %3207 = vmatpush1.bf16.msra.mxu0 0
        %3208 = vmatprep.subr.bf16.mxu0 0
        %3209 = vmatpush1.bf16.msra.mxu0 0
        %3210 = vmatprep.subr.bf16.mxu0 0
        %3211 = vmatpush1.bf16.msra.mxu0 0
        %3212 = vmatprep.subr.bf16.mxu0 0
        %3213 = vmatpush1.bf16.msra.mxu0 0
        %3214 = vmatprep.subr.bf16.mxu0 0
        %3215 = vmatpush1.bf16.msra.mxu0 0
        %3216 = vmatprep.mubr.bf16.mxu0 0
        %3217 = vmatmul.mubr.bf16.gmra.mrb[0].mxu0 %v3182
        %v3218 = vpop.f32.mrb[0].mxu0
        %v3219 = vadd.f32 %v3155, %v3218
        %v3220 = vpop.f32.mrb[0].mxu0
        %v3221 = vpop.f32.mrb[0].mxu0
        %v3222 = vpop.f32.mrb[0].mxu0
        %3223 = vdwg.mxu0
        %v3224 = vadd.f32 %v3087, %v3219
        %v3225 = vsel %vm693, %v3224, 0.0
        %3226 = vadd.xlane.f32.xlu0 %v3225
        %v3227 = vpop.xlane.xlu0 %3226
        %v3228 = vmul.f32 %v3227, %v1834
        %v3229 = vsub.f32 %v3224, %v3228
        %v3230 = vmul.f32 %v3229, %v3229
        %v3231 = vsel %vm693, %v3230, 0.0
        %3232 = vadd.xlane.f32.xlu0 %v3231
        %v3233 = vpop.xlane.xlu0 %3232
        %v3234 = vmul.f32 %v3233, %v1834
        %v3235 = vadd.f32 %v3234, 1e-06
        %v3236 = vrsqrt.pop %v3235
        %v3237 = vmul.f32 %v3229, %v3236
        %v3238 = vmul.f32 %v3237, %v3081
        %v3239 = vadd.f32 %v3238, %v3086
        %3240 = vst.msk [vmem:[%s577] sm:$0xff] %vm693, %v3239
        %s3241 = sand.u32 %s375, 1
        %s3242 = scalar_lea.sflag [#allocation3], %s3241
        %s3243 = sand.u32 %s375, 1
        %s3244 = smul.addr %s3243, 8
        %s3245 = scalar_lea.vmem [#allocation2], %s3244
        // Predicated region
        $region77: #{transformer_decoder.1} parent=71 // pred_check
          %p3246 = pneg %p385
        $region78: #{transformer_decoder.1} parent=71 // pred_check_branch
          %3248 = sbr.rel (%p3246) target = $region80
        $region79: #{transformer_decoder.1} parent=71 // pred_region
          %s3250 = ssub.s32 128, 128
          %3251 = vsyncadd %s3242, %s3250
          %s3252 = smul.addr %s31, 128
          %s3253 = scalar_lea.hbm %s13, %s3252
          %s3255 = sshll.u32 %s3245, 4
          %s3256 = int_to_ptr.vmem [resolvable:$true] %s3255
          %3258 = dma.vmem_to_hbm [thread:$0]  %s3256, 128, %s3253, %s3242
        $region80: #{transformer_decoder.1} parent=71 // pred_fallthru
          _
      $region72: #{transformer_decoder.1} parent=5 // pred_fallthru
        _
      %p3259 = scmp.le.s32.totalorder 2, %s22
      // Predicated region
      $region81: #{transformer_decoder.1} parent=5 // pred_check
        %p3260 = pneg %p3259
      $region82: #{transformer_decoder.1} parent=5 // pred_check_branch
        %3262 = sbr.rel (%p3260) target = $region84
      $region83: #{transformer_decoder.1} parent=5 // pred_region
        %s3263 = ssub.s32 %s22, 2
        // Predicated region
        $region85: #{transformer_decoder.1} parent=83 // pred_check
          %p3264 = pneg %p391
        $region86: #{transformer_decoder.1} parent=83 // pred_check_branch
          %3266 = sbr.rel (%p3264) target = $region88
        $region87: #{transformer_decoder.1} parent=83 // pred_region
          %s3267 = sand.u32 %s376, 1
          %s3268 = scalar_lea.sflag [#allocation3], %s3267
          %s3269 = sand.u32 %s376, 1
          %s3270 = smul.addr %s3269, 8
          %s3271 = scalar_lea.vmem [#allocation2], %s3270
          %3272 = dma.done %s3268, 128
        $region88: #{transformer_decoder.1} parent=83 // pred_fallthru
          _
      $region84: #{transformer_decoder.1} parent=5 // pred_fallthru
        _
    $region6: #{transformer_decoder.1} parent=1 // loop_footer
      %s26 = sadd.s32 1, %s22
    $region7: #{transformer_decoder.1} parent=1 // loop_footer_branch
      %21 = sbr.rel target = $region3
    $region8: #{transformer_decoder.1} parent=1 // loop_exit
      _
    %3273 = vsyncpa [#allocation3], 1
    %s3274 = scalar_lea.sflag [#allocation3], 1
    %3275 = vsyncpa %s3274, 1

</llo_original>
